<compile_context>
chip_gen: v7x
topology: tpu7x:2x2x1
jax: 0.10.0
libtpu: 0.0.40
codegen_flags: <defaults>
</compile_context>

<pallas_src>
import math

import jax
import jax.numpy as jnp
from jax.experimental import pallas as pl
from jax.experimental.pallas import tpu as pltpu


def _layernorm(v, gamma, beta, eps=1e-5):
    mu = jnp.mean(v, axis=-1, keepdims=True)
    var = jnp.mean((v - mu) ** 2, axis=-1, keepdims=True)
    return (v - mu) * jax.lax.rsqrt(var + eps) * gamma + beta


def block_kernel(x_ref, wqkv_ref, wp_ref, bp_ref, w1_ref, b1_ref, w2_ref, b2_ref,
                 g1_ref, be1_ref, g2_ref, be2_ref,
                 out_ref, attn_ref, qkv_sref, sa_sref):
    bB, T, E = x_ref.shape
    n_heads = attn_ref.shape[0]
    H = E // n_heads

    # ---- LayerNorm 1 (f32 statistics) ----
    ln1 = _layernorm(x_ref[...].astype(jnp.float32).reshape(bB * T, E),
                     g1_ref[...], be1_ref[...])

    # ---- fused QKV projection (Q columns pre-scaled by 1/sqrt(H) on host) ----
    # Stage into bf16 VMEM scratch so the wide (bB*T, 3E) value does not stay
    # live in vregs across the whole attention section.
    qkv = jnp.dot(ln1.astype(jnp.bfloat16), wqkv_ref[...],
                  preferred_element_type=jnp.float32)            # (bB*T, 3E)
    qkv_sref[...] = qkv.reshape(bB, T, 3 * E).astype(jnp.bfloat16)

    # ---- per-head attention ----
    # TODO(synk): Mosaic support for multi-batch-dim dot_general / mixed-minor
    # transposes is limited, so heads stay a static loop; batching the heads
    # into one einsum and a flash-style query-tiled softmax (needed for T >~ 512,
    # where the monolithic (T,T) scores no longer fit) is the next restructure.
    for h in range(n_heads):
        qh = qkv_sref[:, :, h * H:(h + 1) * H]                   # (bB, T, H) bf16
        kh = qkv_sref[:, :, E + h * H:E + (h + 1) * H]
        vh = qkv_sref[:, :, 2 * E + h * H:2 * E + (h + 1) * H]
        s = jnp.einsum("bqd,bkd->bqk", qh, kh,
                       preferred_element_type=jnp.float32)       # (bB, T, T)
        s = s - jnp.max(s, axis=-1, keepdims=True)
        e = jnp.exp(s)
        wei = e * pl.reciprocal(jnp.sum(e, axis=-1, keepdims=True), approx=True)
        # head-first contiguous store; matches the (n_heads, B, T, T) output layout
        attn_ref[h] = wei.astype(attn_ref.dtype)
        oh = jnp.einsum("bqk,bkd->bqd", wei.astype(jnp.bfloat16), vh,
                        preferred_element_type=jnp.float32)      # (bB, T, H)
        sa_sref[:, :, h * H:(h + 1) * H] = oh.astype(sa_sref.dtype)

    # TODO(synk): nn.Dropout(0.3) skipped — kernel implements eval-mode (identity).
    sa = jnp.dot(sa_sref[...].reshape(bB * T, E), wp_ref[...],
                 preferred_element_type=jnp.float32) + bp_ref[...]

    # ---- residual 1 (re-load x: keeps f32 activation live ranges short) ----
    x = x_ref[...].astype(jnp.float32).reshape(bB * T, E) + sa

    # ---- LayerNorm 2 + FeedForward ----
    ln2 = _layernorm(x, g2_ref[...], be2_ref[...])
    h1 = jnp.maximum(
        jnp.dot(ln2.astype(jnp.bfloat16), w1_ref[...],
                preferred_element_type=jnp.float32) + b1_ref[...], 0.0)
    # TODO(synk): nn.Dropout(0.4) skipped — kernel implements eval-mode (identity).
    ff = jnp.dot(h1.astype(jnp.bfloat16), w2_ref[...],
                 preferred_element_type=jnp.float32) + b2_ref[...]

    # ---- residual 2 ----
    out_ref[...] = (x + ff).reshape(bB, T, E).astype(out_ref.dtype)


# --------------------------------------------------------------------------
# host-side helpers
# --------------------------------------------------------------------------
def prepare_params(params):
    """One-time weight prep (QKV fuse + 1/sqrt(H) fold + bf16 casts), hoisted
    out of the per-call path."""
    n_heads, E, H = params["wq"].shape
    scale = 1.0 / math.sqrt(H)
    to_cols = lambda w: jnp.transpose(w, (1, 0, 2)).reshape(E, n_heads * H)
    wqkv = jnp.concatenate(
        [to_cols(params["wq"]) * scale, to_cols(params["wk"]),
         to_cols(params["wv"])], axis=1).astype(jnp.bfloat16)    # (E, 3E)
    return dict(
        n_heads=n_heads,
        wqkv=wqkv,
        wp=params["wp"].astype(jnp.bfloat16), bp=params["bp"],
        w1=params["w1"].astype(jnp.bfloat16), b1=params["b1"],
        w2=params["w2"].astype(jnp.bfloat16), b2=params["b2"],
        g1=params["g1"], be1=params["be1"],
        g2=params["g2"], be2=params["be2"],
    )


def _physical_vmem_bytes():
    try:
        kind = jax.devices()[0].device_kind.lower()
    except Exception:  # pragma: no cover
        kind = ""
    # v7x: 64 MiB VMEM per TensorCore; v5e / v6e: 128 MiB.
    return (64 if "v7" in kind else 128) * 1024 * 1024


def _vmem_bytes_estimate(block_b, T, E, n_heads, hidden):
    M = block_b * T
    b = 0
    b += 2 * M * E * 4                         # x block (double-buffered, f32)
    b += 2 * M * E * 4                         # out block (double-buffered, f32)
    b += 2 * n_heads * block_b * T * T * 2     # attn block (double-buffered, bf16)
    b += M * 3 * E * 2                         # qkv scratch (bf16)
    b += M * E * 2                             # sa scratch (bf16)
    b += 2 * (3 * E * E + E * E + 2 * E * hidden)  # bf16 weights (single-buffered)
    b += M * 3 * E * 4                         # live qkv f32 before scratch store
    b += M * hidden * 4                        # live FFN hidden f32
    b += 2 * block_b * T * T * 4               # live per-head scores / exp f32
    return b


def _pick_block_b(B, T, E, n_heads, hidden, budget_bytes):
    divisors = [d for d in range(1, B + 1) if B % d == 0]
    max_bb = B // 2 if B > 1 else 1            # keep >= 2 grid steps (v7x megacore)
    cands = [d for d in divisors
             if d <= max_bb and _vmem_bytes_estimate(d, T, E, n_heads, hidden) <= budget_bytes]
    return max(cands) if cands else 1


def block_forward(x, p, block_b=None):
    """x: (B, T, E) float32; p: output of prepare_params.
    Returns (out (B,T,E) f32, attn_maps (n_heads,B,T,T) bf16)."""
    B, T, E = x.shape
    n_heads = p["n_heads"]
    hidden = p["w1"].shape[1]

    phys_vmem = _physical_vmem_bytes()
    vmem_limit = int(phys_vmem * 0.75)         # ~48 MiB on v7x, ~96 MiB on v5e/v6e
    if block_b is None:
        block_b = _pick_block_b(B, T, E, n_heads, hidden, int(phys_vmem * 0.55))
    assert B % block_b == 0
    grid = (B // block_b,)

    flops = int(2 * B * T * E * 3 * E                 # fused QKV
                + 4 * B * n_heads * T * T * (E // n_heads)  # QK^T and P@V
                + 2 * B * T * E * E                   # output projection
                + 4 * B * T * E * hidden)             # two FFN matmuls
    bytes_accessed = int(
        x.size * 4 + B * T * E * 4 + n_heads * B * T * T * 2
        + (p["wqkv"].size + p["wp"].size + p["w1"].size + p["w2"].size) * 2
        + (p["bp"].size + p["b1"].size + p["b2"].size + 4 * E) * 4)
    cost = pl.CostEstimate(flops=flops, transcendentals=int(B * n_heads * T * T),
                           bytes_accessed=bytes_accessed)

    weights = (p["wqkv"], p["wp"], p["bp"], p["w1"], p["b1"], p["w2"], p["b2"],
               p["g1"], p["be1"], p["g2"], p["be2"])

    def run(single_buffer_weights):
        if single_buffer_weights:
            # grid-invariant operands: no need to double-buffer them in VMEM
            inv = lambda a: pl.BlockSpec(a.shape, lambda b: (0,) * a.ndim,
                                         pipeline_mode=pl.Buffered(buffer_count=1))
        else:
            inv = lambda a: pl.BlockSpec(a.shape, lambda b: (0,) * a.ndim)
        grid_spec = pltpu.PrefetchScalarGridSpec(
            num_scalar_prefetch=0,
            grid=grid,
            in_specs=[pl.BlockSpec((block_b, T, E), lambda b: (b, 0, 0))]   # x
                     + [inv(w) for w in weights],
            out_specs=[
                pl.BlockSpec((block_b, T, E), lambda b: (b, 0, 0)),               # out
                pl.BlockSpec((n_heads, block_b, T, T), lambda b: (0, b, 0, 0)),   # attn
            ],
            scratch_shapes=[pltpu.VMEM((block_b, T, 3 * E), jnp.bfloat16),  # qkv
                            pltpu.VMEM((block_b, T, E), jnp.bfloat16)],     # head outs
        )
        return pl.pallas_call(
            block_kernel,
            grid_spec=grid_spec,
            out_shape=(
                jax.ShapeDtypeStruct((B, T, E), jnp.float32),
                jax.ShapeDtypeStruct((n_heads, B, T, T), jnp.bfloat16),
            ),
            compiler_params=pltpu.CompilerParams(
                dimension_semantics=("parallel",),
                vmem_limit_bytes=vmem_limit),
            cost_estimate=cost,
        )(x, *weights)

    try:
        out, attn = run(True)
    except Exception:
        # pl.Buffered(1) not accepted by this jax/Mosaic version: fall back to
        # the default (double-buffered) weight specs.
        out, attn = run(False)
    # attention maps are already head-first (n_heads, B, T, T) — no host transpose.
    return out, attn


# --------------------------------------------------------------------------
# parameter init (mirrors PyTorch Linear defaults) and a pure-JAX reference
# --------------------------------------------------------------------------
def init_params(key, embed_size, n_heads):
    head_size = embed_size // n_heads
    hidden = embed_size * 4
    keys = jax.random.split(key, 9)

    def lin_w(k, fan_in, shape):
        bound = 1.0 / math.sqrt(fan_in)
        return jax.random.uniform(k, shape, jnp.float32, -bound, bound)

    return dict(
        wq=lin_w(keys[0], embed_size, (n_heads, embed_size, head_size)),
        wk=lin_w(keys[1], embed_size, (n_heads, embed_size, head_size)),
        wv=lin_w(keys[2], embed_size, (n_heads, embed_size, head_size)),
        wp=lin_w(keys[3], embed_size, (embed_size, embed_size)),
        bp=lin_w(keys[4], embed_size, (1, embed_size)),
        w1=lin_w(keys[5], embed_size, (embed_size, hidden)),
        b1=lin_w(keys[6], embed_size, (1, hidden)),
        w2=lin_w(keys[7], hidden, (hidden, embed_size)),
        b2=lin_w(keys[8], hidden, (1, embed_size)),
        g1=jnp.ones((1, embed_size), jnp.float32),
        be1=jnp.zeros((1, embed_size), jnp.float32),
        g2=jnp.ones((1, embed_size), jnp.float32),
        be2=jnp.zeros((1, embed_size), jnp.float32),
    )


def block_forward_ref(x, params):
    def ln(v, g, b):
        mu = jnp.mean(v, -1, keepdims=True)
        var = jnp.mean((v - mu) ** 2, -1, keepdims=True)
        return (v - mu) / jnp.sqrt(var + 1e-5) * g + b

    ln1x = ln(x, params["g1"], params["be1"])
    n_heads, _, H = params["wq"].shape
    outs, maps = [], []
    for h in range(n_heads):
        Q = ln1x @ params["wq"][h]
        K = ln1x @ params["wk"][h]
        V = ln1x @ params["wv"][h]
        s = jnp.einsum("btd,bsd->bts", Q, K) / math.sqrt(H)
        w = jax.nn.softmax(s, axis=-1)
        maps.append(w)
        outs.append(jnp.einsum("bts,bsd->btd", w, V))
    sa = jnp.concatenate(outs, -1) @ params["wp"] + params["bp"]
    x = x + sa
    ln2x = ln(x, params["g2"], params["be2"])
    ff = jnp.maximum(ln2x @ params["w1"] + params["b1"], 0.0) @ params["w2"] + params["b2"]
    x = x + ff
    return x, jnp.stack(maps, 0)


if __name__ == "__main__":
    B, T, E, n_heads = 2, 8, 32, 4
    key = jax.random.PRNGKey(0)
    kx, kp = jax.random.split(key)
    x = jax.random.normal(kx, (B, T, E), jnp.float32)
    params = init_params(kp, E, n_heads)
    prepped = prepare_params(params)          # one-time weight prep

    out, attn = block_forward(x, prepped)
    out = jax.block_until_ready(out)
    attn = jax.block_until_ready(attn)

    ref_out, ref_attn = block_forward_ref(x, params)
    assert out.shape == (B, T, E) and attn.shape == (n_heads, B, T, T)
    # bf16 MXU inputs / bf16 attn storage + EUP approximate reciprocal:
    # softmax rows sum to 1 only approximately, hence the loose tolerances.
    assert jnp.allclose(out, ref_out, atol=5e-2, rtol=5e-2)
    assert jnp.allclose(attn.astype(jnp.float32), ref_attn, atol=2e-2, rtol=5e-2)
    print("KERNEL_OK")
</pallas_src>

<mosaic_0001>
module attributes {stable_mosaic.version = 11 : i64} {
  func.func @block_kernel(%arg0: i32, %arg1: memref<1x8x32xf32, #tpu.memory_space<vmem>>, %arg2: memref<32x96xbf16, #tpu.memory_space<vmem>>, %arg3: memref<32x32xbf16, #tpu.memory_space<vmem>>, %arg4: memref<1x32xf32, #tpu.memory_space<vmem>>, %arg5: memref<32x128xbf16, #tpu.memory_space<vmem>>, %arg6: memref<1x128xf32, #tpu.memory_space<vmem>>, %arg7: memref<128x32xbf16, #tpu.memory_space<vmem>>, %arg8: memref<1x32xf32, #tpu.memory_space<vmem>>, %arg9: memref<1x32xf32, #tpu.memory_space<vmem>>, %arg10: memref<1x32xf32, #tpu.memory_space<vmem>>, %arg11: memref<1x32xf32, #tpu.memory_space<vmem>>, %arg12: memref<1x32xf32, #tpu.memory_space<vmem>>, %arg13: memref<1x8x32xf32, #tpu.memory_space<vmem>>, %arg14: memref<4x1x8x8xbf16, #tpu.memory_space<vmem>>, %arg15: memref<1x8x96xbf16, #tpu.memory_space<vmem>>, %arg16: memref<1x8x32xbf16, #tpu.memory_space<vmem>>) attributes {dimension_semantics = [#tpu.dimension_semantics<parallel>], iteration_bounds = array<i64: 2>, scalar_prefetch = 0 : i64, scratch_operands = 2 : i64, tpu.core_type = #tpu.core_type<tc>, window_params = [{transform_indices = @transform_0, window_bounds = array<i64: 1, 8, 32>}, {pipeline_mode = #tpu.pipeline_mode<synchronous>, transform_indices = @transform_1, window_bounds = array<i64: 32, 96>}, {pipeline_mode = #tpu.pipeline_mode<synchronous>, transform_indices = @transform_2, window_bounds = array<i64: 32, 32>}, {pipeline_mode = #tpu.pipeline_mode<synchronous>, transform_indices = @transform_3, window_bounds = array<i64: 1, 32>}, {pipeline_mode = #tpu.pipeline_mode<synchronous>, transform_indices = @transform_4, window_bounds = array<i64: 32, 128>}, {pipeline_mode = #tpu.pipeline_mode<synchronous>, transform_indices = @transform_5, window_bounds = array<i64: 1, 128>}, {pipeline_mode = #tpu.pipeline_mode<synchronous>, transform_indices = @transform_6, window_bounds = array<i64: 128, 32>}, {pipeline_mode = #tpu.pipeline_mode<synchronous>, transform_indices = @transform_7, window_bounds = array<i64: 1, 32>}, {pipeline_mode = #tpu.pipeline_mode<synchronous>, transform_indices = @transform_8, window_bounds = array<i64: 1, 32>}, {pipeline_mode = #tpu.pipeline_mode<synchronous>, transform_indices = @transform_9, window_bounds = array<i64: 1, 32>}, {pipeline_mode = #tpu.pipeline_mode<synchronous>, transform_indices = @transform_10, window_bounds = array<i64: 1, 32>}, {pipeline_mode = #tpu.pipeline_mode<synchronous>, transform_indices = @transform_11, window_bounds = array<i64: 1, 32>}, {transform_indices = @transform_12, window_bounds = array<i64: 1, 8, 32>}, {transform_indices = @transform_13, window_bounds = array<i64: 4, 1, 8, 8>}]} {
    %c0 = arith.constant 0 : index
    %c0_0 = arith.constant 0 : index
    %c0_1 = arith.constant 0 : index
    %0 = vector.load %arg1[%c0, %c0_0, %c0_1] : memref<1x8x32xf32, #tpu.memory_space<vmem>>, vector<1x8x32xf32>
    %1 = vector.shape_cast %0 : vector<1x8x32xf32> to vector<8x32xf32>
    %c0_2 = arith.constant 0 : index
    %c0_3 = arith.constant 0 : index
    %2 = vector.load %arg9[%c0_2, %c0_3] : memref<1x32xf32, #tpu.memory_space<vmem>>, vector<1x32xf32>
    %c0_4 = arith.constant 0 : index
    %c0_5 = arith.constant 0 : index
    %3 = vector.load %arg10[%c0_4, %c0_5] : memref<1x32xf32, #tpu.memory_space<vmem>>, vector<1x32xf32>
    %cst = arith.constant dense<0.000000e+00> : vector<8xf32>
    %4 = vector.multi_reduction <add>, %1, %cst [1] : vector<8x32xf32> to vector<8xf32>
    %5 = vector.shape_cast %4 : vector<8xf32> to vector<8x1xf32>
    %cst_6 = arith.constant 3.200000e+01 : f32
    %6 = vector.broadcast %cst_6 : f32 to vector<8x1xf32>
    %7 = arith.divf %5, %6 : vector<8x1xf32>
    %8 = vector.broadcast %7 : vector<8x1xf32> to vector<8x32xf32>
    %9 = arith.subf %1, %8 : vector<8x32xf32>
    %10 = arith.mulf %9, %9 : vector<8x32xf32>
    %cst_7 = arith.constant dense<0.000000e+00> : vector<8xf32>
    %11 = vector.multi_reduction <add>, %10, %cst_7 [1] : vector<8x32xf32> to vector<8xf32>
    %12 = vector.shape_cast %11 : vector<8xf32> to vector<8x1xf32>
    %cst_8 = arith.constant 3.200000e+01 : f32
    %13 = vector.broadcast %cst_8 : f32 to vector<8x1xf32>
    %14 = arith.divf %12, %13 : vector<8x1xf32>
    %15 = vector.broadcast %7 : vector<8x1xf32> to vector<8x32xf32>
    %16 = arith.subf %1, %15 : vector<8x32xf32>
    %cst_9 = arith.constant 9.99999974E-6 : f32
    %17 = vector.broadcast %cst_9 : f32 to vector<8x1xf32>
    %18 = arith.addf %14, %17 : vector<8x1xf32>
    %19 = math.rsqrt %18 : vector<8x1xf32>
    %20 = vector.broadcast %19 : vector<8x1xf32> to vector<8x32xf32>
    %21 = arith.mulf %16, %20 : vector<8x32xf32>
    %22 = vector.broadcast %2 : vector<1x32xf32> to vector<8x32xf32>
    %23 = arith.mulf %21, %22 : vector<8x32xf32>
    %24 = vector.broadcast %3 : vector<1x32xf32> to vector<8x32xf32>
    %25 = arith.addf %23, %24 : vector<8x32xf32>
    %26 = arith.truncf %25 : vector<8x32xf32> to vector<8x32xbf16>
    %c0_10 = arith.constant 0 : index
    %c0_11 = arith.constant 0 : index
    %27 = vector.load %arg2[%c0_10, %c0_11] : memref<32x96xbf16, #tpu.memory_space<vmem>>, vector<32x96xbf16>
    %cst_12 = arith.constant dense<0.000000e+00> : vector<8x96xf32>
    %28 = tpu.matmul %26, %27, %cst_12 {dimension_numbers = #tpu.dot_dimension_numbers<[1], [0], [0], [1], [0, 0, 1, 1], [], []>} : vector<8x32xbf16>, vector<32x96xbf16>, vector<8x96xf32> -> vector<8x96xf32>
    %29 = vector.shape_cast %28 : vector<8x96xf32> to vector<1x8x96xf32>
    %30 = arith.truncf %29 : vector<1x8x96xf32> to vector<1x8x96xbf16>
    %c0_13 = arith.constant 0 : index
    %c0_14 = arith.constant 0 : index
    %c0_15 = arith.constant 0 : index
    %31 = vector.load %arg15[%c0_13, %c0_14, %c0_15] : memref<1x8x96xbf16, #tpu.memory_space<vmem>>, vector<1x8x96xbf16>
    tpu.vector_store %arg15[%c0_13, %c0_14, %c0_15], %30 {strides = array<i32>} : memref<1x8x96xbf16, #tpu.memory_space<vmem>>, vector<1x8x96xbf16>,
    %c0_16 = arith.constant 0 : index
    %c0_17 = arith.constant 0 : index
    %c0_18 = arith.constant 0 : index
    %32 = vector.load %arg15[%c0_16, %c0_17, %c0_18] : memref<1x8x96xbf16, #tpu.memory_space<vmem>>, vector<1x8x8xbf16>
    %c0_19 = arith.constant 0 : index
    %c0_20 = arith.constant 0 : index
    %c32 = arith.constant 32 : index
    %33 = vector.load %arg15[%c0_19, %c0_20, %c32] : memref<1x8x96xbf16, #tpu.memory_space<vmem>>, vector<1x8x8xbf16>
    %c0_21 = arith.constant 0 : index
    %c0_22 = arith.constant 0 : index
    %c64 = arith.constant 64 : index
    %34 = vector.load %arg15[%c0_21, %c0_22, %c64] : memref<1x8x96xbf16, #tpu.memory_space<vmem>>, vector<1x8x8xbf16>
    "tpu.trace_start"() <{level = 10 : i32, message = "bqd,bkd->bqk"}> : () -> ()
    %cst_23 = arith.constant dense<0.000000e+00> : vector<1x8x8xf32>
    %35 = tpu.matmul %32, %33, %cst_23 {dimension_numbers = #tpu.dot_dimension_numbers<[2], [2], [1], [1], [0, 0, 0, 1, 1, 1], [0], [0]>} : vector<1x8x8xbf16>, vector<1x8x8xbf16>, vector<1x8x8xf32> -> vector<1x8x8xf32>
    "tpu.trace_stop"() : () -> ()
    %cst_24 = arith.constant dense<0xFF800000> : vector<1x8xf32>
    %36 = vector.multi_reduction <maximumf>, %35, %cst_24 [2] : vector<1x8x8xf32> to vector<1x8xf32>
    %37 = vector.shape_cast %36 : vector<1x8xf32> to vector<1x8x1xf32>
    %38 = vector.broadcast %37 : vector<1x8x1xf32> to vector<1x8x8xf32>
    %39 = arith.subf %35, %38 : vector<1x8x8xf32>
    %40 = math.exp %39 : vector<1x8x8xf32>
    %cst_25 = arith.constant dense<0.000000e+00> : vector<1x8xf32>
    %41 = vector.multi_reduction <add>, %40, %cst_25 [2] : vector<1x8x8xf32> to vector<1x8xf32>
    %42 = vector.shape_cast %41 : vector<1x8xf32> to vector<1x8x1xf32>
    %43 = tpu.reciprocal %42 {approx = true} : vector<1x8x1xf32> -> vector<1x8x1xf32>
    %44 = vector.broadcast %43 : vector<1x8x1xf32> to vector<1x8x8xf32>
    %45 = arith.mulf %40, %44 : vector<1x8x8xf32>
    %46 = arith.truncf %45 : vector<1x8x8xf32> to vector<1x8x8xbf16>
    %c0_26 = arith.constant 0 : index
    %c0_27 = arith.constant 0 : index
    %c0_28 = arith.constant 0 : index
    %c0_29 = arith.constant 0 : index
    %47 = vector.load %arg14[%c0_26, %c0_27, %c0_28, %c0_29] : memref<4x1x8x8xbf16, #tpu.memory_space<vmem>>, vector<1x1x8x8xbf16>
    %48 = vector.shape_cast %47 : vector<1x1x8x8xbf16> to vector<1x8x8xbf16>
    %49 = vector.shape_cast %46 : vector<1x8x8xbf16> to vector<1x1x8x8xbf16>
    tpu.vector_store %arg14[%c0_26, %c0_27, %c0_28, %c0_29], %49 {strides = array<i32>} : memref<4x1x8x8xbf16, #tpu.memory_space<vmem>>, vector<1x1x8x8xbf16>,
    %50 = arith.truncf %45 : vector<1x8x8xf32> to vector<1x8x8xbf16>
    "tpu.trace_start"() <{level = 10 : i32, message = "bqk,bkd->bqd"}> : () -> ()
    %cst_30 = arith.constant dense<0.000000e+00> : vector<1x8x8xf32>
    %51 = tpu.matmul %50, %34, %cst_30 {dimension_numbers = #tpu.dot_dimension_numbers<[2], [1], [1], [2], [0, 0, 0, 1, 1, 2], [0], [0]>} : vector<1x8x8xbf16>, vector<1x8x8xbf16>, vector<1x8x8xf32> -> vector<1x8x8xf32>
    "tpu.trace_stop"() : () -> ()
    %52 = arith.truncf %51 : vector<1x8x8xf32> to vector<1x8x8xbf16>
    %c0_31 = arith.constant 0 : index
    %c0_32 = arith.constant 0 : index
    %c0_33 = arith.constant 0 : index
    %53 = vector.load %arg16[%c0_31, %c0_32, %c0_33] : memref<1x8x32xbf16, #tpu.memory_space<vmem>>, vector<1x8x8xbf16>
    tpu.vector_store %arg16[%c0_31, %c0_32, %c0_33], %52 {strides = array<i32>} : memref<1x8x32xbf16, #tpu.memory_space<vmem>>, vector<1x8x8xbf16>,
    %c0_34 = arith.constant 0 : index
    %c0_35 = arith.constant 0 : index
    %c8 = arith.constant 8 : index
    %54 = vector.load %arg15[%c0_34, %c0_35, %c8] : memref<1x8x96xbf16, #tpu.memory_space<vmem>>, vector<1x8x8xbf16>
    %c0_36 = arith.constant 0 : index
    %c0_37 = arith.constant 0 : index
    %c40 = arith.constant 40 : index
    %55 = vector.load %arg15[%c0_36, %c0_37, %c40] : memref<1x8x96xbf16, #tpu.memory_space<vmem>>, vector<1x8x8xbf16>
    %c0_38 = arith.constant 0 : index
    %c0_39 = arith.constant 0 : index
    %c72 = arith.constant 72 : index
    %56 = vector.load %arg15[%c0_38, %c0_39, %c72] : memref<1x8x96xbf16, #tpu.memory_space<vmem>>, vector<1x8x8xbf16>
    "tpu.trace_start"() <{level = 10 : i32, message = "bqd,bkd->bqk"}> : () -> ()
    %cst_40 = arith.constant dense<0.000000e+00> : vector<1x8x8xf32>
    %57 = tpu.matmul %54, %55, %cst_40 {dimension_numbers = #tpu.dot_dimension_numbers<[2], [2], [1], [1], [0, 0, 0, 1, 1, 1], [0], [0]>} : vector<1x8x8xbf16>, vector<1x8x8xbf16>, vector<1x8x8xf32> -> vector<1x8x8xf32>
    "tpu.trace_stop"() : () -> ()
    %cst_41 = arith.constant dense<0xFF800000> : vector<1x8xf32>
    %58 = vector.multi_reduction <maximumf>, %57, %cst_41 [2] : vector<1x8x8xf32> to vector<1x8xf32>
    %59 = vector.shape_cast %58 : vector<1x8xf32> to vector<1x8x1xf32>
    %60 = vector.broadcast %59 : vector<1x8x1xf32> to vector<1x8x8xf32>
    %61 = arith.subf %57, %60 : vector<1x8x8xf32>
    %62 = math.exp %61 : vector<1x8x8xf32>
    %cst_42 = arith.constant dense<0.000000e+00> : vector<1x8xf32>
    %63 = vector.multi_reduction <add>, %62, %cst_42 [2] : vector<1x8x8xf32> to vector<1x8xf32>
    %64 = vector.shape_cast %63 : vector<1x8xf32> to vector<1x8x1xf32>
    %65 = tpu.reciprocal %64 {approx = true} : vector<1x8x1xf32> -> vector<1x8x1xf32>
    %66 = vector.broadcast %65 : vector<1x8x1xf32> to vector<1x8x8xf32>
    %67 = arith.mulf %62, %66 : vector<1x8x8xf32>
    %68 = arith.truncf %67 : vector<1x8x8xf32> to vector<1x8x8xbf16>
    %c1 = arith.constant 1 : index
    %c0_43 = arith.constant 0 : index
    %c0_44 = arith.constant 0 : index
    %c0_45 = arith.constant 0 : index
    %69 = vector.load %arg14[%c1, %c0_43, %c0_44, %c0_45] : memref<4x1x8x8xbf16, #tpu.memory_space<vmem>>, vector<1x1x8x8xbf16>
    %70 = vector.shape_cast %69 : vector<1x1x8x8xbf16> to vector<1x8x8xbf16>
    %71 = vector.shape_cast %68 : vector<1x8x8xbf16> to vector<1x1x8x8xbf16>
    tpu.vector_store %arg14[%c1, %c0_43, %c0_44, %c0_45], %71 {strides = array<i32>} : memref<4x1x8x8xbf16, #tpu.memory_space<vmem>>, vector<1x1x8x8xbf16>,
    %72 = arith.truncf %67 : vector<1x8x8xf32> to vector<1x8x8xbf16>
    "tpu.trace_start"() <{level = 10 : i32, message = "bqk,bkd->bqd"}> : () -> ()
    %cst_46 = arith.constant dense<0.000000e+00> : vector<1x8x8xf32>
    %73 = tpu.matmul %72, %56, %cst_46 {dimension_numbers = #tpu.dot_dimension_numbers<[2], [1], [1], [2], [0, 0, 0, 1, 1, 2], [0], [0]>} : vector<1x8x8xbf16>, vector<1x8x8xbf16>, vector<1x8x8xf32> -> vector<1x8x8xf32>
    "tpu.trace_stop"() : () -> ()
    %74 = arith.truncf %73 : vector<1x8x8xf32> to vector<1x8x8xbf16>
    %c0_47 = arith.constant 0 : index
    %c0_48 = arith.constant 0 : index
    %c8_49 = arith.constant 8 : index
    %75 = vector.load %arg16[%c0_47, %c0_48, %c8_49] : memref<1x8x32xbf16, #tpu.memory_space<vmem>>, vector<1x8x8xbf16>
    tpu.vector_store %arg16[%c0_47, %c0_48, %c8_49], %74 {strides = array<i32>} : memref<1x8x32xbf16, #tpu.memory_space<vmem>>, vector<1x8x8xbf16>,
    %c0_50 = arith.constant 0 : index
    %c0_51 = arith.constant 0 : index
    %c16 = arith.constant 16 : index
    %76 = vector.load %arg15[%c0_50, %c0_51, %c16] : memref<1x8x96xbf16, #tpu.memory_space<vmem>>, vector<1x8x8xbf16>
    %c0_52 = arith.constant 0 : index
    %c0_53 = arith.constant 0 : index
    %c48 = arith.constant 48 : index
    %77 = vector.load %arg15[%c0_52, %c0_53, %c48] : memref<1x8x96xbf16, #tpu.memory_space<vmem>>, vector<1x8x8xbf16>
    %c0_54 = arith.constant 0 : index
    %c0_55 = arith.constant 0 : index
    %c80 = arith.constant 80 : index
    %78 = vector.load %arg15[%c0_54, %c0_55, %c80] : memref<1x8x96xbf16, #tpu.memory_space<vmem>>, vector<1x8x8xbf16>
    "tpu.trace_start"() <{level = 10 : i32, message = "bqd,bkd->bqk"}> : () -> ()
    %cst_56 = arith.constant dense<0.000000e+00> : vector<1x8x8xf32>
    %79 = tpu.matmul %76, %77, %cst_56 {dimension_numbers = #tpu.dot_dimension_numbers<[2], [2], [1], [1], [0, 0, 0, 1, 1, 1], [0], [0]>} : vector<1x8x8xbf16>, vector<1x8x8xbf16>, vector<1x8x8xf32> -> vector<1x8x8xf32>
    "tpu.trace_stop"() : () -> ()
    %cst_57 = arith.constant dense<0xFF800000> : vector<1x8xf32>
    %80 = vector.multi_reduction <maximumf>, %79, %cst_57 [2] : vector<1x8x8xf32> to vector<1x8xf32>
    %81 = vector.shape_cast %80 : vector<1x8xf32> to vector<1x8x1xf32>
    %82 = vector.broadcast %81 : vector<1x8x1xf32> to vector<1x8x8xf32>
    %83 = arith.subf %79, %82 : vector<1x8x8xf32>
    %84 = math.exp %83 : vector<1x8x8xf32>
    %cst_58 = arith.constant dense<0.000000e+00> : vector<1x8xf32>
    %85 = vector.multi_reduction <add>, %84, %cst_58 [2] : vector<1x8x8xf32> to vector<1x8xf32>
    %86 = vector.shape_cast %85 : vector<1x8xf32> to vector<1x8x1xf32>
    %87 = tpu.reciprocal %86 {approx = true} : vector<1x8x1xf32> -> vector<1x8x1xf32>
    %88 = vector.broadcast %87 : vector<1x8x1xf32> to vector<1x8x8xf32>
    %89 = arith.mulf %84, %88 : vector<1x8x8xf32>
    %90 = arith.truncf %89 : vector<1x8x8xf32> to vector<1x8x8xbf16>
    %c2 = arith.constant 2 : index
    %c0_59 = arith.constant 0 : index
    %c0_60 = arith.constant 0 : index
    %c0_61 = arith.constant 0 : index
    %91 = vector.load %arg14[%c2, %c0_59, %c0_60, %c0_61] : memref<4x1x8x8xbf16, #tpu.memory_space<vmem>>, vector<1x1x8x8xbf16>
    %92 = vector.shape_cast %91 : vector<1x1x8x8xbf16> to vector<1x8x8xbf16>
    %93 = vector.shape_cast %90 : vector<1x8x8xbf16> to vector<1x1x8x8xbf16>
    tpu.vector_store %arg14[%c2, %c0_59, %c0_60, %c0_61], %93 {strides = array<i32>} : memref<4x1x8x8xbf16, #tpu.memory_space<vmem>>, vector<1x1x8x8xbf16>,
    %94 = arith.truncf %89 : vector<1x8x8xf32> to vector<1x8x8xbf16>
    "tpu.trace_start"() <{level = 10 : i32, message = "bqk,bkd->bqd"}> : () -> ()
    %cst_62 = arith.constant dense<0.000000e+00> : vector<1x8x8xf32>
    %95 = tpu.matmul %94, %78, %cst_62 {dimension_numbers = #tpu.dot_dimension_numbers<[2], [1], [1], [2], [0, 0, 0, 1, 1, 2], [0], [0]>} : vector<1x8x8xbf16>, vector<1x8x8xbf16>, vector<1x8x8xf32> -> vector<1x8x8xf32>
    "tpu.trace_stop"() : () -> ()
    %96 = arith.truncf %95 : vector<1x8x8xf32> to vector<1x8x8xbf16>
    %c0_63 = arith.constant 0 : index
    %c0_64 = arith.constant 0 : index
    %c16_65 = arith.constant 16 : index
    %97 = vector.load %arg16[%c0_63, %c0_64, %c16_65] : memref<1x8x32xbf16, #tpu.memory_space<vmem>>, vector<1x8x8xbf16>
    tpu.vector_store %arg16[%c0_63, %c0_64, %c16_65], %96 {strides = array<i32>} : memref<1x8x32xbf16, #tpu.memory_space<vmem>>, vector<1x8x8xbf16>,
    %c0_66 = arith.constant 0 : index
    %c0_67 = arith.constant 0 : index
    %c24 = arith.constant 24 : index
    %98 = vector.load %arg15[%c0_66, %c0_67, %c24] : memref<1x8x96xbf16, #tpu.memory_space<vmem>>, vector<1x8x8xbf16>
    %c0_68 = arith.constant 0 : index
    %c0_69 = arith.constant 0 : index
    %c56 = arith.constant 56 : index
    %99 = vector.load %arg15[%c0_68, %c0_69, %c56] : memref<1x8x96xbf16, #tpu.memory_space<vmem>>, vector<1x8x8xbf16>
    %c0_70 = arith.constant 0 : index
    %c0_71 = arith.constant 0 : index
    %c88 = arith.constant 88 : index
    %100 = vector.load %arg15[%c0_70, %c0_71, %c88] : memref<1x8x96xbf16, #tpu.memory_space<vmem>>, vector<1x8x8xbf16>
    "tpu.trace_start"() <{level = 10 : i32, message = "bqd,bkd->bqk"}> : () -> ()
    %cst_72 = arith.constant dense<0.000000e+00> : vector<1x8x8xf32>
    %101 = tpu.matmul %98, %99, %cst_72 {dimension_numbers = #tpu.dot_dimension_numbers<[2], [2], [1], [1], [0, 0, 0, 1, 1, 1], [0], [0]>} : vector<1x8x8xbf16>, vector<1x8x8xbf16>, vector<1x8x8xf32> -> vector<1x8x8xf32>
    "tpu.trace_stop"() : () -> ()
    %cst_73 = arith.constant dense<0xFF800000> : vector<1x8xf32>
    %102 = vector.multi_reduction <maximumf>, %101, %cst_73 [2] : vector<1x8x8xf32> to vector<1x8xf32>
    %103 = vector.shape_cast %102 : vector<1x8xf32> to vector<1x8x1xf32>
    %104 = vector.broadcast %103 : vector<1x8x1xf32> to vector<1x8x8xf32>
    %105 = arith.subf %101, %104 : vector<1x8x8xf32>
    %106 = math.exp %105 : vector<1x8x8xf32>
    %cst_74 = arith.constant dense<0.000000e+00> : vector<1x8xf32>
    %107 = vector.multi_reduction <add>, %106, %cst_74 [2] : vector<1x8x8xf32> to vector<1x8xf32>
    %108 = vector.shape_cast %107 : vector<1x8xf32> to vector<1x8x1xf32>
    %109 = tpu.reciprocal %108 {approx = true} : vector<1x8x1xf32> -> vector<1x8x1xf32>
    %110 = vector.broadcast %109 : vector<1x8x1xf32> to vector<1x8x8xf32>
    %111 = arith.mulf %106, %110 : vector<1x8x8xf32>
    %112 = arith.truncf %111 : vector<1x8x8xf32> to vector<1x8x8xbf16>
    %c3 = arith.constant 3 : index
    %c0_75 = arith.constant 0 : index
    %c0_76 = arith.constant 0 : index
    %c0_77 = arith.constant 0 : index
    %113 = vector.load %arg14[%c3, %c0_75, %c0_76, %c0_77] : memref<4x1x8x8xbf16, #tpu.memory_space<vmem>>, vector<1x1x8x8xbf16>
    %114 = vector.shape_cast %113 : vector<1x1x8x8xbf16> to vector<1x8x8xbf16>
    %115 = vector.shape_cast %112 : vector<1x8x8xbf16> to vector<1x1x8x8xbf16>
    tpu.vector_store %arg14[%c3, %c0_75, %c0_76, %c0_77], %115 {strides = array<i32>} : memref<4x1x8x8xbf16, #tpu.memory_space<vmem>>, vector<1x1x8x8xbf16>,
    %116 = arith.truncf %111 : vector<1x8x8xf32> to vector<1x8x8xbf16>
    "tpu.trace_start"() <{level = 10 : i32, message = "bqk,bkd->bqd"}> : () -> ()
    %cst_78 = arith.constant dense<0.000000e+00> : vector<1x8x8xf32>
    %117 = tpu.matmul %116, %100, %cst_78 {dimension_numbers = #tpu.dot_dimension_numbers<[2], [1], [1], [2], [0, 0, 0, 1, 1, 2], [0], [0]>} : vector<1x8x8xbf16>, vector<1x8x8xbf16>, vector<1x8x8xf32> -> vector<1x8x8xf32>
    "tpu.trace_stop"() : () -> ()
    %118 = arith.truncf %117 : vector<1x8x8xf32> to vector<1x8x8xbf16>
    %c0_79 = arith.constant 0 : index
    %c0_80 = arith.constant 0 : index
    %c24_81 = arith.constant 24 : index
    %119 = vector.load %arg16[%c0_79, %c0_80, %c24_81] : memref<1x8x32xbf16, #tpu.memory_space<vmem>>, vector<1x8x8xbf16>
    tpu.vector_store %arg16[%c0_79, %c0_80, %c24_81], %118 {strides = array<i32>} : memref<1x8x32xbf16, #tpu.memory_space<vmem>>, vector<1x8x8xbf16>,
    %c0_82 = arith.constant 0 : index
    %c0_83 = arith.constant 0 : index
    %c0_84 = arith.constant 0 : index
    %120 = vector.load %arg16[%c0_82, %c0_83, %c0_84] : memref<1x8x32xbf16, #tpu.memory_space<vmem>>, vector<1x8x32xbf16>
    %121 = vector.shape_cast %120 : vector<1x8x32xbf16> to vector<8x32xbf16>
    %c0_85 = arith.constant 0 : index
    %c0_86 = arith.constant 0 : index
    %122 = vector.load %arg3[%c0_85, %c0_86] : memref<32x32xbf16, #tpu.memory_space<vmem>>, vector<32x32xbf16>
    %cst_87 = arith.constant dense<0.000000e+00> : vector<8x32xf32>
    %123 = tpu.matmul %121, %122, %cst_87 {dimension_numbers = #tpu.dot_dimension_numbers<[1], [0], [0], [1], [0, 0, 1, 1], [], []>} : vector<8x32xbf16>, vector<32x32xbf16>, vector<8x32xf32> -> vector<8x32xf32>
    %c0_88 = arith.constant 0 : index
    %c0_89 = arith.constant 0 : index
    %124 = vector.load %arg4[%c0_88, %c0_89] : memref<1x32xf32, #tpu.memory_space<vmem>>, vector<1x32xf32>
    %125 = vector.broadcast %124 : vector<1x32xf32> to vector<8x32xf32>
    %126 = arith.addf %123, %125 : vector<8x32xf32>
    %c0_90 = arith.constant 0 : index
    %c0_91 = arith.constant 0 : index
    %c0_92 = arith.constant 0 : index
    %127 = vector.load %arg1[%c0_90, %c0_91, %c0_92] : memref<1x8x32xf32, #tpu.memory_space<vmem>>, vector<1x8x32xf32>
    %128 = vector.shape_cast %127 : vector<1x8x32xf32> to vector<8x32xf32>
    %129 = arith.addf %128, %126 : vector<8x32xf32>
    %c0_93 = arith.constant 0 : index
    %c0_94 = arith.constant 0 : index
    %130 = vector.load %arg11[%c0_93, %c0_94] : memref<1x32xf32, #tpu.memory_space<vmem>>, vector<1x32xf32>
    %c0_95 = arith.constant 0 : index
    %c0_96 = arith.constant 0 : index
    %131 = vector.load %arg12[%c0_95, %c0_96] : memref<1x32xf32, #tpu.memory_space<vmem>>, vector<1x32xf32>
    %cst_97 = arith.constant dense<0.000000e+00> : vector<8xf32>
    %132 = vector.multi_reduction <add>, %129, %cst_97 [1] : vector<8x32xf32> to vector<8xf32>
    %133 = vector.shape_cast %132 : vector<8xf32> to vector<8x1xf32>
    %cst_98 = arith.constant 3.200000e+01 : f32
    %134 = vector.broadcast %cst_98 : f32 to vector<8x1xf32>
    %135 = arith.divf %133, %134 : vector<8x1xf32>
    %136 = vector.broadcast %135 : vector<8x1xf32> to vector<8x32xf32>
    %137 = arith.subf %129, %136 : vector<8x32xf32>
    %138 = arith.mulf %137, %137 : vector<8x32xf32>
    %cst_99 = arith.constant dense<0.000000e+00> : vector<8xf32>
    %139 = vector.multi_reduction <add>, %138, %cst_99 [1] : vector<8x32xf32> to vector<8xf32>
    %140 = vector.shape_cast %139 : vector<8xf32> to vector<8x1xf32>
    %cst_100 = arith.constant 3.200000e+01 : f32
    %141 = vector.broadcast %cst_100 : f32 to vector<8x1xf32>
    %142 = arith.divf %140, %141 : vector<8x1xf32>
    %143 = vector.broadcast %135 : vector<8x1xf32> to vector<8x32xf32>
    %144 = arith.subf %129, %143 : vector<8x32xf32>
    %cst_101 = arith.constant 9.99999974E-6 : f32
    %145 = vector.broadcast %cst_101 : f32 to vector<8x1xf32>
    %146 = arith.addf %142, %145 : vector<8x1xf32>
    %147 = math.rsqrt %146 : vector<8x1xf32>
    %148 = vector.broadcast %147 : vector<8x1xf32> to vector<8x32xf32>
    %149 = arith.mulf %144, %148 : vector<8x32xf32>
    %150 = vector.broadcast %130 : vector<1x32xf32> to vector<8x32xf32>
    %151 = arith.mulf %149, %150 : vector<8x32xf32>
    %152 = vector.broadcast %131 : vector<1x32xf32> to vector<8x32xf32>
    %153 = arith.addf %151, %152 : vector<8x32xf32>
    %154 = arith.truncf %153 : vector<8x32xf32> to vector<8x32xbf16>
    %c0_102 = arith.constant 0 : index
    %c0_103 = arith.constant 0 : index
    %155 = vector.load %arg5[%c0_102, %c0_103] : memref<32x128xbf16, #tpu.memory_space<vmem>>, vector<32x128xbf16>
    %cst_104 = arith.constant dense<0.000000e+00> : vector<8x128xf32>
    %156 = tpu.matmul %154, %155, %cst_104 {dimension_numbers = #tpu.dot_dimension_numbers<[1], [0], [0], [1], [0, 0, 1, 1], [], []>} : vector<8x32xbf16>, vector<32x128xbf16>, vector<8x128xf32> -> vector<8x128xf32>
    %c0_105 = arith.constant 0 : index
    %c0_106 = arith.constant 0 : index
    %157 = vector.load %arg6[%c0_105, %c0_106] : memref<1x128xf32, #tpu.memory_space<vmem>>, vector<1x128xf32>
    %158 = vector.broadcast %157 : vector<1x128xf32> to vector<8x128xf32>
    %159 = arith.addf %156, %158 : vector<8x128xf32>
    %cst_107 = arith.constant 0.000000e+00 : f32
    %160 = vector.broadcast %cst_107 : f32 to vector<8x128xf32>
    %161 = arith.maximumf %159, %160 : vector<8x128xf32>
    %162 = arith.truncf %161 : vector<8x128xf32> to vector<8x128xbf16>
    %c0_108 = arith.constant 0 : index
    %c0_109 = arith.constant 0 : index
    %163 = vector.load %arg7[%c0_108, %c0_109] : memref<128x32xbf16, #tpu.memory_space<vmem>>, vector<128x32xbf16>
    %cst_110 = arith.constant dense<0.000000e+00> : vector<8x32xf32>
    %164 = tpu.matmul %162, %163, %cst_110 {dimension_numbers = #tpu.dot_dimension_numbers<[1], [0], [0], [1], [0, 0, 1, 1], [], []>} : vector<8x128xbf16>, vector<128x32xbf16>, vector<8x32xf32> -> vector<8x32xf32>
    %c0_111 = arith.constant 0 : index
    %c0_112 = arith.constant 0 : index
    %165 = vector.load %arg8[%c0_111, %c0_112] : memref<1x32xf32, #tpu.memory_space<vmem>>, vector<1x32xf32>
    %166 = vector.broadcast %165 : vector<1x32xf32> to vector<8x32xf32>
    %167 = arith.addf %164, %166 : vector<8x32xf32>
    %168 = arith.addf %129, %167 : vector<8x32xf32>
    %169 = vector.shape_cast %168 : vector<8x32xf32> to vector<1x8x32xf32>
    %c0_113 = arith.constant 0 : index
    %c0_114 = arith.constant 0 : index
    %c0_115 = arith.constant 0 : index
    %170 = vector.load %arg13[%c0_113, %c0_114, %c0_115] : memref<1x8x32xf32, #tpu.memory_space<vmem>>, vector<1x8x32xf32>
    tpu.vector_store %arg13[%c0_113, %c0_114, %c0_115], %169 {strides = array<i32>} : memref<1x8x32xf32, #tpu.memory_space<vmem>>, vector<1x8x32xf32>,
    return
  }
  func.func @transform_0(%arg0: i32) -> (i32, i32, i32) {
    %c0_i32 = arith.constant 0 : i32
    %c0_i32_0 = arith.constant 0 : i32
    %c0_i32_1 = arith.constant 0 : i32
    return %arg0, %c0_i32, %c0_i32_0 : i32, i32, i32
  }
  func.func @transform_1(%arg0: i32) -> (i32, i32) {
    %c0_i32 = arith.constant 0 : i32
    %c0_i32_0 = arith.constant 0 : i32
    %c0_i32_1 = arith.constant 0 : i32
    return %c0_i32, %c0_i32_0 : i32, i32
  }
  func.func @transform_2(%arg0: i32) -> (i32, i32) {
    %c0_i32 = arith.constant 0 : i32
    %c0_i32_0 = arith.constant 0 : i32
    %c0_i32_1 = arith.constant 0 : i32
    return %c0_i32, %c0_i32_0 : i32, i32
  }
  func.func @transform_3(%arg0: i32) -> (i32, i32) {
    %c0_i32 = arith.constant 0 : i32
    %c0_i32_0 = arith.constant 0 : i32
    %c0_i32_1 = arith.constant 0 : i32
    return %c0_i32, %c0_i32_0 : i32, i32
  }
  func.func @transform_4(%arg0: i32) -> (i32, i32) {
    %c0_i32 = arith.constant 0 : i32
    %c0_i32_0 = arith.constant 0 : i32
    %c0_i32_1 = arith.constant 0 : i32
    return %c0_i32, %c0_i32_0 : i32, i32
  }
  func.func @transform_5(%arg0: i32) -> (i32, i32) {
    %c0_i32 = arith.constant 0 : i32
    %c0_i32_0 = arith.constant 0 : i32
    %c0_i32_1 = arith.constant 0 : i32
    return %c0_i32, %c0_i32_0 : i32, i32
  }
  func.func @transform_6(%arg0: i32) -> (i32, i32) {
    %c0_i32 = arith.constant 0 : i32
    %c0_i32_0 = arith.constant 0 : i32
    %c0_i32_1 = arith.constant 0 : i32
    return %c0_i32, %c0_i32_0 : i32, i32
  }
  func.func @transform_7(%arg0: i32) -> (i32, i32) {
    %c0_i32 = arith.constant 0 : i32
    %c0_i32_0 = arith.constant 0 : i32
    %c0_i32_1 = arith.constant 0 : i32
    return %c0_i32, %c0_i32_0 : i32, i32
  }
  func.func @transform_8(%arg0: i32) -> (i32, i32) {
    %c0_i32 = arith.constant 0 : i32
    %c0_i32_0 = arith.constant 0 : i32
    %c0_i32_1 = arith.constant 0 : i32
    return %c0_i32, %c0_i32_0 : i32, i32
  }
  func.func @transform_9(%arg0: i32) -> (i32, i32) {
    %c0_i32 = arith.constant 0 : i32
    %c0_i32_0 = arith.constant 0 : i32
    %c0_i32_1 = arith.constant 0 : i32
    return %c0_i32, %c0_i32_0 : i32, i32
  }
  func.func @transform_10(%arg0: i32) -> (i32, i32) {
    %c0_i32 = arith.constant 0 : i32
    %c0_i32_0 = arith.constant 0 : i32
    %c0_i32_1 = arith.constant 0 : i32
    return %c0_i32, %c0_i32_0 : i32, i32
  }
  func.func @transform_11(%arg0: i32) -> (i32, i32) {
    %c0_i32 = arith.constant 0 : i32
    %c0_i32_0 = arith.constant 0 : i32
    %c0_i32_1 = arith.constant 0 : i32
    return %c0_i32, %c0_i32_0 : i32, i32
  }
  func.func @transform_12(%arg0: i32) -> (i32, i32, i32) {
    %c0_i32 = arith.constant 0 : i32
    %c0_i32_0 = arith.constant 0 : i32
    %c0_i32_1 = arith.constant 0 : i32
    return %arg0, %c0_i32, %c0_i32_0 : i32, i32, i32
  }
  func.func @transform_13(%arg0: i32) -> (i32, i32, i32, i32) {
    %c0_i32 = arith.constant 0 : i32
    %c0_i32_0 = arith.constant 0 : i32
    %c0_i32_1 = arith.constant 0 : i32
    %c0_i32_2 = arith.constant 0 : i32
    return %c0_i32, %arg0, %c0_i32_0, %c0_i32_1 : i32, i32, i32, i32
  }
}

module attributes {stable_mosaic.version = 11 : i64} {
  func.func @block_kernel(%arg0: i32, %arg1: memref<1x8x32xf32, #tpu.memory_space<vmem>>, %arg2: memref<32x96xbf16, #tpu.memory_space<vmem>>, %arg3: memref<32x32xbf16, #tpu.memory_space<vmem>>, %arg4: memref<1x32xf32, #tpu.memory_space<vmem>>, %arg5: memref<32x128xbf16, #tpu.memory_space<vmem>>, %arg6: memref<1x128xf32, #tpu.memory_space<vmem>>, %arg7: memref<128x32xbf16, #tpu.memory_space<vmem>>, %arg8: memref<1x32xf32, #tpu.memory_space<vmem>>, %arg9: memref<1x32xf32, #tpu.memory_space<vmem>>, %arg10: memref<1x32xf32, #tpu.memory_space<vmem>>, %arg11: memref<1x32xf32, #tpu.memory_space<vmem>>, %arg12: memref<1x32xf32, #tpu.memory_space<vmem>>, %arg13: memref<1x8x32xf32, #tpu.memory_space<vmem>>, %arg14: memref<4x1x8x8xbf16, #tpu.memory_space<vmem>>, %arg15: memref<1x8x96xbf16, #tpu.memory_space<vmem>>, %arg16: memref<1x8x32xbf16, #tpu.memory_space<vmem>>) attributes {dimension_semantics = [#tpu.dimension_semantics<parallel>], iteration_bounds = array<i64: 2>, scalar_prefetch = 0 : i64, scratch_operands = 2 : i64, tpu.core_type = #tpu.core_type<tc>, window_params = [{transform_indices = @transform_0, window_bounds = array<i64: 1, 8, 32>}, {pipeline_mode = #tpu.pipeline_mode<synchronous>, transform_indices = @transform_1, window_bounds = array<i64: 32, 96>}, {pipeline_mode = #tpu.pipeline_mode<synchronous>, transform_indices = @transform_2, window_bounds = array<i64: 32, 32>}, {pipeline_mode = #tpu.pipeline_mode<synchronous>, transform_indices = @transform_3, window_bounds = array<i64: 1, 32>}, {pipeline_mode = #tpu.pipeline_mode<synchronous>, transform_indices = @transform_4, window_bounds = array<i64: 32, 128>}, {pipeline_mode = #tpu.pipeline_mode<synchronous>, transform_indices = @transform_5, window_bounds = array<i64: 1, 128>}, {pipeline_mode = #tpu.pipeline_mode<synchronous>, transform_indices = @transform_6, window_bounds = array<i64: 128, 32>}, {pipeline_mode = #tpu.pipeline_mode<synchronous>, transform_indices = @transform_7, window_bounds = array<i64: 1, 32>}, {pipeline_mode = #tpu.pipeline_mode<synchronous>, transform_indices = @transform_8, window_bounds = array<i64: 1, 32>}, {pipeline_mode = #tpu.pipeline_mode<synchronous>, transform_indices = @transform_9, window_bounds = array<i64: 1, 32>}, {pipeline_mode = #tpu.pipeline_mode<synchronous>, transform_indices = @transform_10, window_bounds = array<i64: 1, 32>}, {pipeline_mode = #tpu.pipeline_mode<synchronous>, transform_indices = @transform_11, window_bounds = array<i64: 1, 32>}, {transform_indices = @transform_12, window_bounds = array<i64: 1, 8, 32>}, {transform_indices = @transform_13, window_bounds = array<i64: 4, 1, 8, 8>}]} {
    %c0 = arith.constant 0 : index
    %c0_0 = arith.constant 0 : index
    %c0_1 = arith.constant 0 : index
    %0 = vector.load %arg1[%c0, %c0_0, %c0_1] : memref<1x8x32xf32, #tpu.memory_space<vmem>>, vector<1x8x32xf32>
    %1 = vector.shape_cast %0 : vector<1x8x32xf32> to vector<8x32xf32>
    %c0_2 = arith.constant 0 : index
    %c0_3 = arith.constant 0 : index
    %2 = vector.load %arg9[%c0_2, %c0_3] : memref<1x32xf32, #tpu.memory_space<vmem>>, vector<1x32xf32>
    %c0_4 = arith.constant 0 : index
    %c0_5 = arith.constant 0 : index
    %3 = vector.load %arg10[%c0_4, %c0_5] : memref<1x32xf32, #tpu.memory_space<vmem>>, vector<1x32xf32>
    %cst = arith.constant dense<0.000000e+00> : vector<8xf32>
    %4 = vector.multi_reduction <add>, %1, %cst [1] : vector<8x32xf32> to vector<8xf32>
    %5 = vector.shape_cast %4 : vector<8xf32> to vector<8x1xf32>
    %cst_6 = arith.constant 3.200000e+01 : f32
    %6 = vector.broadcast %cst_6 : f32 to vector<8x1xf32>
    %7 = arith.divf %5, %6 : vector<8x1xf32>
    %8 = vector.broadcast %7 : vector<8x1xf32> to vector<8x32xf32>
    %9 = arith.subf %1, %8 : vector<8x32xf32>
    %10 = arith.mulf %9, %9 : vector<8x32xf32>
    %cst_7 = arith.constant dense<0.000000e+00> : vector<8xf32>
    %11 = vector.multi_reduction <add>, %10, %cst_7 [1] : vector<8x32xf32> to vector<8xf32>
    %12 = vector.shape_cast %11 : vector<8xf32> to vector<8x1xf32>
    %cst_8 = arith.constant 3.200000e+01 : f32
    %13 = vector.broadcast %cst_8 : f32 to vector<8x1xf32>
    %14 = arith.divf %12, %13 : vector<8x1xf32>
    %15 = vector.broadcast %7 : vector<8x1xf32> to vector<8x32xf32>
    %16 = arith.subf %1, %15 : vector<8x32xf32>
    %cst_9 = arith.constant 9.99999974E-6 : f32
    %17 = vector.broadcast %cst_9 : f32 to vector<8x1xf32>
    %18 = arith.addf %14, %17 : vector<8x1xf32>
    %19 = math.rsqrt %18 : vector<8x1xf32>
    %20 = vector.broadcast %19 : vector<8x1xf32> to vector<8x32xf32>
    %21 = arith.mulf %16, %20 : vector<8x32xf32>
    %22 = vector.broadcast %2 : vector<1x32xf32> to vector<8x32xf32>
    %23 = arith.mulf %21, %22 : vector<8x32xf32>
    %24 = vector.broadcast %3 : vector<1x32xf32> to vector<8x32xf32>
    %25 = arith.addf %23, %24 : vector<8x32xf32>
    %26 = arith.truncf %25 : vector<8x32xf32> to vector<8x32xbf16>
    %c0_10 = arith.constant 0 : index
    %c0_11 = arith.constant 0 : index
    %27 = vector.load %arg2[%c0_10, %c0_11] : memref<32x96xbf16, #tpu.memory_space<vmem>>, vector<32x96xbf16>
    %cst_12 = arith.constant dense<0.000000e+00> : vector<8x96xf32>
    %28 = tpu.matmul %26, %27, %cst_12 {dimension_numbers = #tpu.dot_dimension_numbers<[1], [0], [0], [1], [0, 0, 1, 1], [], []>} : vector<8x32xbf16>, vector<32x96xbf16>, vector<8x96xf32> -> vector<8x96xf32>
    %29 = vector.shape_cast %28 : vector<8x96xf32> to vector<1x8x96xf32>
    %30 = arith.truncf %29 : vector<1x8x96xf32> to vector<1x8x96xbf16>
    %c0_13 = arith.constant 0 : index
    %c0_14 = arith.constant 0 : index
    %c0_15 = arith.constant 0 : index
    %31 = vector.load %arg15[%c0_13, %c0_14, %c0_15] : memref<1x8x96xbf16, #tpu.memory_space<vmem>>, vector<1x8x96xbf16>
    tpu.vector_store %arg15[%c0_13, %c0_14, %c0_15], %30 {strides = array<i32>} : memref<1x8x96xbf16, #tpu.memory_space<vmem>>, vector<1x8x96xbf16>,
    %c0_16 = arith.constant 0 : index
    %c0_17 = arith.constant 0 : index
    %c0_18 = arith.constant 0 : index
    %32 = vector.load %arg15[%c0_16, %c0_17, %c0_18] : memref<1x8x96xbf16, #tpu.memory_space<vmem>>, vector<1x8x8xbf16>
    %c0_19 = arith.constant 0 : index
    %c0_20 = arith.constant 0 : index
    %c32 = arith.constant 32 : index
    %33 = vector.load %arg15[%c0_19, %c0_20, %c32] : memref<1x8x96xbf16, #tpu.memory_space<vmem>>, vector<1x8x8xbf16>
    %c0_21 = arith.constant 0 : index
    %c0_22 = arith.constant 0 : index
    %c64 = arith.constant 64 : index
    %34 = vector.load %arg15[%c0_21, %c0_22, %c64] : memref<1x8x96xbf16, #tpu.memory_space<vmem>>, vector<1x8x8xbf16>
    "tpu.trace_start"() <{level = 10 : i32, message = "bqd,bkd->bqk"}> : () -> ()
    %cst_23 = arith.constant dense<0.000000e+00> : vector<1x8x8xf32>
    %35 = tpu.matmul %32, %33, %cst_23 {dimension_numbers = #tpu.dot_dimension_numbers<[2], [2], [1], [1], [0, 0, 0, 1, 1, 1], [0], [0]>} : vector<1x8x8xbf16>, vector<1x8x8xbf16>, vector<1x8x8xf32> -> vector<1x8x8xf32>
    "tpu.trace_stop"() : () -> ()
    %cst_24 = arith.constant dense<0xFF800000> : vector<1x8xf32>
    %36 = vector.multi_reduction <maximumf>, %35, %cst_24 [2] : vector<1x8x8xf32> to vector<1x8xf32>
    %37 = vector.shape_cast %36 : vector<1x8xf32> to vector<1x8x1xf32>
    %38 = vector.broadcast %37 : vector<1x8x1xf32> to vector<1x8x8xf32>
    %39 = arith.subf %35, %38 : vector<1x8x8xf32>
    %40 = math.exp %39 : vector<1x8x8xf32>
    %cst_25 = arith.constant dense<0.000000e+00> : vector<1x8xf32>
    %41 = vector.multi_reduction <add>, %40, %cst_25 [2] : vector<1x8x8xf32> to vector<1x8xf32>
    %42 = vector.shape_cast %41 : vector<1x8xf32> to vector<1x8x1xf32>
    %43 = tpu.reciprocal %42 {approx = true} : vector<1x8x1xf32> -> vector<1x8x1xf32>
    %44 = vector.broadcast %43 : vector<1x8x1xf32> to vector<1x8x8xf32>
    %45 = arith.mulf %40, %44 : vector<1x8x8xf32>
    %46 = arith.truncf %45 : vector<1x8x8xf32> to vector<1x8x8xbf16>
    %c0_26 = arith.constant 0 : index
    %c0_27 = arith.constant 0 : index
    %c0_28 = arith.constant 0 : index
    %c0_29 = arith.constant 0 : index
    %47 = vector.load %arg14[%c0_26, %c0_27, %c0_28, %c0_29] : memref<4x1x8x8xbf16, #tpu.memory_space<vmem>>, vector<1x1x8x8xbf16>
    %48 = vector.shape_cast %47 : vector<1x1x8x8xbf16> to vector<1x8x8xbf16>
    %49 = vector.shape_cast %46 : vector<1x8x8xbf16> to vector<1x1x8x8xbf16>
    tpu.vector_store %arg14[%c0_26, %c0_27, %c0_28, %c0_29], %49 {strides = array<i32>} : memref<4x1x8x8xbf16, #tpu.memory_space<vmem>>, vector<1x1x8x8xbf16>,
    %50 = arith.truncf %45 : vector<1x8x8xf32> to vector<1x8x8xbf16>
    "tpu.trace_start"() <{level = 10 : i32, message = "bqk,bkd->bqd"}> : () -> ()
    %cst_30 = arith.constant dense<0.000000e+00> : vector<1x8x8xf32>
    %51 = tpu.matmul %50, %34, %cst_30 {dimension_numbers = #tpu.dot_dimension_numbers<[2], [1], [1], [2], [0, 0, 0, 1, 1, 2], [0], [0]>} : vector<1x8x8xbf16>, vector<1x8x8xbf16>, vector<1x8x8xf32> -> vector<1x8x8xf32>
    "tpu.trace_stop"() : () -> ()
    %52 = arith.truncf %51 : vector<1x8x8xf32> to vector<1x8x8xbf16>
    %c0_31 = arith.constant 0 : index
    %c0_32 = arith.constant 0 : index
    %c0_33 = arith.constant 0 : index
    %53 = vector.load %arg16[%c0_31, %c0_32, %c0_33] : memref<1x8x32xbf16, #tpu.memory_space<vmem>>, vector<1x8x8xbf16>
    tpu.vector_store %arg16[%c0_31, %c0_32, %c0_33], %52 {strides = array<i32>} : memref<1x8x32xbf16, #tpu.memory_space<vmem>>, vector<1x8x8xbf16>,
    %c0_34 = arith.constant 0 : index
    %c0_35 = arith.constant 0 : index
    %c8 = arith.constant 8 : index
    %54 = vector.load %arg15[%c0_34, %c0_35, %c8] : memref<1x8x96xbf16, #tpu.memory_space<vmem>>, vector<1x8x8xbf16>
    %c0_36 = arith.constant 0 : index
    %c0_37 = arith.constant 0 : index
    %c40 = arith.constant 40 : index
    %55 = vector.load %arg15[%c0_36, %c0_37, %c40] : memref<1x8x96xbf16, #tpu.memory_space<vmem>>, vector<1x8x8xbf16>
    %c0_38 = arith.constant 0 : index
    %c0_39 = arith.constant 0 : index
    %c72 = arith.constant 72 : index
    %56 = vector.load %arg15[%c0_38, %c0_39, %c72] : memref<1x8x96xbf16, #tpu.memory_space<vmem>>, vector<1x8x8xbf16>
    "tpu.trace_start"() <{level = 10 : i32, message = "bqd,bkd->bqk"}> : () -> ()
    %cst_40 = arith.constant dense<0.000000e+00> : vector<1x8x8xf32>
    %57 = tpu.matmul %54, %55, %cst_40 {dimension_numbers = #tpu.dot_dimension_numbers<[2], [2], [1], [1], [0, 0, 0, 1, 1, 1], [0], [0]>} : vector<1x8x8xbf16>, vector<1x8x8xbf16>, vector<1x8x8xf32> -> vector<1x8x8xf32>
    "tpu.trace_stop"() : () -> ()
    %cst_41 = arith.constant dense<0xFF800000> : vector<1x8xf32>
    %58 = vector.multi_reduction <maximumf>, %57, %cst_41 [2] : vector<1x8x8xf32> to vector<1x8xf32>
    %59 = vector.shape_cast %58 : vector<1x8xf32> to vector<1x8x1xf32>
    %60 = vector.broadcast %59 : vector<1x8x1xf32> to vector<1x8x8xf32>
    %61 = arith.subf %57, %60 : vector<1x8x8xf32>
    %62 = math.exp %61 : vector<1x8x8xf32>
    %cst_42 = arith.constant dense<0.000000e+00> : vector<1x8xf32>
    %63 = vector.multi_reduction <add>, %62, %cst_42 [2] : vector<1x8x8xf32> to vector<1x8xf32>
    %64 = vector.shape_cast %63 : vector<1x8xf32> to vector<1x8x1xf32>
    %65 = tpu.reciprocal %64 {approx = true} : vector<1x8x1xf32> -> vector<1x8x1xf32>
    %66 = vector.broadcast %65 : vector<1x8x1xf32> to vector<1x8x8xf32>
    %67 = arith.mulf %62, %66 : vector<1x8x8xf32>
    %68 = arith.truncf %67 : vector<1x8x8xf32> to vector<1x8x8xbf16>
    %c1 = arith.constant 1 : index
    %c0_43 = arith.constant 0 : index
    %c0_44 = arith.constant 0 : index
    %c0_45 = arith.constant 0 : index
    %69 = vector.load %arg14[%c1, %c0_43, %c0_44, %c0_45] : memref<4x1x8x8xbf16, #tpu.memory_space<vmem>>, vector<1x1x8x8xbf16>
    %70 = vector.shape_cast %69 : vector<1x1x8x8xbf16> to vector<1x8x8xbf16>
    %71 = vector.shape_cast %68 : vector<1x8x8xbf16> to vector<1x1x8x8xbf16>
    tpu.vector_store %arg14[%c1, %c0_43, %c0_44, %c0_45], %71 {strides = array<i32>} : memref<4x1x8x8xbf16, #tpu.memory_space<vmem>>, vector<1x1x8x8xbf16>,
    %72 = arith.truncf %67 : vector<1x8x8xf32> to vector<1x8x8xbf16>
    "tpu.trace_start"() <{level = 10 : i32, message = "bqk,bkd->bqd"}> : () -> ()
    %cst_46 = arith.constant dense<0.000000e+00> : vector<1x8x8xf32>
    %73 = tpu.matmul %72, %56, %cst_46 {dimension_numbers = #tpu.dot_dimension_numbers<[2], [1], [1], [2], [0, 0, 0, 1, 1, 2], [0], [0]>} : vector<1x8x8xbf16>, vector<1x8x8xbf16>, vector<1x8x8xf32> -> vector<1x8x8xf32>
    "tpu.trace_stop"() : () -> ()
    %74 = arith.truncf %73 : vector<1x8x8xf32> to vector<1x8x8xbf16>
    %c0_47 = arith.constant 0 : index
    %c0_48 = arith.constant 0 : index
    %c8_49 = arith.constant 8 : index
    %75 = vector.load %arg16[%c0_47, %c0_48, %c8_49] : memref<1x8x32xbf16, #tpu.memory_space<vmem>>, vector<1x8x8xbf16>
    tpu.vector_store %arg16[%c0_47, %c0_48, %c8_49], %74 {strides = array<i32>} : memref<1x8x32xbf16, #tpu.memory_space<vmem>>, vector<1x8x8xbf16>,
    %c0_50 = arith.constant 0 : index
    %c0_51 = arith.constant 0 : index
    %c16 = arith.constant 16 : index
    %76 = vector.load %arg15[%c0_50, %c0_51, %c16] : memref<1x8x96xbf16, #tpu.memory_space<vmem>>, vector<1x8x8xbf16>
    %c0_52 = arith.constant 0 : index
    %c0_53 = arith.constant 0 : index
    %c48 = arith.constant 48 : index
    %77 = vector.load %arg15[%c0_52, %c0_53, %c48] : memref<1x8x96xbf16, #tpu.memory_space<vmem>>, vector<1x8x8xbf16>
    %c0_54 = arith.constant 0 : index
    %c0_55 = arith.constant 0 : index
    %c80 = arith.constant 80 : index
    %78 = vector.load %arg15[%c0_54, %c0_55, %c80] : memref<1x8x96xbf16, #tpu.memory_space<vmem>>, vector<1x8x8xbf16>
    "tpu.trace_start"() <{level = 10 : i32, message = "bqd,bkd->bqk"}> : () -> ()
    %cst_56 = arith.constant dense<0.000000e+00> : vector<1x8x8xf32>
    %79 = tpu.matmul %76, %77, %cst_56 {dimension_numbers = #tpu.dot_dimension_numbers<[2], [2], [1], [1], [0, 0, 0, 1, 1, 1], [0], [0]>} : vector<1x8x8xbf16>, vector<1x8x8xbf16>, vector<1x8x8xf32> -> vector<1x8x8xf32>
    "tpu.trace_stop"() : () -> ()
    %cst_57 = arith.constant dense<0xFF800000> : vector<1x8xf32>
    %80 = vector.multi_reduction <maximumf>, %79, %cst_57 [2] : vector<1x8x8xf32> to vector<1x8xf32>
    %81 = vector.shape_cast %80 : vector<1x8xf32> to vector<1x8x1xf32>
    %82 = vector.broadcast %81 : vector<1x8x1xf32> to vector<1x8x8xf32>
    %83 = arith.subf %79, %82 : vector<1x8x8xf32>
    %84 = math.exp %83 : vector<1x8x8xf32>
    %cst_58 = arith.constant dense<0.000000e+00> : vector<1x8xf32>
    %85 = vector.multi_reduction <add>, %84, %cst_58 [2] : vector<1x8x8xf32> to vector<1x8xf32>
    %86 = vector.shape_cast %85 : vector<1x8xf32> to vector<1x8x1xf32>
    %87 = tpu.reciprocal %86 {approx = true} : vector<1x8x1xf32> -> vector<1x8x1xf32>
    %88 = vector.broadcast %87 : vector<1x8x1xf32> to vector<1x8x8xf32>
    %89 = arith.mulf %84, %88 : vector<1x8x8xf32>
    %90 = arith.truncf %89 : vector<1x8x8xf32> to vector<1x8x8xbf16>
    %c2 = arith.constant 2 : index
    %c0_59 = arith.constant 0 : index
    %c0_60 = arith.constant 0 : index
    %c0_61 = arith.constant 0 : index
    %91 = vector.load %arg14[%c2, %c0_59, %c0_60, %c0_61] : memref<4x1x8x8xbf16, #tpu.memory_space<vmem>>, vector<1x1x8x8xbf16>
    %92 = vector.shape_cast %91 : vector<1x1x8x8xbf16> to vector<1x8x8xbf16>
    %93 = vector.shape_cast %90 : vector<1x8x8xbf16> to vector<1x1x8x8xbf16>
    tpu.vector_store %arg14[%c2, %c0_59, %c0_60, %c0_61], %93 {strides = array<i32>} : memref<4x1x8x8xbf16, #tpu.memory_space<vmem>>, vector<1x1x8x8xbf16>,
    %94 = arith.truncf %89 : vector<1x8x8xf32> to vector<1x8x8xbf16>
    "tpu.trace_start"() <{level = 10 : i32, message = "bqk,bkd->bqd"}> : () -> ()
    %cst_62 = arith.constant dense<0.000000e+00> : vector<1x8x8xf32>
    %95 = tpu.matmul %94, %78, %cst_62 {dimension_numbers = #tpu.dot_dimension_numbers<[2], [1], [1], [2], [0, 0, 0, 1, 1, 2], [0], [0]>} : vector<1x8x8xbf16>, vector<1x8x8xbf16>, vector<1x8x8xf32> -> vector<1x8x8xf32>
    "tpu.trace_stop"() : () -> ()
    %96 = arith.truncf %95 : vector<1x8x8xf32> to vector<1x8x8xbf16>
    %c0_63 = arith.constant 0 : index
    %c0_64 = arith.constant 0 : index
    %c16_65 = arith.constant 16 : index
    %97 = vector.load %arg16[%c0_63, %c0_64, %c16_65] : memref<1x8x32xbf16, #tpu.memory_space<vmem>>, vector<1x8x8xbf16>
    tpu.vector_store %arg16[%c0_63, %c0_64, %c16_65], %96 {strides = array<i32>} : memref<1x8x32xbf16, #tpu.memory_space<vmem>>, vector<1x8x8xbf16>,
    %c0_66 = arith.constant 0 : index
    %c0_67 = arith.constant 0 : index
    %c24 = arith.constant 24 : index
    %98 = vector.load %arg15[%c0_66, %c0_67, %c24] : memref<1x8x96xbf16, #tpu.memory_space<vmem>>, vector<1x8x8xbf16>
    %c0_68 = arith.constant 0 : index
    %c0_69 = arith.constant 0 : index
    %c56 = arith.constant 56 : index
    %99 = vector.load %arg15[%c0_68, %c0_69, %c56] : memref<1x8x96xbf16, #tpu.memory_space<vmem>>, vector<1x8x8xbf16>
    %c0_70 = arith.constant 0 : index
    %c0_71 = arith.constant 0 : index
    %c88 = arith.constant 88 : index
    %100 = vector.load %arg15[%c0_70, %c0_71, %c88] : memref<1x8x96xbf16, #tpu.memory_space<vmem>>, vector<1x8x8xbf16>
    "tpu.trace_start"() <{level = 10 : i32, message = "bqd,bkd->bqk"}> : () -> ()
    %cst_72 = arith.constant dense<0.000000e+00> : vector<1x8x8xf32>
    %101 = tpu.matmul %98, %99, %cst_72 {dimension_numbers = #tpu.dot_dimension_numbers<[2], [2], [1], [1], [0, 0, 0, 1, 1, 1], [0], [0]>} : vector<1x8x8xbf16>, vector<1x8x8xbf16>, vector<1x8x8xf32> -> vector<1x8x8xf32>
    "tpu.trace_stop"() : () -> ()
    %cst_73 = arith.constant dense<0xFF800000> : vector<1x8xf32>
    %102 = vector.multi_reduction <maximumf>, %101, %cst_73 [2] : vector<1x8x8xf32> to vector<1x8xf32>
    %103 = vector.shape_cast %102 : vector<1x8xf32> to vector<1x8x1xf32>
    %104 = vector.broadcast %103 : vector<1x8x1xf32> to vector<1x8x8xf32>
    %105 = arith.subf %101, %104 : vector<1x8x8xf32>
    %106 = math.exp %105 : vector<1x8x8xf32>
    %cst_74 = arith.constant dense<0.000000e+00> : vector<1x8xf32>
    %107 = vector.multi_reduction <add>, %106, %cst_74 [2] : vector<1x8x8xf32> to vector<1x8xf32>
    %108 = vector.shape_cast %107 : vector<1x8xf32> to vector<1x8x1xf32>
    %109 = tpu.reciprocal %108 {approx = true} : vector<1x8x1xf32> -> vector<1x8x1xf32>
    %110 = vector.broadcast %109 : vector<1x8x1xf32> to vector<1x8x8xf32>
    %111 = arith.mulf %106, %110 : vector<1x8x8xf32>
    %112 = arith.truncf %111 : vector<1x8x8xf32> to vector<1x8x8xbf16>
    %c3 = arith.constant 3 : index
    %c0_75 = arith.constant 0 : index
    %c0_76 = arith.constant 0 : index
    %c0_77 = arith.constant 0 : index
    %113 = vector.load %arg14[%c3, %c0_75, %c0_76, %c0_77] : memref<4x1x8x8xbf16, #tpu.memory_space<vmem>>, vector<1x1x8x8xbf16>
    %114 = vector.shape_cast %113 : vector<1x1x8x8xbf16> to vector<1x8x8xbf16>
    %115 = vector.shape_cast %112 : vector<1x8x8xbf16> to vector<1x1x8x8xbf16>
    tpu.vector_store %arg14[%c3, %c0_75, %c0_76, %c0_77], %115 {strides = array<i32>} : memref<4x1x8x8xbf16, #tpu.memory_space<vmem>>, vector<1x1x8x8xbf16>,
    %116 = arith.truncf %111 : vector<1x8x8xf32> to vector<1x8x8xbf16>
    "tpu.trace_start"() <{level = 10 : i32, message = "bqk,bkd->bqd"}> : () -> ()
    %cst_78 = arith.constant dense<0.000000e+00> : vector<1x8x8xf32>
    %117 = tpu.matmul %116, %100, %cst_78 {dimension_numbers = #tpu.dot_dimension_numbers<[2], [1], [1], [2], [0, 0, 0, 1, 1, 2], [0], [0]>} : vector<1x8x8xbf16>, vector<1x8x8xbf16>, vector<1x8x8xf32> -> vector<1x8x8xf32>
    "tpu.trace_stop"() : () -> ()
    %118 = arith.truncf %117 : vector<1x8x8xf32> to vector<1x8x8xbf16>
    %c0_79 = arith.constant 0 : index
    %c0_80 = arith.constant 0 : index
    %c24_81 = arith.constant 24 : index
    %119 = vector.load %arg16[%c0_79, %c0_80, %c24_81] : memref<1x8x32xbf16, #tpu.memory_space<vmem>>, vector<1x8x8xbf16>
    tpu.vector_store %arg16[%c0_79, %c0_80, %c24_81], %118 {strides = array<i32>} : memref<1x8x32xbf16, #tpu.memory_space<vmem>>, vector<1x8x8xbf16>,
    %c0_82 = arith.constant 0 : index
    %c0_83 = arith.constant 0 : index
    %c0_84 = arith.constant 0 : index
    %120 = vector.load %arg16[%c0_82, %c0_83, %c0_84] : memref<1x8x32xbf16, #tpu.memory_space<vmem>>, vector<1x8x32xbf16>
    %121 = vector.shape_cast %120 : vector<1x8x32xbf16> to vector<8x32xbf16>
    %c0_85 = arith.constant 0 : index
    %c0_86 = arith.constant 0 : index
    %122 = vector.load %arg3[%c0_85, %c0_86] : memref<32x32xbf16, #tpu.memory_space<vmem>>, vector<32x32xbf16>
    %cst_87 = arith.constant dense<0.000000e+00> : vector<8x32xf32>
    %123 = tpu.matmul %121, %122, %cst_87 {dimension_numbers = #tpu.dot_dimension_numbers<[1], [0], [0], [1], [0, 0, 1, 1], [], []>} : vector<8x32xbf16>, vector<32x32xbf16>, vector<8x32xf32> -> vector<8x32xf32>
    %c0_88 = arith.constant 0 : index
    %c0_89 = arith.constant 0 : index
    %124 = vector.load %arg4[%c0_88, %c0_89] : memref<1x32xf32, #tpu.memory_space<vmem>>, vector<1x32xf32>
    %125 = vector.broadcast %124 : vector<1x32xf32> to vector<8x32xf32>
    %126 = arith.addf %123, %125 : vector<8x32xf32>
    %c0_90 = arith.constant 0 : index
    %c0_91 = arith.constant 0 : index
    %c0_92 = arith.constant 0 : index
    %127 = vector.load %arg1[%c0_90, %c0_91, %c0_92] : memref<1x8x32xf32, #tpu.memory_space<vmem>>, vector<1x8x32xf32>
    %128 = vector.shape_cast %127 : vector<1x8x32xf32> to vector<8x32xf32>
    %129 = arith.addf %128, %126 : vector<8x32xf32>
    %c0_93 = arith.constant 0 : index
    %c0_94 = arith.constant 0 : index
    %130 = vector.load %arg11[%c0_93, %c0_94] : memref<1x32xf32, #tpu.memory_space<vmem>>, vector<1x32xf32>
    %c0_95 = arith.constant 0 : index
    %c0_96 = arith.constant 0 : index
    %131 = vector.load %arg12[%c0_95, %c0_96] : memref<1x32xf32, #tpu.memory_space<vmem>>, vector<1x32xf32>
    %cst_97 = arith.constant dense<0.000000e+00> : vector<8xf32>
    %132 = vector.multi_reduction <add>, %129, %cst_97 [1] : vector<8x32xf32> to vector<8xf32>
    %133 = vector.shape_cast %132 : vector<8xf32> to vector<8x1xf32>
    %cst_98 = arith.constant 3.200000e+01 : f32
    %134 = vector.broadcast %cst_98 : f32 to vector<8x1xf32>
    %135 = arith.divf %133, %134 : vector<8x1xf32>
    %136 = vector.broadcast %135 : vector<8x1xf32> to vector<8x32xf32>
    %137 = arith.subf %129, %136 : vector<8x32xf32>
    %138 = arith.mulf %137, %137 : vector<8x32xf32>
    %cst_99 = arith.constant dense<0.000000e+00> : vector<8xf32>
    %139 = vector.multi_reduction <add>, %138, %cst_99 [1] : vector<8x32xf32> to vector<8xf32>
    %140 = vector.shape_cast %139 : vector<8xf32> to vector<8x1xf32>
    %cst_100 = arith.constant 3.200000e+01 : f32
    %141 = vector.broadcast %cst_100 : f32 to vector<8x1xf32>
    %142 = arith.divf %140, %141 : vector<8x1xf32>
    %143 = vector.broadcast %135 : vector<8x1xf32> to vector<8x32xf32>
    %144 = arith.subf %129, %143 : vector<8x32xf32>
    %cst_101 = arith.constant 9.99999974E-6 : f32
    %145 = vector.broadcast %cst_101 : f32 to vector<8x1xf32>
    %146 = arith.addf %142, %145 : vector<8x1xf32>
    %147 = math.rsqrt %146 : vector<8x1xf32>
    %148 = vector.broadcast %147 : vector<8x1xf32> to vector<8x32xf32>
    %149 = arith.mulf %144, %148 : vector<8x32xf32>
    %150 = vector.broadcast %130 : vector<1x32xf32> to vector<8x32xf32>
    %151 = arith.mulf %149, %150 : vector<8x32xf32>
    %152 = vector.broadcast %131 : vector<1x32xf32> to vector<8x32xf32>
    %153 = arith.addf %151, %152 : vector<8x32xf32>
    %154 = arith.truncf %153 : vector<8x32xf32> to vector<8x32xbf16>
    %c0_102 = arith.constant 0 : index
    %c0_103 = arith.constant 0 : index
    %155 = vector.load %arg5[%c0_102, %c0_103] : memref<32x128xbf16, #tpu.memory_space<vmem>>, vector<32x128xbf16>
    %cst_104 = arith.constant dense<0.000000e+00> : vector<8x128xf32>
    %156 = tpu.matmul %154, %155, %cst_104 {dimension_numbers = #tpu.dot_dimension_numbers<[1], [0], [0], [1], [0, 0, 1, 1], [], []>} : vector<8x32xbf16>, vector<32x128xbf16>, vector<8x128xf32> -> vector<8x128xf32>
    %c0_105 = arith.constant 0 : index
    %c0_106 = arith.constant 0 : index
    %157 = vector.load %arg6[%c0_105, %c0_106] : memref<1x128xf32, #tpu.memory_space<vmem>>, vector<1x128xf32>
    %158 = vector.broadcast %157 : vector<1x128xf32> to vector<8x128xf32>
    %159 = arith.addf %156, %158 : vector<8x128xf32>
    %cst_107 = arith.constant 0.000000e+00 : f32
    %160 = vector.broadcast %cst_107 : f32 to vector<8x128xf32>
    %161 = arith.maximumf %159, %160 : vector<8x128xf32>
    %162 = arith.truncf %161 : vector<8x128xf32> to vector<8x128xbf16>
    %c0_108 = arith.constant 0 : index
    %c0_109 = arith.constant 0 : index
    %163 = vector.load %arg7[%c0_108, %c0_109] : memref<128x32xbf16, #tpu.memory_space<vmem>>, vector<128x32xbf16>
    %cst_110 = arith.constant dense<0.000000e+00> : vector<8x32xf32>
    %164 = tpu.matmul %162, %163, %cst_110 {dimension_numbers = #tpu.dot_dimension_numbers<[1], [0], [0], [1], [0, 0, 1, 1], [], []>} : vector<8x128xbf16>, vector<128x32xbf16>, vector<8x32xf32> -> vector<8x32xf32>
    %c0_111 = arith.constant 0 : index
    %c0_112 = arith.constant 0 : index
    %165 = vector.load %arg8[%c0_111, %c0_112] : memref<1x32xf32, #tpu.memory_space<vmem>>, vector<1x32xf32>
    %166 = vector.broadcast %165 : vector<1x32xf32> to vector<8x32xf32>
    %167 = arith.addf %164, %166 : vector<8x32xf32>
    %168 = arith.addf %129, %167 : vector<8x32xf32>
    %169 = vector.shape_cast %168 : vector<8x32xf32> to vector<1x8x32xf32>
    %c0_113 = arith.constant 0 : index
    %c0_114 = arith.constant 0 : index
    %c0_115 = arith.constant 0 : index
    %170 = vector.load %arg13[%c0_113, %c0_114, %c0_115] : memref<1x8x32xf32, #tpu.memory_space<vmem>>, vector<1x8x32xf32>
    tpu.vector_store %arg13[%c0_113, %c0_114, %c0_115], %169 {strides = array<i32>} : memref<1x8x32xf32, #tpu.memory_space<vmem>>, vector<1x8x32xf32>,
    return
  }
  func.func @transform_0(%arg0: i32) -> (i32, i32, i32) {
    %c0_i32 = arith.constant 0 : i32
    %c0_i32_0 = arith.constant 0 : i32
    %c0_i32_1 = arith.constant 0 : i32
    return %arg0, %c0_i32, %c0_i32_0 : i32, i32, i32
  }
  func.func @transform_1(%arg0: i32) -> (i32, i32) {
    %c0_i32 = arith.constant 0 : i32
    %c0_i32_0 = arith.constant 0 : i32
    %c0_i32_1 = arith.constant 0 : i32
    return %c0_i32, %c0_i32_0 : i32, i32
  }
  func.func @transform_2(%arg0: i32) -> (i32, i32) {
    %c0_i32 = arith.constant 0 : i32
    %c0_i32_0 = arith.constant 0 : i32
    %c0_i32_1 = arith.constant 0 : i32
    return %c0_i32, %c0_i32_0 : i32, i32
  }
  func.func @transform_3(%arg0: i32) -> (i32, i32) {
    %c0_i32 = arith.constant 0 : i32
    %c0_i32_0 = arith.constant 0 : i32
    %c0_i32_1 = arith.constant 0 : i32
    return %c0_i32, %c0_i32_0 : i32, i32
  }
  func.func @transform_4(%arg0: i32) -> (i32, i32) {
    %c0_i32 = arith.constant 0 : i32
    %c0_i32_0 = arith.constant 0 : i32
    %c0_i32_1 = arith.constant 0 : i32
    return %c0_i32, %c0_i32_0 : i32, i32
  }
  func.func @transform_5(%arg0: i32) -> (i32, i32) {
    %c0_i32 = arith.constant 0 : i32
    %c0_i32_0 = arith.constant 0 : i32
    %c0_i32_1 = arith.constant 0 : i32
    return %c0_i32, %c0_i32_0 : i32, i32
  }
  func.func @transform_6(%arg0: i32) -> (i32, i32) {
    %c0_i32 = arith.constant 0 : i32
    %c0_i32_0 = arith.constant 0 : i32
    %c0_i32_1 = arith.constant 0 : i32
    return %c0_i32, %c0_i32_0 : i32, i32
  }
  func.func @transform_7(%arg0: i32) -> (i32, i32) {
    %c0_i32 = arith.constant 0 : i32
    %c0_i32_0 = arith.constant 0 : i32
    %c0_i32_1 = arith.constant 0 : i32
    return %c0_i32, %c0_i32_0 : i32, i32
  }
  func.func @transform_8(%arg0: i32) -> (i32, i32) {
    %c0_i32 = arith.constant 0 : i32
    %c0_i32_0 = arith.constant 0 : i32
    %c0_i32_1 = arith.constant 0 : i32
    return %c0_i32, %c0_i32_0 : i32, i32
  }
  func.func @transform_9(%arg0: i32) -> (i32, i32) {
    %c0_i32 = arith.constant 0 : i32
    %c0_i32_0 = arith.constant 0 : i32
    %c0_i32_1 = arith.constant 0 : i32
    return %c0_i32, %c0_i32_0 : i32, i32
  }
  func.func @transform_10(%arg0: i32) -> (i32, i32) {
    %c0_i32 = arith.constant 0 : i32
    %c0_i32_0 = arith.constant 0 : i32
    %c0_i32_1 = arith.constant 0 : i32
    return %c0_i32, %c0_i32_0 : i32, i32
  }
  func.func @transform_11(%arg0: i32) -> (i32, i32) {
    %c0_i32 = arith.constant 0 : i32
    %c0_i32_0 = arith.constant 0 : i32
    %c0_i32_1 = arith.constant 0 : i32
    return %c0_i32, %c0_i32_0 : i32, i32
  }
  func.func @transform_12(%arg0: i32) -> (i32, i32, i32) {
    %c0_i32 = arith.constant 0 : i32
    %c0_i32_0 = arith.constant 0 : i32
    %c0_i32_1 = arith.constant 0 : i32
    return %arg0, %c0_i32, %c0_i32_0 : i32, i32, i32
  }
  func.func @transform_13(%arg0: i32) -> (i32, i32, i32, i32) {
    %c0_i32 = arith.constant 0 : i32
    %c0_i32_0 = arith.constant 0 : i32
    %c0_i32_1 = arith.constant 0 : i32
    %c0_i32_2 = arith.constant 0 : i32
    return %c0_i32, %arg0, %c0_i32_0, %c0_i32_1 : i32, i32, i32, i32
  }
}

</mosaic_0001>

<llo_original>
// kernel: tpu_custom_call.1
$region0: #{tpu_custom_call.1}
  #allocation0 [shape = 'u32[]', space=smem, size = 0x4, offset = 0x4, fixed_abs, tag = 'smem constant byte address 0x4 - core index']
  #allocation1 [shape = 'u32[144,128]{1,0:T(1,128)}', space=vmem, size = 0x12000, scoped, tag = 'internal scratch']
  #allocation2 [shape = 'bf16[1,8,96]{2,1,0:T(8,128)(2,1)}', space=vmem, size = 0x800, scoped, tag = 'scratch operand']
  #allocation3 [shape = 'bf16[1,8,32]{2,1,0:T(8,128)(2,1)}', space=vmem, size = 0x800, scoped, tag = 'scratch operand']
  %s0 = inlined_call_operand.hbm [shape: f32[2,8,32], index: 0, kind: input, shape index: {}]
  %s1 = inlined_call_operand.hbm [shape: bf16[32,96], index: 1, kind: input, shape index: {}]
  %s2 = inlined_call_operand.hbm [shape: bf16[32,32], index: 2, kind: input, shape index: {}]
  %s3 = inlined_call_operand.hbm [shape: f32[1,32], index: 3, kind: input, shape index: {}]
  %s4 = inlined_call_operand.hbm [shape: bf16[32,128], index: 4, kind: input, shape index: {}]
  %s5 = inlined_call_operand.hbm [shape: f32[1,128], index: 5, kind: input, shape index: {}]
  %s6 = inlined_call_operand.hbm [shape: bf16[128,32], index: 6, kind: input, shape index: {}]
  %s7 = inlined_call_operand.hbm [shape: f32[1,32], index: 7, kind: input, shape index: {}]
  %s8 = inlined_call_operand.hbm [shape: f32[1,32], index: 8, kind: input, shape index: {}]
  %s9 = inlined_call_operand.hbm [shape: f32[1,32], index: 9, kind: input, shape index: {}]
  %s10 = inlined_call_operand.hbm [shape: f32[1,32], index: 10, kind: input, shape index: {}]
  %s11 = inlined_call_operand.hbm [shape: f32[1,32], index: 11, kind: input, shape index: {}]
  %s12 = inlined_call_operand.hbm [shape: f32[2,8,32], index: 12, kind: output, shape index: {0}]
  %s13 = inlined_call_operand.hbm [shape: bf16[4,2,8,8], index: 13, kind: output, shape index: {1}]
  %14 = xla_tuple %s12, %s13
  %s15 = sld [smem:[#allocation0]]
  $region137: #{tpu_custom_call.1} parent=0
    _
  %s17 = ssub.s32 1, %s15
  %s18 = scalar_select 0, %s17, %s15
  $region1: #{tpu_custom_call.1} parent=0
    #allocation4 [shape = 'u8[8192]{0}', space=vmem, size = 0x2000, scoped, tag = 'input window, operand 0']
    #allocation5 [shape = 's32[2]{0}', space=sflag, size = 0x8, scoped, tag = 'scoped memory for tpu_custom_call.1']
    #allocation6 [shape = 's32[2]{0}', space=sflag, size = 0x8, scoped, tag = 'scoped memory for tpu_custom_call.1']
    #allocation7 [shape = 'u8[8192]{0}', space=vmem, size = 0x2000, scoped, tag = 'input window, operand 1, single buffered']
    #allocation8 [shape = 's32[1]{0}', space=sflag, size = 0x4, scoped, tag = 'scoped memory for tpu_custom_call.1']
    #allocation9 [shape = 'u8[8192]{0}', space=vmem, size = 0x2000, scoped, tag = 'input window, operand 2, single buffered']
    #allocation10 [shape = 'u8[512]{0}', space=vmem, size = 0x400, scoped, tag = 'input window, operand 3, single buffered']
    #allocation11 [shape = 's32[1]{0}', space=sflag, size = 0x4, scoped, tag = 'scoped memory for tpu_custom_call.1']
    #allocation12 [shape = 'u8[8192]{0}', space=vmem, size = 0x2000, scoped, tag = 'input window, operand 4, single buffered']
    #allocation13 [shape = 'u8[512]{0}', space=vmem, size = 0x400, scoped, tag = 'input window, operand 5, single buffered']
    #allocation14 [shape = 's32[1]{0}', space=sflag, size = 0x4, scoped, tag = 'scoped memory for tpu_custom_call.1']
    #allocation15 [shape = 'u8[32768]{0}', space=vmem, size = 0x8000, scoped, tag = 'input window, operand 6, single buffered']
    #allocation16 [shape = 'u8[512]{0}', space=vmem, size = 0x400, scoped, tag = 'input window, operand 7, single buffered']
    #allocation17 [shape = 's32[1]{0}', space=sflag, size = 0x4, scoped, tag = 'scoped memory for tpu_custom_call.1']
    #allocation18 [shape = 'u8[512]{0}', space=vmem, size = 0x400, scoped, tag = 'input window, operand 8, single buffered']
    #allocation19 [shape = 'u8[512]{0}', space=vmem, size = 0x400, scoped, tag = 'input window, operand 9, single buffered']
    #allocation20 [shape = 's32[1]{0}', space=sflag, size = 0x4, scoped, tag = 'scoped memory for tpu_custom_call.1']
    #allocation21 [shape = 'u8[512]{0}', space=vmem, size = 0x400, scoped, tag = 'input window, operand 10, single buffered']
    #allocation22 [shape = 'u8[512]{0}', space=vmem, size = 0x400, scoped, tag = 'input window, operand 11, single buffered']
    #allocation23 [shape = 's32[1]{0}', space=sflag, size = 0x4, scoped, tag = 'scoped memory for tpu_custom_call.1']
    #allocation24 [shape = 'u8[8192]{0}', space=vmem, size = 0x2000, scoped, tag = 'output window, operand 0']
    #allocation25 [shape = 'u8[16384]{0}', space=vmem, size = 0x4000, scoped, tag = 'output window, operand 1']
    #allocation26 [shape = 's32[2]{0}', space=sflag, size = 0x8, scoped, tag = 'scoped memory for tpu_custom_call.1']
    %19 = vsyncpa [#allocation5], 0
    %s20 = scalar_lea.sflag [#allocation5], 1
    %21 = vsyncpa %s20, 0
    %22 = vsyncpa [#allocation8], 0
    %23 = vsyncpa [#allocation11], 0
    %24 = vsyncpa [#allocation14], 0
    %25 = vsyncpa [#allocation17], 0
    %26 = vsyncpa [#allocation20], 0
    %27 = vsyncpa [#allocation23], 0
    %28 = vsyncpa [#allocation6], 0
    %s29 = scalar_lea.sflag [#allocation6], 1
    %30 = vsyncpa %s29, 0
    %31 = vsyncpa [#allocation26], 0
    %s32 = scalar_lea.sflag [#allocation26], 1
    %33 = vsyncpa %s32, 0
    loop: start=0, step=1, limit=4
    $region2: #{tpu_custom_call.1} parent=1 // loop_pre_header
      _
    $region3: #{tpu_custom_call.1} parent=1 // loop_header
      %s35 = sphi 0, %s39
      %p36 = scmp.ge.s32.totalorder %s35, 4
      %s45 = sphi 0, %s47
      %s48 = sphi 0, %s45
      %s49 = sphi 0, %s48
      %s65 = sphi 0, %s49
      %s69 = sphi 0, %s69
      %s71 = sphi 0, %s69
      %s72 = sphi 0, %s71
      %s86 = sphi 0, %s72
      %s90 = sphi 0, %s90
      %s92 = sphi 0, %s90
      %s93 = sphi 0, %s92
      %s107 = sphi 0, %s93
      %s111 = sphi 0, %s111
      %s113 = sphi 0, %s111
      %s114 = sphi 0, %s113
      %s128 = sphi 0, %s114
      %s132 = sphi 0, %s132
      %s134 = sphi 0, %s132
      %s135 = sphi 0, %s134
      %s149 = sphi 0, %s135
      %s153 = sphi 0, %s153
      %s155 = sphi 0, %s153
      %s156 = sphi 0, %s155
      %s170 = sphi 0, %s156
      %s174 = sphi 0, %s174
      %s176 = sphi 0, %s174
      %s177 = sphi 0, %s176
      %s191 = sphi 0, %s177
      %s195 = sphi 0, %s195
      %s197 = sphi 0, %s195
      %s198 = sphi 0, %s197
      %s212 = sphi 0, %s198
      %s216 = sphi 0, %s216
      %s218 = sphi 0, %s216
      %s219 = sphi 0, %s218
      %s233 = sphi 0, %s219
      %s237 = sphi 0, %s237
      %s239 = sphi 0, %s237
      %s240 = sphi 0, %s239
      %s254 = sphi 0, %s240
      %s258 = sphi 0, %s258
      %s260 = sphi 0, %s258
      %s261 = sphi 0, %s260
      %s275 = sphi 0, %s261
      %s279 = sphi 0, %s279
      %s281 = sphi 0, %s279
      %s282 = sphi 0, %s281
      %s296 = sphi 0, %s282
      %s302 = sphi 0, %s304
      %s305 = sphi 0, %s302
      %s306 = sphi 0, %s305
      %s322 = sphi 0, %s306
      %s328 = sphi 0, %s330
      %s331 = sphi 0, %s328
      %s332 = sphi 0, %s331
      %s348 = sphi 0, %s332
    $region4: #{tpu_custom_call.1} parent=1 // loop_header_branch
      %38 = sbr.rel (%p36) target = $region8
    $region5: #{tpu_custom_call.1} parent=1 // loop_body
      %s40 = ssub.s32 %s35, 1
      %s41 = ssub.s32 %s35, 2
      %s42 = sadd.s32 %s35, 1
      %s43 = ssub.s32 %s35, %s42
      %p44 = scmp.eq.s32.totalorder %s43, 0
      %s46 = sadd.s32 %s45, 1
      %s47 = scalar_select %p44, %s45, %s46
      %p50 = pneg %p44
      %p51 = scmp.eq.s32.totalorder %s35, 1
      %p52 = por %p50, %p51
      %p53 = scmp.ne.s32.totalorder %s45, %s48
      %p54 = scmp.eq.s32.totalorder %s35, 0
      %p55 = por %p53, %p54
      %p56 = scmp.ne.s32.totalorder %s45, %s48
      %p57 = scmp.eq.s32.totalorder %s40, 1
      %p58 = por %p56, %p57
      %p59 = scmp.ne.s32.totalorder %s48, %s49
      %p60 = scmp.eq.s32.totalorder %s40, 0
      %p61 = por %p59, %p60
      %p62 = scmp.ne.s32.totalorder %s48, %s49
      %p63 = scmp.eq.s32.totalorder %s41, 1
      %p64 = por %p62, %p63
      %p66 = scmp.ne.s32.totalorder %s49, %s65
      %p67 = scmp.eq.s32.totalorder %s41, 0
      %p68 = por %p66, %p67
      %s70 = sadd.s32 %s69, 1
      %p73 = scmp.eq.s32.totalorder %s35, 1
      %p74 = scmp.ne.s32.totalorder %s69, %s71
      %p75 = scmp.eq.s32.totalorder %s35, 0
      %p76 = por %p74, %p75
      %p77 = scmp.ne.s32.totalorder %s69, %s71
      %p78 = scmp.eq.s32.totalorder %s40, 1
      %p79 = por %p77, %p78
      %p80 = scmp.ne.s32.totalorder %s71, %s72
      %p81 = scmp.eq.s32.totalorder %s40, 0
      %p82 = por %p80, %p81
      %p83 = scmp.ne.s32.totalorder %s71, %s72
      %p84 = scmp.eq.s32.totalorder %s41, 1
      %p85 = por %p83, %p84
      %p87 = scmp.ne.s32.totalorder %s72, %s86
      %p88 = scmp.eq.s32.totalorder %s41, 0
      %p89 = por %p87, %p88
      %s91 = sadd.s32 %s90, 1
      %p94 = scmp.eq.s32.totalorder %s35, 1
      %p95 = scmp.ne.s32.totalorder %s90, %s92
      %p96 = scmp.eq.s32.totalorder %s35, 0
      %p97 = por %p95, %p96
      %p98 = scmp.ne.s32.totalorder %s90, %s92
      %p99 = scmp.eq.s32.totalorder %s40, 1
      %p100 = por %p98, %p99
      %p101 = scmp.ne.s32.totalorder %s92, %s93
      %p102 = scmp.eq.s32.totalorder %s40, 0
      %p103 = por %p101, %p102
      %p104 = scmp.ne.s32.totalorder %s92, %s93
      %p105 = scmp.eq.s32.totalorder %s41, 1
      %p106 = por %p104, %p105
      %p108 = scmp.ne.s32.totalorder %s93, %s107
      %p109 = scmp.eq.s32.totalorder %s41, 0
      %p110 = por %p108, %p109
      %s112 = sadd.s32 %s111, 1
      %p115 = scmp.eq.s32.totalorder %s35, 1
      %p116 = scmp.ne.s32.totalorder %s111, %s113
      %p117 = scmp.eq.s32.totalorder %s35, 0
      %p118 = por %p116, %p117
      %p119 = scmp.ne.s32.totalorder %s111, %s113
      %p120 = scmp.eq.s32.totalorder %s40, 1
      %p121 = por %p119, %p120
      %p122 = scmp.ne.s32.totalorder %s113, %s114
      %p123 = scmp.eq.s32.totalorder %s40, 0
      %p124 = por %p122, %p123
      %p125 = scmp.ne.s32.totalorder %s113, %s114
      %p126 = scmp.eq.s32.totalorder %s41, 1
      %p127 = por %p125, %p126
      %p129 = scmp.ne.s32.totalorder %s114, %s128
      %p130 = scmp.eq.s32.totalorder %s41, 0
      %p131 = por %p129, %p130
      %s133 = sadd.s32 %s132, 1
      %p136 = scmp.eq.s32.totalorder %s35, 1
      %p137 = scmp.ne.s32.totalorder %s132, %s134
      %p138 = scmp.eq.s32.totalorder %s35, 0
      %p139 = por %p137, %p138
      %p140 = scmp.ne.s32.totalorder %s132, %s134
      %p141 = scmp.eq.s32.totalorder %s40, 1
      %p142 = por %p140, %p141
      %p143 = scmp.ne.s32.totalorder %s134, %s135
      %p144 = scmp.eq.s32.totalorder %s40, 0
      %p145 = por %p143, %p144
      %p146 = scmp.ne.s32.totalorder %s134, %s135
      %p147 = scmp.eq.s32.totalorder %s41, 1
      %p148 = por %p146, %p147
      %p150 = scmp.ne.s32.totalorder %s135, %s149
      %p151 = scmp.eq.s32.totalorder %s41, 0
      %p152 = por %p150, %p151
      %s154 = sadd.s32 %s153, 1
      %p157 = scmp.eq.s32.totalorder %s35, 1
      %p158 = scmp.ne.s32.totalorder %s153, %s155
      %p159 = scmp.eq.s32.totalorder %s35, 0
      %p160 = por %p158, %p159
      %p161 = scmp.ne.s32.totalorder %s153, %s155
      %p162 = scmp.eq.s32.totalorder %s40, 1
      %p163 = por %p161, %p162
      %p164 = scmp.ne.s32.totalorder %s155, %s156
      %p165 = scmp.eq.s32.totalorder %s40, 0
      %p166 = por %p164, %p165
      %p167 = scmp.ne.s32.totalorder %s155, %s156
      %p168 = scmp.eq.s32.totalorder %s41, 1
      %p169 = por %p167, %p168
      %p171 = scmp.ne.s32.totalorder %s156, %s170
      %p172 = scmp.eq.s32.totalorder %s41, 0
      %p173 = por %p171, %p172
      %s175 = sadd.s32 %s174, 1
      %p178 = scmp.eq.s32.totalorder %s35, 1
      %p179 = scmp.ne.s32.totalorder %s174, %s176
      %p180 = scmp.eq.s32.totalorder %s35, 0
      %p181 = por %p179, %p180
      %p182 = scmp.ne.s32.totalorder %s174, %s176
      %p183 = scmp.eq.s32.totalorder %s40, 1
      %p184 = por %p182, %p183
      %p185 = scmp.ne.s32.totalorder %s176, %s177
      %p186 = scmp.eq.s32.totalorder %s40, 0
      %p187 = por %p185, %p186
      %p188 = scmp.ne.s32.totalorder %s176, %s177
      %p189 = scmp.eq.s32.totalorder %s41, 1
      %p190 = por %p188, %p189
      %p192 = scmp.ne.s32.totalorder %s177, %s191
      %p193 = scmp.eq.s32.totalorder %s41, 0
      %p194 = por %p192, %p193
      %s196 = sadd.s32 %s195, 1
      %p199 = scmp.eq.s32.totalorder %s35, 1
      %p200 = scmp.ne.s32.totalorder %s195, %s197
      %p201 = scmp.eq.s32.totalorder %s35, 0
      %p202 = por %p200, %p201
      %p203 = scmp.ne.s32.totalorder %s195, %s197
      %p204 = scmp.eq.s32.totalorder %s40, 1
      %p205 = por %p203, %p204
      %p206 = scmp.ne.s32.totalorder %s197, %s198
      %p207 = scmp.eq.s32.totalorder %s40, 0
      %p208 = por %p206, %p207
      %p209 = scmp.ne.s32.totalorder %s197, %s198
      %p210 = scmp.eq.s32.totalorder %s41, 1
      %p211 = por %p209, %p210
      %p213 = scmp.ne.s32.totalorder %s198, %s212
      %p214 = scmp.eq.s32.totalorder %s41, 0
      %p215 = por %p213, %p214
      %s217 = sadd.s32 %s216, 1
      %p220 = scmp.eq.s32.totalorder %s35, 1
      %p221 = scmp.ne.s32.totalorder %s216, %s218
      %p222 = scmp.eq.s32.totalorder %s35, 0
      %p223 = por %p221, %p222
      %p224 = scmp.ne.s32.totalorder %s216, %s218
      %p225 = scmp.eq.s32.totalorder %s40, 1
      %p226 = por %p224, %p225
      %p227 = scmp.ne.s32.totalorder %s218, %s219
      %p228 = scmp.eq.s32.totalorder %s40, 0
      %p229 = por %p227, %p228
      %p230 = scmp.ne.s32.totalorder %s218, %s219
      %p231 = scmp.eq.s32.totalorder %s41, 1
      %p232 = por %p230, %p231
      %p234 = scmp.ne.s32.totalorder %s219, %s233
      %p235 = scmp.eq.s32.totalorder %s41, 0
      %p236 = por %p234, %p235
      %s238 = sadd.s32 %s237, 1
      %p241 = scmp.eq.s32.totalorder %s35, 1
      %p242 = scmp.ne.s32.totalorder %s237, %s239
      %p243 = scmp.eq.s32.totalorder %s35, 0
      %p244 = por %p242, %p243
      %p245 = scmp.ne.s32.totalorder %s237, %s239
      %p246 = scmp.eq.s32.totalorder %s40, 1
      %p247 = por %p245, %p246
      %p248 = scmp.ne.s32.totalorder %s239, %s240
      %p249 = scmp.eq.s32.totalorder %s40, 0
      %p250 = por %p248, %p249
      %p251 = scmp.ne.s32.totalorder %s239, %s240
      %p252 = scmp.eq.s32.totalorder %s41, 1
      %p253 = por %p251, %p252
      %p255 = scmp.ne.s32.totalorder %s240, %s254
      %p256 = scmp.eq.s32.totalorder %s41, 0
      %p257 = por %p255, %p256
      %s259 = sadd.s32 %s258, 1
      %p262 = scmp.eq.s32.totalorder %s35, 1
      %p263 = scmp.ne.s32.totalorder %s258, %s260
      %p264 = scmp.eq.s32.totalorder %s35, 0
      %p265 = por %p263, %p264
      %p266 = scmp.ne.s32.totalorder %s258, %s260
      %p267 = scmp.eq.s32.totalorder %s40, 1
      %p268 = por %p266, %p267
      %p269 = scmp.ne.s32.totalorder %s260, %s261
      %p270 = scmp.eq.s32.totalorder %s40, 0
      %p271 = por %p269, %p270
      %p272 = scmp.ne.s32.totalorder %s260, %s261
      %p273 = scmp.eq.s32.totalorder %s41, 1
      %p274 = por %p272, %p273
      %p276 = scmp.ne.s32.totalorder %s261, %s275
      %p277 = scmp.eq.s32.totalorder %s41, 0
      %p278 = por %p276, %p277
      %s280 = sadd.s32 %s279, 1
      %p283 = scmp.eq.s32.totalorder %s35, 1
      %p284 = scmp.ne.s32.totalorder %s279, %s281
      %p285 = scmp.eq.s32.totalorder %s35, 0
      %p286 = por %p284, %p285
      %p287 = scmp.ne.s32.totalorder %s279, %s281
      %p288 = scmp.eq.s32.totalorder %s40, 1
      %p289 = por %p287, %p288
      %p290 = scmp.ne.s32.totalorder %s281, %s282
      %p291 = scmp.eq.s32.totalorder %s40, 0
      %p292 = por %p290, %p291
      %p293 = scmp.ne.s32.totalorder %s281, %s282
      %p294 = scmp.eq.s32.totalorder %s41, 1
      %p295 = por %p293, %p294
      %p297 = scmp.ne.s32.totalorder %s282, %s296
      %p298 = scmp.eq.s32.totalorder %s41, 0
      %p299 = por %p297, %p298
      %s300 = ssub.s32 %s35, %s42
      %p301 = scmp.eq.s32.totalorder %s300, 0
      %s303 = sadd.s32 %s302, 1
      %s304 = scalar_select %p301, %s302, %s303
      %p307 = pneg %p301
      %p308 = scmp.eq.s32.totalorder %s35, 1
      %p309 = por %p307, %p308
      %p310 = scmp.ne.s32.totalorder %s302, %s305
      %p311 = scmp.eq.s32.totalorder %s35, 0
      %p312 = por %p310, %p311
      %p313 = scmp.ne.s32.totalorder %s302, %s305
      %p314 = scmp.eq.s32.totalorder %s40, 1
      %p315 = por %p313, %p314
      %p316 = scmp.ne.s32.totalorder %s305, %s306
      %p317 = scmp.eq.s32.totalorder %s40, 0
      %p318 = por %p316, %p317
      %p319 = scmp.ne.s32.totalorder %s305, %s306
      %p320 = scmp.eq.s32.totalorder %s41, 1
      %p321 = por %p319, %p320
      %p323 = scmp.ne.s32.totalorder %s306, %s322
      %p324 = scmp.eq.s32.totalorder %s41, 0
      %p325 = por %p323, %p324
      %s326 = ssub.s32 %s35, %s42
      %p327 = scmp.eq.s32.totalorder %s326, 0
      %s329 = sadd.s32 %s328, 1
      %s330 = scalar_select %p327, %s328, %s329
      %p333 = pneg %p327
      %p334 = scmp.eq.s32.totalorder %s35, 1
      %p335 = por %p333, %p334
      %p336 = scmp.ne.s32.totalorder %s328, %s331
      %p337 = scmp.eq.s32.totalorder %s35, 0
      %p338 = por %p336, %p337
      %p339 = scmp.ne.s32.totalorder %s328, %s331
      %p340 = scmp.eq.s32.totalorder %s40, 1
      %p341 = por %p339, %p340
      %p342 = scmp.ne.s32.totalorder %s331, %s332
      %p343 = scmp.eq.s32.totalorder %s40, 0
      %p344 = por %p342, %p343
      %p345 = scmp.ne.s32.totalorder %s331, %s332
      %p346 = scmp.eq.s32.totalorder %s41, 1
      %p347 = por %p345, %p346
      %p349 = scmp.ne.s32.totalorder %s332, %s348
      %p350 = scmp.eq.s32.totalorder %s41, 0
      %p351 = por %p349, %p350
      %p352 = scmp.le.s32.totalorder 1, %s35
      %p353 = scmp.lt.s32.totalorder %s35, 3
      %p354 = pnand %p352, %p353
      %p355 = pneg %p354
      // Predicated region
      $region9: #{tpu_custom_call.1} parent=5 // pred_check
        _
      $region10: #{tpu_custom_call.1} parent=5 // pred_check_branch
        %357 = sbr.rel (%p354) target = $region12
      $region11: #{tpu_custom_call.1} parent=5 // pred_region
        %s358 = ssub.s32 %s35, 1
        // Predicated region
        $region13: #{tpu_custom_call.1} parent=11 // pred_check
          %p359 = pneg %p82
        $region14: #{tpu_custom_call.1} parent=11 // pred_check_branch
          %361 = sbr.rel (%p359) target = $region16
        $region15: #{tpu_custom_call.1} parent=11 // pred_region
          %s363 = ssub.s32 256, 256
          %364 = vsyncadd [#allocation8], %s363
          %s365 = sshll.u32 [#allocation7], 4
          %s366 = int_to_ptr.vmem [resolvable:$true] %s365
          %371 = dma.hbm_to_vmem [thread:$0]  %s1, 256, %s366, [#allocation8], 64, 64, 4
        $region16: #{tpu_custom_call.1} parent=11 // pred_fallthru
          _
        // Predicated region
        $region17: #{tpu_custom_call.1} parent=11 // pred_check
          %p372 = pneg %p103
        $region18: #{tpu_custom_call.1} parent=11 // pred_check_branch
          %374 = sbr.rel (%p372) target = $region20
        $region19: #{tpu_custom_call.1} parent=11 // pred_region
          %s376 = ssub.s32 256, 256
          %377 = vsyncadd [#allocation8], %s376
          %s378 = sshll.u32 [#allocation9], 4
          %s379 = int_to_ptr.vmem [resolvable:$true] %s378
          %384 = dma.hbm_to_vmem [thread:$0]  %s2, 256, %s379, [#allocation8], 64, 64, 4
        $region20: #{tpu_custom_call.1} parent=11 // pred_fallthru
          _
        // Predicated region
        $region21: #{tpu_custom_call.1} parent=11 // pred_check
          %p385 = pneg %p124
        $region22: #{tpu_custom_call.1} parent=11 // pred_check_branch
          %387 = sbr.rel (%p385) target = $region24
        $region23: #{tpu_custom_call.1} parent=11 // pred_region
          %s389 = ssub.s32 16, 16
          %390 = vsyncadd [#allocation11], %s389
          %s392 = sshll.u32 [#allocation10], 4
          %s393 = int_to_ptr.vmem [resolvable:$true] %s392
          %395 = dma.hbm_to_vmem [thread:$0]  %s3, 16, %s393, [#allocation11]
        $region24: #{tpu_custom_call.1} parent=11 // pred_fallthru
          _
        // Predicated region
        $region25: #{tpu_custom_call.1} parent=11 // pred_check
          %p396 = pneg %p145
        $region26: #{tpu_custom_call.1} parent=11 // pred_check_branch
          %398 = sbr.rel (%p396) target = $region28
        $region27: #{tpu_custom_call.1} parent=11 // pred_region
          %s400 = ssub.s32 256, 256
          %401 = vsyncadd [#allocation11], %s400
          %s402 = sshll.u32 [#allocation12], 4
          %s403 = int_to_ptr.vmem [resolvable:$true] %s402
          %408 = dma.hbm_to_vmem [thread:$0]  %s4, 256, %s403, [#allocation11], 64, 64, 4
        $region28: #{tpu_custom_call.1} parent=11 // pred_fallthru
          _
        // Predicated region
        $region29: #{tpu_custom_call.1} parent=11 // pred_check
          %p409 = pneg %p166
        $region30: #{tpu_custom_call.1} parent=11 // pred_check_branch
          %411 = sbr.rel (%p409) target = $region32
        $region31: #{tpu_custom_call.1} parent=11 // pred_region
          %s413 = ssub.s32 16, 16
          %414 = vsyncadd [#allocation14], %s413
          %s416 = sshll.u32 [#allocation13], 4
          %s417 = int_to_ptr.vmem [resolvable:$true] %s416
          %419 = dma.hbm_to_vmem [thread:$0]  %s5, 16, %s417, [#allocation14]
        $region32: #{tpu_custom_call.1} parent=11 // pred_fallthru
          _
        // Predicated region
        $region33: #{tpu_custom_call.1} parent=11 // pred_check
          %p420 = pneg %p187
        $region34: #{tpu_custom_call.1} parent=11 // pred_check_branch
          %422 = sbr.rel (%p420) target = $region36
        $region35: #{tpu_custom_call.1} parent=11 // pred_region
          %s424 = ssub.s32 1024, 1024
          %425 = vsyncadd [#allocation14], %s424
          %s426 = sshll.u32 [#allocation15], 4
          %s427 = int_to_ptr.vmem [resolvable:$true] %s426
          %432 = dma.hbm_to_vmem [thread:$0]  %s6, 1024, %s427, [#allocation14], 64, 64, 4
        $region36: #{tpu_custom_call.1} parent=11 // pred_fallthru
          _
        // Predicated region
        $region37: #{tpu_custom_call.1} parent=11 // pred_check
          %p433 = pneg %p208
        $region38: #{tpu_custom_call.1} parent=11 // pred_check_branch
          %435 = sbr.rel (%p433) target = $region40
        $region39: #{tpu_custom_call.1} parent=11 // pred_region
          %s437 = ssub.s32 16, 16
          %438 = vsyncadd [#allocation17], %s437
          %s440 = sshll.u32 [#allocation16], 4
          %s441 = int_to_ptr.vmem [resolvable:$true] %s440
          %443 = dma.hbm_to_vmem [thread:$0]  %s7, 16, %s441, [#allocation17]
        $region40: #{tpu_custom_call.1} parent=11 // pred_fallthru
          _
        // Predicated region
        $region41: #{tpu_custom_call.1} parent=11 // pred_check
          %p444 = pneg %p229
        $region42: #{tpu_custom_call.1} parent=11 // pred_check_branch
          %446 = sbr.rel (%p444) target = $region44
        $region43: #{tpu_custom_call.1} parent=11 // pred_region
          %s448 = ssub.s32 16, 16
          %449 = vsyncadd [#allocation17], %s448
          %s451 = sshll.u32 [#allocation18], 4
          %s452 = int_to_ptr.vmem [resolvable:$true] %s451
          %454 = dma.hbm_to_vmem [thread:$0]  %s8, 16, %s452, [#allocation17]
        $region44: #{tpu_custom_call.1} parent=11 // pred_fallthru
          _
        // Predicated region
        $region45: #{tpu_custom_call.1} parent=11 // pred_check
          %p455 = pneg %p250
        $region46: #{tpu_custom_call.1} parent=11 // pred_check_branch
          %457 = sbr.rel (%p455) target = $region48
        $region47: #{tpu_custom_call.1} parent=11 // pred_region
          %s459 = ssub.s32 16, 16
          %460 = vsyncadd [#allocation20], %s459
          %s462 = sshll.u32 [#allocation19], 4
          %s463 = int_to_ptr.vmem [resolvable:$true] %s462
          %465 = dma.hbm_to_vmem [thread:$0]  %s9, 16, %s463, [#allocation20]
        $region48: #{tpu_custom_call.1} parent=11 // pred_fallthru
          _
        // Predicated region
        $region49: #{tpu_custom_call.1} parent=11 // pred_check
          %p466 = pneg %p271
        $region50: #{tpu_custom_call.1} parent=11 // pred_check_branch
          %468 = sbr.rel (%p466) target = $region52
        $region51: #{tpu_custom_call.1} parent=11 // pred_region
          %s470 = ssub.s32 16, 16
          %471 = vsyncadd [#allocation20], %s470
          %s473 = sshll.u32 [#allocation21], 4
          %s474 = int_to_ptr.vmem [resolvable:$true] %s473
          %476 = dma.hbm_to_vmem [thread:$0]  %s10, 16, %s474, [#allocation20]
        $region52: #{tpu_custom_call.1} parent=11 // pred_fallthru
          _
        // Predicated region
        $region53: #{tpu_custom_call.1} parent=11 // pred_check
          %p477 = pneg %p292
        $region54: #{tpu_custom_call.1} parent=11 // pred_check_branch
          %479 = sbr.rel (%p477) target = $region56
        $region55: #{tpu_custom_call.1} parent=11 // pred_region
          %s481 = ssub.s32 16, 16
          %482 = vsyncadd [#allocation23], %s481
          %s484 = sshll.u32 [#allocation22], 4
          %s485 = int_to_ptr.vmem [resolvable:$true] %s484
          %487 = dma.hbm_to_vmem [thread:$0]  %s11, 16, %s485, [#allocation23]
        $region56: #{tpu_custom_call.1} parent=11 // pred_fallthru
          _
      $region12: #{tpu_custom_call.1} parent=5 // pred_fallthru
        _
      %p488 = scmp.lt.s32.totalorder %s35, 2
      // Predicated region
      $region57: #{tpu_custom_call.1} parent=5 // pred_check
        %p489 = pneg %p488
      $region58: #{tpu_custom_call.1} parent=5 // pred_check_branch
        %491 = sbr.rel (%p489) target = $region60
      $region59: #{tpu_custom_call.1} parent=5 // pred_region
        // Predicated region
        $region61: #{tpu_custom_call.1} parent=59 // pred_check
          %p492 = pneg %p55
        $region62: #{tpu_custom_call.1} parent=59 // pred_check_branch
          %494 = sbr.rel (%p492) target = $region64
        $region63: #{tpu_custom_call.1} parent=59 // pred_region
          %s495 = sand.u32 %s45, 1
          %s496 = scalar_lea.sflag [#allocation5], %s495
          %s497 = sand.u32 %s45, 1
          %s498 = smul.addr %s497, 8
          %s499 = scalar_lea.vmem [#allocation4], %s498
          %s501 = ssub.s32 128, 128
          %502 = vsyncadd %s496, %s501
          %s503 = smul.addr %s35, 128
          %s504 = scalar_lea.hbm %s0, %s503
          %s506 = sshll.u32 %s499, 4
          %s507 = int_to_ptr.vmem [resolvable:$true] %s506
          %509 = dma.hbm_to_vmem [thread:$0]  %s504, 128, %s507, %s496
        $region64: #{tpu_custom_call.1} parent=59 // pred_fallthru
          _
      $region60: #{tpu_custom_call.1} parent=5 // pred_fallthru
        _
      %p510 = scmp.le.s32.totalorder 1, %s35
      %p511 = scmp.lt.s32.totalorder %s35, 3
      %p512 = pnand %p510, %p511
      %p513 = pneg %p512
      // Predicated region
      $region65: #{tpu_custom_call.1} parent=5 // pred_check
        _
      $region66: #{tpu_custom_call.1} parent=5 // pred_check_branch
        %515 = sbr.rel (%p512) target = $region68
      $region67: #{tpu_custom_call.1} parent=5 // pred_region
        %s516 = ssub.s32 %s35, 1
        %s517 = sand.u32 %s48, 1
        %s518 = scalar_lea.sflag [#allocation5], %s517
        %s519 = sand.u32 %s48, 1
        %s520 = smul.addr %s519, 8
        %s521 = scalar_lea.vmem [#allocation4], %s520
        // Predicated region
        $region69: #{tpu_custom_call.1} parent=67 // pred_check
          %p522 = pneg %p61
        $region70: #{tpu_custom_call.1} parent=67 // pred_check_branch
          %524 = sbr.rel (%p522) target = $region72
        $region71: #{tpu_custom_call.1} parent=67 // pred_region
          %525 = dma.done %s518, 128
        $region72: #{tpu_custom_call.1} parent=67 // pred_fallthru
          _
        // Predicated region
        $region73: #{tpu_custom_call.1} parent=67 // pred_check
          %p526 = pneg %p82
        $region74: #{tpu_custom_call.1} parent=67 // pred_check_branch
          %528 = sbr.rel (%p526) target = $region76
        $region75: #{tpu_custom_call.1} parent=67 // pred_region
          %529 = dma.done [#allocation8], 256
        $region76: #{tpu_custom_call.1} parent=67 // pred_fallthru
          _
        // Predicated region
        $region77: #{tpu_custom_call.1} parent=67 // pred_check
          %p530 = pneg %p103
        $region78: #{tpu_custom_call.1} parent=67 // pred_check_branch
          %532 = sbr.rel (%p530) target = $region80
        $region79: #{tpu_custom_call.1} parent=67 // pred_region
          %533 = dma.done [#allocation8], 256
        $region80: #{tpu_custom_call.1} parent=67 // pred_fallthru
          _
        // Predicated region
        $region81: #{tpu_custom_call.1} parent=67 // pred_check
          %p534 = pneg %p124
        $region82: #{tpu_custom_call.1} parent=67 // pred_check_branch
          %536 = sbr.rel (%p534) target = $region84
        $region83: #{tpu_custom_call.1} parent=67 // pred_region
          %537 = dma.done [#allocation11], 16
        $region84: #{tpu_custom_call.1} parent=67 // pred_fallthru
          _
        // Predicated region
        $region85: #{tpu_custom_call.1} parent=67 // pred_check
          %p538 = pneg %p145
        $region86: #{tpu_custom_call.1} parent=67 // pred_check_branch
          %540 = sbr.rel (%p538) target = $region88
        $region87: #{tpu_custom_call.1} parent=67 // pred_region
          %541 = dma.done [#allocation11], 256
        $region88: #{tpu_custom_call.1} parent=67 // pred_fallthru
          _
        // Predicated region
        $region89: #{tpu_custom_call.1} parent=67 // pred_check
          %p542 = pneg %p166
        $region90: #{tpu_custom_call.1} parent=67 // pred_check_branch
          %544 = sbr.rel (%p542) target = $region92
        $region91: #{tpu_custom_call.1} parent=67 // pred_region
          %545 = dma.done [#allocation14], 16
        $region92: #{tpu_custom_call.1} parent=67 // pred_fallthru
          _
        // Predicated region
        $region93: #{tpu_custom_call.1} parent=67 // pred_check
          %p546 = pneg %p187
        $region94: #{tpu_custom_call.1} parent=67 // pred_check_branch
          %548 = sbr.rel (%p546) target = $region96
        $region95: #{tpu_custom_call.1} parent=67 // pred_region
          %549 = dma.done [#allocation14], 1024
        $region96: #{tpu_custom_call.1} parent=67 // pred_fallthru
          _
        // Predicated region
        $region97: #{tpu_custom_call.1} parent=67 // pred_check
          %p550 = pneg %p208
        $region98: #{tpu_custom_call.1} parent=67 // pred_check_branch
          %552 = sbr.rel (%p550) target = $region100
        $region99: #{tpu_custom_call.1} parent=67 // pred_region
          %553 = dma.done [#allocation17], 16
        $region100: #{tpu_custom_call.1} parent=67 // pred_fallthru
          _
        // Predicated region
        $region101: #{tpu_custom_call.1} parent=67 // pred_check
          %p554 = pneg %p229
        $region102: #{tpu_custom_call.1} parent=67 // pred_check_branch
          %556 = sbr.rel (%p554) target = $region104
        $region103: #{tpu_custom_call.1} parent=67 // pred_region
          %557 = dma.done [#allocation17], 16
        $region104: #{tpu_custom_call.1} parent=67 // pred_fallthru
          _
        // Predicated region
        $region105: #{tpu_custom_call.1} parent=67 // pred_check
          %p558 = pneg %p250
        $region106: #{tpu_custom_call.1} parent=67 // pred_check_branch
          %560 = sbr.rel (%p558) target = $region108
        $region107: #{tpu_custom_call.1} parent=67 // pred_region
          %561 = dma.done [#allocation20], 16
        $region108: #{tpu_custom_call.1} parent=67 // pred_fallthru
          _
        // Predicated region
        $region109: #{tpu_custom_call.1} parent=67 // pred_check
          %p562 = pneg %p271
        $region110: #{tpu_custom_call.1} parent=67 // pred_check_branch
          %564 = sbr.rel (%p562) target = $region112
        $region111: #{tpu_custom_call.1} parent=67 // pred_region
          %565 = dma.done [#allocation20], 16
        $region112: #{tpu_custom_call.1} parent=67 // pred_fallthru
          _
        // Predicated region
        $region113: #{tpu_custom_call.1} parent=67 // pred_check
          %p566 = pneg %p292
        $region114: #{tpu_custom_call.1} parent=67 // pred_check_branch
          %568 = sbr.rel (%p566) target = $region116
        $region115: #{tpu_custom_call.1} parent=67 // pred_region
          %569 = dma.done [#allocation23], 16
        $region116: #{tpu_custom_call.1} parent=67 // pred_fallthru
          _
        %s570 = sand.u32 %s48, 1
        %s571 = scalar_lea.sflag [#allocation5], %s570
        %s572 = sand.u32 %s48, 1
        %s573 = smul.addr %s572, 8
        %s574 = scalar_lea.vmem [#allocation4], %s573
        %p575 = pneg %p61
        %p576 = pneg %p58
        %p577 = pneg %p82
        %p578 = pneg %p79
        %p579 = pneg %p103
        %p580 = pneg %p100
        %p581 = pneg %p124
        %p582 = pneg %p121
        %p583 = pneg %p145
        %p584 = pneg %p142
        %p585 = pneg %p166
        %p586 = pneg %p163
        %p587 = pneg %p187
        %p588 = pneg %p184
        %p589 = pneg %p208
        %p590 = pneg %p205
        %p591 = pneg %p229
        %p592 = pneg %p226
        %p593 = pneg %p250
        %p594 = pneg %p247
        %p595 = pneg %p271
        %p596 = pneg %p268
        %p597 = pneg %p292
        %p598 = pneg %p289
        %p599 = pneg %p318
        %p600 = pneg %p315
        %s601 = sand.u32 %s305, 1
        %s602 = scalar_lea.sflag [#allocation6], %s601
        %s603 = sand.u32 %s305, 1
        %s604 = smul.addr %s603, 8
        %s605 = scalar_lea.vmem [#allocation24], %s604
        %p606 = pneg %p344
        %p607 = pneg %p341
        %s608 = sand.u32 %s331, 1
        %s609 = scalar_lea.sflag [#allocation26], %s608
        %s610 = sand.u32 %s331, 1
        %s611 = smul.addr %s610, 16
        %s612 = scalar_lea.vmem [#allocation25], %s611
        %v614 = vld [vmem:[%s521] sm:$0xff]
        %v615 = vld [vmem:[#allocation18] sm:$0x1]
        %v616 = vld [vmem:[#allocation19] sm:$0x1]
        %vm617 = vcmask 261120
        %v618 = vsel %vm617, %v614, 0.0
        %619 = vadd.xlane.f32.xlu0 %v618
        %v620 = vpop.xlane.xlu0 %619
        %v621 = vrcp.pop 32.0
        %v622 = vmul.f32 %v620, %v621
        %v623 = vsub.f32 %v614, %v622
        %v624 = vmul.f32 %v623, %v623
        %v625 = vsel %vm617, %v624, 0.0
        %626 = vadd.xlane.f32.xlu0 %v625
        %v627 = vpop.xlane.xlu0 %626
        %v628 = vmul.f32 %v627, %v621
        %v629 = vadd.f32 %v628, 1e-05
        %v630 = vrsqrt.pop %v629
        %v631 = vmul.f32 %v623, %v630
        %v633 = vlaneseq
        %v634 = vshrl.u32 %v633, 7
        %v635 = vsub.s32 0, %v634
        %v636 = vrot.slane %v615, %v635
        %v638 = vmul.f32 %v631, %v636
        %v640 = vlaneseq
        %v641 = vshrl.u32 %v640, 7
        %v642 = vsub.s32 0, %v641
        %v643 = vrot.slane %v616, %v642
        %v645 = vadd.f32 %v638, %v643
        %v646 = vpack.c.bf16 %v645, %v645
        %v647 = vld [vmem:[#allocation7] sm:$0xf]
        %v648 = vld [vmem:[#allocation7 + $0x4] sm:$0xf]
        %v649 = vld [vmem:[#allocation7 + $0x8] sm:$0xf]
        %v650 = vld [vmem:[#allocation7 + $0xc] sm:$0xf]
        %v655 = vunpack.c.l.b16 %v647
        %v656 = vunpack.c.l.b16 %v648
        %v657 = vunpack.c.l.b16 %v649
        %v658 = vunpack.c.l.b16 %v650
        %v659 = vpack.c.b16 %v656, %v655
        %v660 = vpack.c.b16 %v658, %v657
        %v664 = vsel %vm617, %v646, 0
        %666 = vmatprep.subr.bf16.mxu0 0
        %667 = vmatpush1.bf16.msra.mxu0 %v659
        %668 = vmatprep.subr.bf16.mxu0 0
        %669 = vmatpush1.bf16.msra.mxu0 %v660
        %670 = vmatprep.subr.bf16.mxu0 0
        %671 = vmatpush1.bf16.msra.mxu0 0
        %672 = vmatprep.subr.bf16.mxu0 0
        %673 = vmatpush1.bf16.msra.mxu0 0
        %674 = vmatprep.subr.bf16.mxu0 0
        %675 = vmatpush1.bf16.msra.mxu0 0
        %676 = vmatprep.subr.bf16.mxu0 0
        %677 = vmatpush1.bf16.msra.mxu0 0
        %678 = vmatprep.subr.bf16.mxu0 0
        %679 = vmatpush1.bf16.msra.mxu0 0
        %680 = vmatprep.subr.bf16.mxu0 0
        %681 = vmatpush1.bf16.msra.mxu0 0
        %682 = vmatprep.subr.bf16.mxu0 0
        %683 = vmatpush1.bf16.msra.mxu0 0
        %684 = vmatprep.subr.bf16.mxu0 0
        %685 = vmatpush1.bf16.msra.mxu0 0
        %686 = vmatprep.subr.bf16.mxu0 0
        %687 = vmatpush1.bf16.msra.mxu0 0
        %688 = vmatprep.subr.bf16.mxu0 0
        %689 = vmatpush1.bf16.msra.mxu0 0
        %690 = vmatprep.subr.bf16.mxu0 0
        %691 = vmatpush1.bf16.msra.mxu0 0
        %692 = vmatprep.subr.bf16.mxu0 0
        %693 = vmatpush1.bf16.msra.mxu0 0
        %694 = vmatprep.subr.bf16.mxu0 0
        %695 = vmatpush1.bf16.msra.mxu0 0
        %696 = vmatprep.subr.bf16.mxu0 0
        %697 = vmatpush1.bf16.msra.mxu0 0
        %698 = vmatprep.mubr.bf16.mxu0 0
        %699 = vmatmul.mubr.bf16.gmra.mrb[0].mxu0 %v664
        %v700 = vpop.f32.mrb[0].mxu0
        %v701 = vadd.f32 0.0, %v700
        %v702 = vpop.f32.mrb[0].mxu0
        %v703 = vpop.f32.mrb[0].mxu0
        %v704 = vpop.f32.mrb[0].mxu0
        %705 = vdwg.mxu0
        %v706 = vpack.c.bf16 %v701, %v701
        %vm707 = vcmask 781312
        %708 = vst.msk [vmem:[#allocation2] sm:$0xf] %vm707, %v706
        %v709 = vld [vmem:[#allocation2] sm:$0xf]
        %v711 = vunpack.c.l.b16 %v709
        %v712 = vpack.c.b16 %v711, %v711
        %713 = vrot.lane.b32.xlu0 %v712, 96
        %v714 = vpop.permute.xlu0 %713
        %vm715 = vcmask 64512
        %v717 = vsel %vm715, %v709, 0
        %v720 = vsel %vm715, %v714, 0
        %722 = vmatprep.subr.bf16.mxu0 0
        %723 = vmatpush1.bf16.xpose.msra.mxu0 %v720
        %724 = vmatprep.subr.bf16.mxu0 0
        %725 = vmatpush1.bf16.xpose.msra.mxu0 0
        %726 = vmatprep.subr.bf16.mxu0 0
        %727 = vmatpush1.bf16.xpose.msra.mxu0 0
        %728 = vmatprep.subr.bf16.mxu0 0
        %729 = vmatpush1.bf16.xpose.msra.mxu0 0
        %730 = vmatprep.subr.bf16.mxu0 0
        %731 = vmatpush1.bf16.xpose.msra.mxu0 0
        %732 = vmatprep.subr.bf16.mxu0 0
        %733 = vmatpush1.bf16.xpose.msra.mxu0 0
        %734 = vmatprep.subr.bf16.mxu0 0
        %735 = vmatpush1.bf16.xpose.msra.mxu0 0
        %736 = vmatprep.subr.bf16.mxu0 0
        %737 = vmatpush1.bf16.xpose.msra.mxu0 0
        %738 = vmatprep.subr.bf16.mxu0 0
        %739 = vmatpush1.bf16.xpose.msra.mxu0 0
        %740 = vmatprep.subr.bf16.mxu0 0
        %741 = vmatpush1.bf16.xpose.msra.mxu0 0
        %742 = vmatprep.subr.bf16.mxu0 0
        %743 = vmatpush1.bf16.xpose.msra.mxu0 0
        %744 = vmatprep.subr.bf16.mxu0 0
        %745 = vmatpush1.bf16.xpose.msra.mxu0 0
        %746 = vmatprep.subr.bf16.mxu0 0
        %747 = vmatpush1.bf16.xpose.msra.mxu0 0
        %748 = vmatprep.subr.bf16.mxu0 0
        %749 = vmatpush1.bf16.xpose.msra.mxu0 0
        %750 = vmatprep.subr.bf16.mxu0 0
        %751 = vmatpush1.bf16.xpose.msra.mxu0 0
        %752 = vmatprep.subr.bf16.mxu0 0
        %753 = vmatpush1.bf16.xpose.msra.mxu0 0
        %754 = vmatprep.mubr.bf16.mxu0 0
        %755 = vmatmul.mubr.bf16.gmra.mrb[0].mxu0 %v717
        %v756 = vpop.f32.mrb[0].mxu0
        %v757 = vadd.f32 0.0, %v756
        %v758 = vpop.f32.mrb[0].mxu0
        %v759 = vpop.f32.mrb[0].mxu0
        %v760 = vpop.f32.mrb[0].mxu0
        %761 = vdwg.mxu0
        %v762 = vsel %vm715, %v757, -inf
        %763 = vmax.xlane.f32.xlu0 %v762
        %v764 = vpop.xlane.xlu0 %763
        %v765 = vsub.f32 %v757, %v764
        %v766 = vmul.f32 %v765, 1.442695
        %v767 = vpow.pop %v766
        %v768 = vsel %vm715, %v767, 0.0
        %769 = vadd.xlane.f32.xlu0 %v768
        %v770 = vpop.xlane.xlu0 %769
        %v771 = vrcp.pop %v770
        %v772 = vmul.f32 %v767, %v771
        %v773 = vpack.c.bf16 %v772, %v772
        %vm774 = vcmask 60416
        %775 = vst.msk [vmem:[%s612] sm:$0xf] %vm774, %v773
        %776 = vrot.lane.b32.xlu0 %v712, 64
        %v777 = vpop.permute.xlu0 %776
        %v779 = vsel %vm715, %v773, 0
        %vm781 = vcmask 1043456
        %v783 = vsel %vm781, %v777, 0
        %785 = vmatprep.subr.bf16.mxu0 0
        %786 = vmatpush1.bf16.msra.mxu0 %v783
        %787 = vmatprep.subr.bf16.mxu0 0
        %788 = vmatpush1.bf16.msra.mxu0 0
        %789 = vmatprep.subr.bf16.mxu0 0
        %790 = vmatpush1.bf16.msra.mxu0 0
        %791 = vmatprep.subr.bf16.mxu0 0
        %792 = vmatpush1.bf16.msra.mxu0 0
        %793 = vmatprep.subr.bf16.mxu0 0
        %794 = vmatpush1.bf16.msra.mxu0 0
        %795 = vmatprep.subr.bf16.mxu0 0
        %796 = vmatpush1.bf16.msra.mxu0 0
        %797 = vmatprep.subr.bf16.mxu0 0
        %798 = vmatpush1.bf16.msra.mxu0 0
        %799 = vmatprep.subr.bf16.mxu0 0
        %800 = vmatpush1.bf16.msra.mxu0 0
        %801 = vmatprep.subr.bf16.mxu0 0
        %802 = vmatpush1.bf16.msra.mxu0 0
        %803 = vmatprep.subr.bf16.mxu0 0
        %804 = vmatpush1.bf16.msra.mxu0 0
        %805 = vmatprep.subr.bf16.mxu0 0
        %806 = vmatpush1.bf16.msra.mxu0 0
        %807 = vmatprep.subr.bf16.mxu0 0
        %808 = vmatpush1.bf16.msra.mxu0 0
        %809 = vmatprep.subr.bf16.mxu0 0
        %810 = vmatpush1.bf16.msra.mxu0 0
        %811 = vmatprep.subr.bf16.mxu0 0
        %812 = vmatpush1.bf16.msra.mxu0 0
        %813 = vmatprep.subr.bf16.mxu0 0
        %814 = vmatpush1.bf16.msra.mxu0 0
        %815 = vmatprep.subr.bf16.mxu0 0
        %816 = vmatpush1.bf16.msra.mxu0 0
        %817 = vmatprep.mubr.bf16.mxu0 0
        %818 = vmatmul.mubr.bf16.gmra.mrb[0].mxu0 %v779
        %v819 = vpop.f32.mrb[0].mxu0
        %v820 = vadd.f32 0.0, %v819
        %v821 = vpop.f32.mrb[0].mxu0
        %v822 = vpop.f32.mrb[0].mxu0
        %v823 = vpop.f32.mrb[0].mxu0
        %824 = vdwg.mxu0
        %v825 = vpack.c.bf16 %v820, %v820
        %826 = vst.msk [vmem:[#allocation3] sm:$0xf] %vm774, %v825
        %v827 = vld [vmem:[#allocation2] sm:$0xf]
        %v829 = vunpack.c.l.b16 %v827
        %v830 = vpack.c.b16 %v829, %v829
        %831 = vrot.lane.b32.xlu0 %v830, 120
        %v832 = vpop.permute.xlu0 %831
        %833 = vrot.lane.b32.xlu0 %v830, 88
        %v834 = vpop.permute.xlu0 %833
        %v836 = vsel %vm715, %v832, 0
        %v839 = vsel %vm715, %v834, 0
        %841 = vmatprep.subr.bf16.mxu0 0
        %842 = vmatpush1.bf16.xpose.msra.mxu0 %v839
        %843 = vmatprep.subr.bf16.mxu0 0
        %844 = vmatpush1.bf16.xpose.msra.mxu0 0
        %845 = vmatprep.subr.bf16.mxu0 0
        %846 = vmatpush1.bf16.xpose.msra.mxu0 0
        %847 = vmatprep.subr.bf16.mxu0 0
        %848 = vmatpush1.bf16.xpose.msra.mxu0 0
        %849 = vmatprep.subr.bf16.mxu0 0
        %850 = vmatpush1.bf16.xpose.msra.mxu0 0
        %851 = vmatprep.subr.bf16.mxu0 0
        %852 = vmatpush1.bf16.xpose.msra.mxu0 0
        %853 = vmatprep.subr.bf16.mxu0 0
        %854 = vmatpush1.bf16.xpose.msra.mxu0 0
        %855 = vmatprep.subr.bf16.mxu0 0
        %856 = vmatpush1.bf16.xpose.msra.mxu0 0
        %857 = vmatprep.subr.bf16.mxu0 0
        %858 = vmatpush1.bf16.xpose.msra.mxu0 0
        %859 = vmatprep.subr.bf16.mxu0 0
        %860 = vmatpush1.bf16.xpose.msra.mxu0 0
        %861 = vmatprep.subr.bf16.mxu0 0
        %862 = vmatpush1.bf16.xpose.msra.mxu0 0
        %863 = vmatprep.subr.bf16.mxu0 0
        %864 = vmatpush1.bf16.xpose.msra.mxu0 0
        %865 = vmatprep.subr.bf16.mxu0 0
        %866 = vmatpush1.bf16.xpose.msra.mxu0 0
        %867 = vmatprep.subr.bf16.mxu0 0
        %868 = vmatpush1.bf16.xpose.msra.mxu0 0
        %869 = vmatprep.subr.bf16.mxu0 0
        %870 = vmatpush1.bf16.xpose.msra.mxu0 0
        %871 = vmatprep.subr.bf16.mxu0 0
        %872 = vmatpush1.bf16.xpose.msra.mxu0 0
        %873 = vmatprep.mubr.bf16.mxu0 0
        %874 = vmatmul.mubr.bf16.gmra.mrb[0].mxu0 %v836
        %v875 = vpop.f32.mrb[0].mxu0
        %v876 = vadd.f32 0.0, %v875
        %v877 = vpop.f32.mrb[0].mxu0
        %v878 = vpop.f32.mrb[0].mxu0
        %v879 = vpop.f32.mrb[0].mxu0
        %880 = vdwg.mxu0
        %v881 = vsel %vm715, %v876, -inf
        %882 = vmax.xlane.f32.xlu0 %v881
        %v883 = vpop.xlane.xlu0 %882
        %v884 = vsub.f32 %v876, %v883
        %v885 = vmul.f32 %v884, 1.442695
        %v886 = vpow.pop %v885
        %v887 = vsel %vm715, %v886, 0.0
        %888 = vadd.xlane.f32.xlu0 %v887
        %v889 = vpop.xlane.xlu0 %888
        %v890 = vrcp.pop %v889
        %v891 = vmul.f32 %v886, %v890
        %v892 = vpack.c.bf16 %v891, %v891
        %s893 = scalar_lea.vmem %s612, 4 [#allocation25]
        %894 = vst.msk [vmem:[%s893] sm:$0xf] %vm774, %v892
        %895 = vrot.lane.b32.xlu0 %v830, 56
        %v896 = vpop.permute.xlu0 %895
        %v898 = vsel %vm715, %v892, 0
        %v901 = vsel %vm781, %v896, 0
        %903 = vmatprep.subr.bf16.mxu0 0
        %904 = vmatpush1.bf16.msra.mxu0 %v901
        %905 = vmatprep.subr.bf16.mxu0 0
        %906 = vmatpush1.bf16.msra.mxu0 0
        %907 = vmatprep.subr.bf16.mxu0 0
        %908 = vmatpush1.bf16.msra.mxu0 0
        %909 = vmatprep.subr.bf16.mxu0 0
        %910 = vmatpush1.bf16.msra.mxu0 0
        %911 = vmatprep.subr.bf16.mxu0 0
        %912 = vmatpush1.bf16.msra.mxu0 0
        %913 = vmatprep.subr.bf16.mxu0 0
        %914 = vmatpush1.bf16.msra.mxu0 0
        %915 = vmatprep.subr.bf16.mxu0 0
        %916 = vmatpush1.bf16.msra.mxu0 0
        %917 = vmatprep.subr.bf16.mxu0 0
        %918 = vmatpush1.bf16.msra.mxu0 0
        %919 = vmatprep.subr.bf16.mxu0 0
        %920 = vmatpush1.bf16.msra.mxu0 0
        %921 = vmatprep.subr.bf16.mxu0 0
        %922 = vmatpush1.bf16.msra.mxu0 0
        %923 = vmatprep.subr.bf16.mxu0 0
        %924 = vmatpush1.bf16.msra.mxu0 0
        %925 = vmatprep.subr.bf16.mxu0 0
        %926 = vmatpush1.bf16.msra.mxu0 0
        %927 = vmatprep.subr.bf16.mxu0 0
        %928 = vmatpush1.bf16.msra.mxu0 0
        %929 = vmatprep.subr.bf16.mxu0 0
        %930 = vmatpush1.bf16.msra.mxu0 0
        %931 = vmatprep.subr.bf16.mxu0 0
        %932 = vmatpush1.bf16.msra.mxu0 0
        %933 = vmatprep.subr.bf16.mxu0 0
        %934 = vmatpush1.bf16.msra.mxu0 0
        %935 = vmatprep.mubr.bf16.mxu0 0
        %936 = vmatmul.mubr.bf16.gmra.mrb[0].mxu0 %v898
        %v937 = vpop.f32.mrb[0].mxu0
        %v938 = vadd.f32 0.0, %v937
        %v939 = vpop.f32.mrb[0].mxu0
        %v940 = vpop.f32.mrb[0].mxu0
        %v941 = vpop.f32.mrb[0].mxu0
        %942 = vdwg.mxu0
        %v943 = vpack.c.bf16 %v938, %v938
        %v945 = vunpack.c.l.b16 %v943
        %v946 = vpack.c.b16 %v945, %v945
        %947 = vrot.lane.b32.xlu0 %v946, 8
        %v948 = vpop.permute.xlu0 %947
        %vm950 = vcmask 126016
        %951 = vst.msk [vmem:[#allocation3] sm:$0xf] %vm950, %v948
        %v952 = vld [vmem:[#allocation2] sm:$0xf]
        %v954 = vunpack.c.l.b16 %v952
        %v955 = vpack.c.b16 %v954, %v954
        %956 = vrot.lane.b32.xlu0 %v955, 112
        %v957 = vpop.permute.xlu0 %956
        %958 = vrot.lane.b32.xlu0 %v955, 80
        %v959 = vpop.permute.xlu0 %958
        %v961 = vsel %vm715, %v957, 0
        %v964 = vsel %vm715, %v959, 0
        %966 = vmatprep.subr.bf16.mxu0 0
        %967 = vmatpush1.bf16.xpose.msra.mxu0 %v964
        %968 = vmatprep.subr.bf16.mxu0 0
        %969 = vmatpush1.bf16.xpose.msra.mxu0 0
        %970 = vmatprep.subr.bf16.mxu0 0
        %971 = vmatpush1.bf16.xpose.msra.mxu0 0
        %972 = vmatprep.subr.bf16.mxu0 0
        %973 = vmatpush1.bf16.xpose.msra.mxu0 0
        %974 = vmatprep.subr.bf16.mxu0 0
        %975 = vmatpush1.bf16.xpose.msra.mxu0 0
        %976 = vmatprep.subr.bf16.mxu0 0
        %977 = vmatpush1.bf16.xpose.msra.mxu0 0
        %978 = vmatprep.subr.bf16.mxu0 0
        %979 = vmatpush1.bf16.xpose.msra.mxu0 0
        %980 = vmatprep.subr.bf16.mxu0 0
        %981 = vmatpush1.bf16.xpose.msra.mxu0 0
        %982 = vmatprep.subr.bf16.mxu0 0
        %983 = vmatpush1.bf16.xpose.msra.mxu0 0
        %984 = vmatprep.subr.bf16.mxu0 0
        %985 = vmatpush1.bf16.xpose.msra.mxu0 0
        %986 = vmatprep.subr.bf16.mxu0 0
        %987 = vmatpush1.bf16.xpose.msra.mxu0 0
        %988 = vmatprep.subr.bf16.mxu0 0
        %989 = vmatpush1.bf16.xpose.msra.mxu0 0
        %990 = vmatprep.subr.bf16.mxu0 0
        %991 = vmatpush1.bf16.xpose.msra.mxu0 0
        %992 = vmatprep.subr.bf16.mxu0 0
        %993 = vmatpush1.bf16.xpose.msra.mxu0 0
        %994 = vmatprep.subr.bf16.mxu0 0
        %995 = vmatpush1.bf16.xpose.msra.mxu0 0
        %996 = vmatprep.subr.bf16.mxu0 0
        %997 = vmatpush1.bf16.xpose.msra.mxu0 0
        %998 = vmatprep.mubr.bf16.mxu0 0
        %999 = vmatmul.mubr.bf16.gmra.mrb[0].mxu0 %v961
        %v1000 = vpop.f32.mrb[0].mxu0
        %v1001 = vadd.f32 0.0, %v1000
        %v1002 = vpop.f32.mrb[0].mxu0
        %v1003 = vpop.f32.mrb[0].mxu0
        %v1004 = vpop.f32.mrb[0].mxu0
        %1005 = vdwg.mxu0
        %v1006 = vsel %vm715, %v1001, -inf
        %1007 = vmax.xlane.f32.xlu0 %v1006
        %v1008 = vpop.xlane.xlu0 %1007
        %v1009 = vsub.f32 %v1001, %v1008
        %v1010 = vmul.f32 %v1009, 1.442695
        %v1011 = vpow.pop %v1010
        %v1012 = vsel %vm715, %v1011, 0.0
        %1013 = vadd.xlane.f32.xlu0 %v1012
        %v1014 = vpop.xlane.xlu0 %1013
        %v1015 = vrcp.pop %v1014
        %v1016 = vmul.f32 %v1011, %v1015
        %v1017 = vpack.c.bf16 %v1016, %v1016
        %s1018 = scalar_lea.vmem %s612, 8 [#allocation25]
        %1019 = vst.msk [vmem:[%s1018] sm:$0xf] %vm774, %v1017
        %1020 = vrot.lane.b32.xlu0 %v955, 48
        %v1021 = vpop.permute.xlu0 %1020
        %v1023 = vsel %vm715, %v1017, 0
        %v1026 = vsel %vm781, %v1021, 0
        %1028 = vmatprep.subr.bf16.mxu0 0
        %1029 = vmatpush1.bf16.msra.mxu0 %v1026
        %1030 = vmatprep.subr.bf16.mxu0 0
        %1031 = vmatpush1.bf16.msra.mxu0 0
        %1032 = vmatprep.subr.bf16.mxu0 0
        %1033 = vmatpush1.bf16.msra.mxu0 0
        %1034 = vmatprep.subr.bf16.mxu0 0
        %1035 = vmatpush1.bf16.msra.mxu0 0
        %1036 = vmatprep.subr.bf16.mxu0 0
        %1037 = vmatpush1.bf16.msra.mxu0 0
        %1038 = vmatprep.subr.bf16.mxu0 0
        %1039 = vmatpush1.bf16.msra.mxu0 0
        %1040 = vmatprep.subr.bf16.mxu0 0
        %1041 = vmatpush1.bf16.msra.mxu0 0
        %1042 = vmatprep.subr.bf16.mxu0 0
        %1043 = vmatpush1.bf16.msra.mxu0 0
        %1044 = vmatprep.subr.bf16.mxu0 0
        %1045 = vmatpush1.bf16.msra.mxu0 0
        %1046 = vmatprep.subr.bf16.mxu0 0
        %1047 = vmatpush1.bf16.msra.mxu0 0
        %1048 = vmatprep.subr.bf16.mxu0 0
        %1049 = vmatpush1.bf16.msra.mxu0 0
        %1050 = vmatprep.subr.bf16.mxu0 0
        %1051 = vmatpush1.bf16.msra.mxu0 0
        %1052 = vmatprep.subr.bf16.mxu0 0
        %1053 = vmatpush1.bf16.msra.mxu0 0
        %1054 = vmatprep.subr.bf16.mxu0 0
        %1055 = vmatpush1.bf16.msra.mxu0 0
        %1056 = vmatprep.subr.bf16.mxu0 0
        %1057 = vmatpush1.bf16.msra.mxu0 0
        %1058 = vmatprep.subr.bf16.mxu0 0
        %1059 = vmatpush1.bf16.msra.mxu0 0
        %1060 = vmatprep.mubr.bf16.mxu0 0
        %1061 = vmatmul.mubr.bf16.gmra.mrb[0].mxu0 %v1023
        %v1062 = vpop.f32.mrb[0].mxu0
        %v1063 = vadd.f32 0.0, %v1062
        %v1064 = vpop.f32.mrb[0].mxu0
        %v1065 = vpop.f32.mrb[0].mxu0
        %v1066 = vpop.f32.mrb[0].mxu0
        %1067 = vdwg.mxu0
        %v1068 = vpack.c.bf16 %v1063, %v1063
        %v1070 = vunpack.c.l.b16 %v1068
        %v1071 = vpack.c.b16 %v1070, %v1070
        %1072 = vrot.lane.b32.xlu0 %v1071, 16
        %v1073 = vpop.permute.xlu0 %1072
        %vm1075 = vcmask 191616
        %1076 = vst.msk [vmem:[#allocation3] sm:$0xf] %vm1075, %v1073
        %v1077 = vld [vmem:[#allocation2] sm:$0xf]
        %v1079 = vunpack.c.l.b16 %v1077
        %v1080 = vpack.c.b16 %v1079, %v1079
        %1081 = vrot.lane.b32.xlu0 %v1080, 104
        %v1082 = vpop.permute.xlu0 %1081
        %1083 = vrot.lane.b32.xlu0 %v1080, 72
        %v1084 = vpop.permute.xlu0 %1083
        %v1086 = vsel %vm715, %v1082, 0
        %v1089 = vsel %vm715, %v1084, 0
        %1091 = vmatprep.subr.bf16.mxu0 0
        %1092 = vmatpush1.bf16.xpose.msra.mxu0 %v1089
        %1093 = vmatprep.subr.bf16.mxu0 0
        %1094 = vmatpush1.bf16.xpose.msra.mxu0 0
        %1095 = vmatprep.subr.bf16.mxu0 0
        %1096 = vmatpush1.bf16.xpose.msra.mxu0 0
        %1097 = vmatprep.subr.bf16.mxu0 0
        %1098 = vmatpush1.bf16.xpose.msra.mxu0 0
        %1099 = vmatprep.subr.bf16.mxu0 0
        %1100 = vmatpush1.bf16.xpose.msra.mxu0 0
        %1101 = vmatprep.subr.bf16.mxu0 0
        %1102 = vmatpush1.bf16.xpose.msra.mxu0 0
        %1103 = vmatprep.subr.bf16.mxu0 0
        %1104 = vmatpush1.bf16.xpose.msra.mxu0 0
        %1105 = vmatprep.subr.bf16.mxu0 0
        %1106 = vmatpush1.bf16.xpose.msra.mxu0 0
        %1107 = vmatprep.subr.bf16.mxu0 0
        %1108 = vmatpush1.bf16.xpose.msra.mxu0 0
        %1109 = vmatprep.subr.bf16.mxu0 0
        %1110 = vmatpush1.bf16.xpose.msra.mxu0 0
        %1111 = vmatprep.subr.bf16.mxu0 0
        %1112 = vmatpush1.bf16.xpose.msra.mxu0 0
        %1113 = vmatprep.subr.bf16.mxu0 0
        %1114 = vmatpush1.bf16.xpose.msra.mxu0 0
        %1115 = vmatprep.subr.bf16.mxu0 0
        %1116 = vmatpush1.bf16.xpose.msra.mxu0 0
        %1117 = vmatprep.subr.bf16.mxu0 0
        %1118 = vmatpush1.bf16.xpose.msra.mxu0 0
        %1119 = vmatprep.subr.bf16.mxu0 0
        %1120 = vmatpush1.bf16.xpose.msra.mxu0 0
        %1121 = vmatprep.subr.bf16.mxu0 0
        %1122 = vmatpush1.bf16.xpose.msra.mxu0 0
        %1123 = vmatprep.mubr.bf16.mxu0 0
        %1124 = vmatmul.mubr.bf16.gmra.mrb[0].mxu0 %v1086
        %v1125 = vpop.f32.mrb[0].mxu0
        %v1126 = vadd.f32 0.0, %v1125
        %v1127 = vpop.f32.mrb[0].mxu0
        %v1128 = vpop.f32.mrb[0].mxu0
        %v1129 = vpop.f32.mrb[0].mxu0
        %1130 = vdwg.mxu0
        %v1131 = vsel %vm715, %v1126, -inf
        %1132 = vmax.xlane.f32.xlu0 %v1131
        %v1133 = vpop.xlane.xlu0 %1132
        %v1134 = vsub.f32 %v1126, %v1133
        %v1135 = vmul.f32 %v1134, 1.442695
        %v1136 = vpow.pop %v1135
        %v1137 = vsel %vm715, %v1136, 0.0
        %1138 = vadd.xlane.f32.xlu0 %v1137
        %v1139 = vpop.xlane.xlu0 %1138
        %v1140 = vrcp.pop %v1139
        %v1141 = vmul.f32 %v1136, %v1140
        %v1142 = vpack.c.bf16 %v1141, %v1141
        %s1143 = scalar_lea.vmem %s612, 12 [#allocation25]
        %1144 = vst.msk [vmem:[%s1143] sm:$0xf] %vm774, %v1142
        %1145 = vrot.lane.b32.xlu0 %v1080, 40
        %v1146 = vpop.permute.xlu0 %1145
        %v1148 = vsel %vm715, %v1142, 0
        %v1151 = vsel %vm781, %v1146, 0
        %1153 = vmatprep.subr.bf16.mxu0 0
        %1154 = vmatpush1.bf16.msra.mxu0 %v1151
        %1155 = vmatprep.subr.bf16.mxu0 0
        %1156 = vmatpush1.bf16.msra.mxu0 0
        %1157 = vmatprep.subr.bf16.mxu0 0
        %1158 = vmatpush1.bf16.msra.mxu0 0
        %1159 = vmatprep.subr.bf16.mxu0 0
        %1160 = vmatpush1.bf16.msra.mxu0 0
        %1161 = vmatprep.subr.bf16.mxu0 0
        %1162 = vmatpush1.bf16.msra.mxu0 0
        %1163 = vmatprep.subr.bf16.mxu0 0
        %1164 = vmatpush1.bf16.msra.mxu0 0
        %1165 = vmatprep.subr.bf16.mxu0 0
        %1166 = vmatpush1.bf16.msra.mxu0 0
        %1167 = vmatprep.subr.bf16.mxu0 0
        %1168 = vmatpush1.bf16.msra.mxu0 0
        %1169 = vmatprep.subr.bf16.mxu0 0
        %1170 = vmatpush1.bf16.msra.mxu0 0
        %1171 = vmatprep.subr.bf16.mxu0 0
        %1172 = vmatpush1.bf16.msra.mxu0 0
        %1173 = vmatprep.subr.bf16.mxu0 0
        %1174 = vmatpush1.bf16.msra.mxu0 0
        %1175 = vmatprep.subr.bf16.mxu0 0
        %1176 = vmatpush1.bf16.msra.mxu0 0
        %1177 = vmatprep.subr.bf16.mxu0 0
        %1178 = vmatpush1.bf16.msra.mxu0 0
        %1179 = vmatprep.subr.bf16.mxu0 0
        %1180 = vmatpush1.bf16.msra.mxu0 0
        %1181 = vmatprep.subr.bf16.mxu0 0
        %1182 = vmatpush1.bf16.msra.mxu0 0
        %1183 = vmatprep.subr.bf16.mxu0 0
        %1184 = vmatpush1.bf16.msra.mxu0 0
        %1185 = vmatprep.mubr.bf16.mxu0 0
        %1186 = vmatmul.mubr.bf16.gmra.mrb[0].mxu0 %v1148
        %v1187 = vpop.f32.mrb[0].mxu0
        %v1188 = vadd.f32 0.0, %v1187
        %v1189 = vpop.f32.mrb[0].mxu0
        %v1190 = vpop.f32.mrb[0].mxu0
        %v1191 = vpop.f32.mrb[0].mxu0
        %1192 = vdwg.mxu0
        %v1193 = vpack.c.bf16 %v1188, %v1188
        %v1195 = vunpack.c.l.b16 %v1193
        %v1196 = vpack.c.b16 %v1195, %v1195
        %1197 = vrot.lane.b32.xlu0 %v1196, 24
        %v1198 = vpop.permute.xlu0 %1197
        %vm1200 = vcmask 257216
        %1201 = vst.msk [vmem:[#allocation3] sm:$0xf] %vm1200, %v1198
        %v1202 = vld [vmem:[#allocation3] sm:$0xf]
        %v1203 = vld [vmem:[#allocation9] sm:$0xf]
        %v1204 = vld [vmem:[#allocation9 + $0x4] sm:$0xf]
        %v1205 = vld [vmem:[#allocation9 + $0x8] sm:$0xf]
        %v1206 = vld [vmem:[#allocation9 + $0xc] sm:$0xf]
        %v1207 = vld [vmem:[#allocation10] sm:$0x1]
        %v1209 = vlaneseq
        %v1210 = vshrl.u32 %v1209, 7
        %v1211 = vsub.s32 0, %v1210
        %v1212 = vrot.slane %v1207, %v1211
        %v1218 = vunpack.c.l.b16 %v1203
        %v1219 = vunpack.c.l.b16 %v1204
        %v1220 = vunpack.c.l.b16 %v1205
        %v1221 = vunpack.c.l.b16 %v1206
        %v1222 = vpack.c.b16 %v1219, %v1218
        %v1223 = vpack.c.b16 %v1221, %v1220
        %v1227 = vsel %vm617, %v1202, 0
        %1229 = vmatprep.subr.bf16.mxu0 0
        %1230 = vmatpush1.bf16.msra.mxu0 %v1222
        %1231 = vmatprep.subr.bf16.mxu0 0
        %1232 = vmatpush1.bf16.msra.mxu0 %v1223
        %1233 = vmatprep.subr.bf16.mxu0 0
        %1234 = vmatpush1.bf16.msra.mxu0 0
        %1235 = vmatprep.subr.bf16.mxu0 0
        %1236 = vmatpush1.bf16.msra.mxu0 0
        %1237 = vmatprep.subr.bf16.mxu0 0
        %1238 = vmatpush1.bf16.msra.mxu0 0
        %1239 = vmatprep.subr.bf16.mxu0 0
        %1240 = vmatpush1.bf16.msra.mxu0 0
        %1241 = vmatprep.subr.bf16.mxu0 0
        %1242 = vmatpush1.bf16.msra.mxu0 0
        %1243 = vmatprep.subr.bf16.mxu0 0
        %1244 = vmatpush1.bf16.msra.mxu0 0
        %1245 = vmatprep.subr.bf16.mxu0 0
        %1246 = vmatpush1.bf16.msra.mxu0 0
        %1247 = vmatprep.subr.bf16.mxu0 0
        %1248 = vmatpush1.bf16.msra.mxu0 0
        %1249 = vmatprep.subr.bf16.mxu0 0
        %1250 = vmatpush1.bf16.msra.mxu0 0
        %1251 = vmatprep.subr.bf16.mxu0 0
        %1252 = vmatpush1.bf16.msra.mxu0 0
        %1253 = vmatprep.subr.bf16.mxu0 0
        %1254 = vmatpush1.bf16.msra.mxu0 0
        %1255 = vmatprep.subr.bf16.mxu0 0
        %1256 = vmatpush1.bf16.msra.mxu0 0
        %1257 = vmatprep.subr.bf16.mxu0 0
        %1258 = vmatpush1.bf16.msra.mxu0 0
        %1259 = vmatprep.subr.bf16.mxu0 0
        %1260 = vmatpush1.bf16.msra.mxu0 0
        %1261 = vmatprep.mubr.bf16.mxu0 0
        %1262 = vmatmul.mubr.bf16.gmra.mrb[0].mxu0 %v1227
        %v1263 = vpop.f32.mrb[0].mxu0
        %v1264 = vadd.f32 %v1212, %v1263
        %v1265 = vpop.f32.mrb[0].mxu0
        %v1266 = vpop.f32.mrb[0].mxu0
        %v1267 = vpop.f32.mrb[0].mxu0
        %1268 = vdwg.mxu0
        %v1269 = vld [vmem:[%s521] sm:$0xff]
        %v1270 = vadd.f32 %v1269, %v1264
        %v1271 = vld [vmem:[#allocation21] sm:$0x1]
        %v1272 = vld [vmem:[#allocation22] sm:$0x1]
        %v1273 = vsel %vm617, %v1270, 0.0
        %1274 = vadd.xlane.f32.xlu0 %v1273
        %v1275 = vpop.xlane.xlu0 %1274
        %v1276 = vmul.f32 %v1275, %v621
        %v1277 = vsub.f32 %v1270, %v1276
        %v1278 = vmul.f32 %v1277, %v1277
        %v1279 = vsel %vm617, %v1278, 0.0
        %1280 = vadd.xlane.f32.xlu0 %v1279
        %v1281 = vpop.xlane.xlu0 %1280
        %v1282 = vmul.f32 %v1281, %v621
        %v1283 = vadd.f32 %v1282, 1e-05
        %v1284 = vrsqrt.pop %v1283
        %v1285 = vmul.f32 %v1277, %v1284
        %v1287 = vlaneseq
        %v1288 = vshrl.u32 %v1287, 7
        %v1289 = vsub.s32 0, %v1288
        %v1290 = vrot.slane %v1271, %v1289
        %v1292 = vmul.f32 %v1285, %v1290
        %v1294 = vlaneseq
        %v1295 = vshrl.u32 %v1294, 7
        %v1296 = vsub.s32 0, %v1295
        %v1297 = vrot.slane %v1272, %v1296
        %v1299 = vadd.f32 %v1292, %v1297
        %v1300 = vpack.c.bf16 %v1299, %v1299
        %v1301 = vld [vmem:[#allocation12] sm:$0xf]
        %v1302 = vld [vmem:[#allocation12 + $0x4] sm:$0xf]
        %v1303 = vld [vmem:[#allocation12 + $0x8] sm:$0xf]
        %v1304 = vld [vmem:[#allocation12 + $0xc] sm:$0xf]
        %v1305 = vld [vmem:[#allocation13] sm:$0x1]
        %v1307 = vlaneseq
        %v1308 = vshrl.u32 %v1307, 7
        %v1309 = vsub.s32 0, %v1308
        %v1310 = vrot.slane %v1305, %v1309
        %v1316 = vunpack.c.l.b16 %v1301
        %v1317 = vunpack.c.l.b16 %v1302
        %v1318 = vunpack.c.l.b16 %v1303
        %v1319 = vunpack.c.l.b16 %v1304
        %v1320 = vpack.c.b16 %v1317, %v1316
        %v1321 = vpack.c.b16 %v1319, %v1318
        %v1325 = vsel %vm617, %v1300, 0
        %1327 = vmatprep.subr.bf16.mxu0 0
        %1328 = vmatpush1.bf16.msra.mxu0 %v1320
        %1329 = vmatprep.subr.bf16.mxu0 0
        %1330 = vmatpush1.bf16.msra.mxu0 %v1321
        %1331 = vmatprep.subr.bf16.mxu0 0
        %1332 = vmatpush1.bf16.msra.mxu0 0
        %1333 = vmatprep.subr.bf16.mxu0 0
        %1334 = vmatpush1.bf16.msra.mxu0 0
        %1335 = vmatprep.subr.bf16.mxu0 0
        %1336 = vmatpush1.bf16.msra.mxu0 0
        %1337 = vmatprep.subr.bf16.mxu0 0
        %1338 = vmatpush1.bf16.msra.mxu0 0
        %1339 = vmatprep.subr.bf16.mxu0 0
        %1340 = vmatpush1.bf16.msra.mxu0 0
        %1341 = vmatprep.subr.bf16.mxu0 0
        %1342 = vmatpush1.bf16.msra.mxu0 0
        %1343 = vmatprep.subr.bf16.mxu0 0
        %1344 = vmatpush1.bf16.msra.mxu0 0
        %1345 = vmatprep.subr.bf16.mxu0 0
        %1346 = vmatpush1.bf16.msra.mxu0 0
        %1347 = vmatprep.subr.bf16.mxu0 0
        %1348 = vmatpush1.bf16.msra.mxu0 0
        %1349 = vmatprep.subr.bf16.mxu0 0
        %1350 = vmatpush1.bf16.msra.mxu0 0
        %1351 = vmatprep.subr.bf16.mxu0 0
        %1352 = vmatpush1.bf16.msra.mxu0 0
        %1353 = vmatprep.subr.bf16.mxu0 0
        %1354 = vmatpush1.bf16.msra.mxu0 0
        %1355 = vmatprep.subr.bf16.mxu0 0
        %1356 = vmatpush1.bf16.msra.mxu0 0
        %1357 = vmatprep.subr.bf16.mxu0 0
        %1358 = vmatpush1.bf16.msra.mxu0 0
        %1359 = vmatprep.mubr.bf16.mxu0 0
        %1360 = vmatmul.mubr.bf16.gmra.mrb[0].mxu0 %v1325
        %v1361 = vpop.f32.mrb[0].mxu0
        %v1362 = vadd.f32 %v1310, %v1361
        %v1363 = vpop.f32.mrb[0].mxu0
        %v1364 = vpop.f32.mrb[0].mxu0
        %v1365 = vpop.f32.mrb[0].mxu0
        %1366 = vdwg.mxu0
        %v1367 = vmax.f32 %v1362, 0.0
        %v1368 = vpack.c.bf16 %v1367, %v1367
        %v1369 = vld [vmem:[#allocation15] sm:$0xf]
        %v1370 = vld [vmem:[#allocation15 + $0x4] sm:$0xf]
        %v1371 = vld [vmem:[#allocation15 + $0x8] sm:$0xf]
        %v1372 = vld [vmem:[#allocation15 + $0xc] sm:$0xf]
        %v1373 = vld [vmem:[#allocation15 + $0x10] sm:$0xf]
        %v1374 = vld [vmem:[#allocation15 + $0x14] sm:$0xf]
        %v1375 = vld [vmem:[#allocation15 + $0x18] sm:$0xf]
        %v1376 = vld [vmem:[#allocation15 + $0x1c] sm:$0xf]
        %v1377 = vld [vmem:[#allocation15 + $0x20] sm:$0xf]
        %v1378 = vld [vmem:[#allocation15 + $0x24] sm:$0xf]
        %v1379 = vld [vmem:[#allocation15 + $0x28] sm:$0xf]
        %v1380 = vld [vmem:[#allocation15 + $0x2c] sm:$0xf]
        %v1381 = vld [vmem:[#allocation15 + $0x30] sm:$0xf]
        %v1382 = vld [vmem:[#allocation15 + $0x34] sm:$0xf]
        %v1383 = vld [vmem:[#allocation15 + $0x38] sm:$0xf]
        %v1384 = vld [vmem:[#allocation15 + $0x3c] sm:$0xf]
        %v1385 = vld [vmem:[#allocation16] sm:$0x1]
        %v1387 = vlaneseq
        %v1388 = vshrl.u32 %v1387, 7
        %v1389 = vsub.s32 0, %v1388
        %v1390 = vrot.slane %v1385, %v1389
        %v1408 = vunpack.c.l.b16 %v1369
        %v1409 = vunpack.c.l.b16 %v1370
        %v1410 = vunpack.c.l.b16 %v1371
        %v1411 = vunpack.c.l.b16 %v1372
        %v1412 = vunpack.c.l.b16 %v1373
        %v1413 = vunpack.c.l.b16 %v1374
        %v1414 = vunpack.c.l.b16 %v1375
        %v1415 = vunpack.c.l.b16 %v1376
        %v1416 = vunpack.c.l.b16 %v1377
        %v1417 = vunpack.c.l.b16 %v1378
        %v1418 = vunpack.c.l.b16 %v1379
        %v1419 = vunpack.c.l.b16 %v1380
        %v1420 = vunpack.c.l.b16 %v1381
        %v1421 = vunpack.c.l.b16 %v1382
        %v1422 = vunpack.c.l.b16 %v1383
        %v1423 = vunpack.c.l.b16 %v1384
        %v1424 = vpack.c.b16 %v1409, %v1408
        %v1425 = vpack.c.b16 %v1411, %v1410
        %v1426 = vpack.c.b16 %v1413, %v1412
        %v1427 = vpack.c.b16 %v1415, %v1414
        %v1428 = vpack.c.b16 %v1417, %v1416
        %v1429 = vpack.c.b16 %v1419, %v1418
        %v1430 = vpack.c.b16 %v1421, %v1420
        %v1431 = vpack.c.b16 %v1423, %v1422
        %1440 = vmatprep.subr.bf16.mxu0 0
        %1441 = vmatpush1.bf16.msra.mxu0 %v1424
        %1442 = vmatprep.subr.bf16.mxu0 0
        %1443 = vmatpush1.bf16.msra.mxu0 %v1425
        %1444 = vmatprep.subr.bf16.mxu0 0
        %1445 = vmatpush1.bf16.msra.mxu0 %v1426
        %1446 = vmatprep.subr.bf16.mxu0 0
        %1447 = vmatpush1.bf16.msra.mxu0 %v1427
        %1448 = vmatprep.subr.bf16.mxu0 0
        %1449 = vmatpush1.bf16.msra.mxu0 %v1428
        %1450 = vmatprep.subr.bf16.mxu0 0
        %1451 = vmatpush1.bf16.msra.mxu0 %v1429
        %1452 = vmatprep.subr.bf16.mxu0 0
        %1453 = vmatpush1.bf16.msra.mxu0 %v1430
        %1454 = vmatprep.subr.bf16.mxu0 0
        %1455 = vmatpush1.bf16.msra.mxu0 %v1431
        %1456 = vmatprep.subr.bf16.mxu0 0
        %1457 = vmatpush1.bf16.msra.mxu0 0
        %1458 = vmatprep.subr.bf16.mxu0 0
        %1459 = vmatpush1.bf16.msra.mxu0 0
        %1460 = vmatprep.subr.bf16.mxu0 0
        %1461 = vmatpush1.bf16.msra.mxu0 0
        %1462 = vmatprep.subr.bf16.mxu0 0
        %1463 = vmatpush1.bf16.msra.mxu0 0
        %1464 = vmatprep.subr.bf16.mxu0 0
        %1465 = vmatpush1.bf16.msra.mxu0 0
        %1466 = vmatprep.subr.bf16.mxu0 0
        %1467 = vmatpush1.bf16.msra.mxu0 0
        %1468 = vmatprep.subr.bf16.mxu0 0
        %1469 = vmatpush1.bf16.msra.mxu0 0
        %1470 = vmatprep.subr.bf16.mxu0 0
        %1471 = vmatpush1.bf16.msra.mxu0 0
        %1472 = vmatprep.mubr.bf16.mxu0 0
        %1473 = vmatmul.mubr.bf16.gmra.mrb[0].mxu0 %v1368
        %v1474 = vpop.f32.mrb[0].mxu0
        %v1475 = vadd.f32 %v1390, %v1474
        %v1476 = vpop.f32.mrb[0].mxu0
        %v1477 = vpop.f32.mrb[0].mxu0
        %v1478 = vpop.f32.mrb[0].mxu0
        %1479 = vdwg.mxu0
        %v1480 = vadd.f32 %v1270, %v1475
        %1481 = vst.msk [vmem:[%s605] sm:$0xff] %vm617, %v1480
        %s1482 = sand.u32 %s305, 1
        %s1483 = scalar_lea.sflag [#allocation6], %s1482
        %s1484 = sand.u32 %s305, 1
        %s1485 = smul.addr %s1484, 8
        %s1486 = scalar_lea.vmem [#allocation24], %s1485
        %s1487 = sand.u32 %s331, 1
        %s1488 = scalar_lea.sflag [#allocation26], %s1487
        %s1489 = sand.u32 %s331, 1
        %s1490 = smul.addr %s1489, 16
        %s1491 = scalar_lea.vmem [#allocation25], %s1490
        // Predicated region
        $region117: #{tpu_custom_call.1} parent=67 // pred_check
          %p1492 = pneg %p315
        $region118: #{tpu_custom_call.1} parent=67 // pred_check_branch
          %1494 = sbr.rel (%p1492) target = $region120
        $region119: #{tpu_custom_call.1} parent=67 // pred_region
          %s1496 = ssub.s32 128, 128
          %1497 = vsyncadd %s1483, %s1496
          %s1498 = smul.addr %s40, 128
          %s1499 = scalar_lea.hbm %s12, %s1498
          %s1501 = sshll.u32 %s1486, 4
          %s1502 = int_to_ptr.vmem [resolvable:$true] %s1501
          %1504 = dma.vmem_to_hbm [thread:$0]  %s1502, 128, %s1499, %s1483
        $region120: #{tpu_custom_call.1} parent=67 // pred_fallthru
          _
        // Predicated region
        $region121: #{tpu_custom_call.1} parent=67 // pred_check
          %p1505 = pneg %p341
        $region122: #{tpu_custom_call.1} parent=67 // pred_check_branch
          %1507 = sbr.rel (%p1505) target = $region124
        $region123: #{tpu_custom_call.1} parent=67 // pred_region
          %s1509 = ssub.s32 256, 256
          %1510 = vsyncadd %s1488, %s1509
          %s1511 = smul.addr %s40, 64
          %s1512 = scalar_lea.hbm %s13, %s1511
          %s1513 = sshll.u32 %s1491, 4
          %s1514 = int_to_ptr.vmem [resolvable:$true] %s1513
          %1519 = dma.vmem_to_hbm [thread:$0]  %s1514, 256, %s1512, %s1488, 64, 128, 4
        $region124: #{tpu_custom_call.1} parent=67 // pred_fallthru
          _
      $region68: #{tpu_custom_call.1} parent=5 // pred_fallthru
        _
      %p1520 = scmp.le.s32.totalorder 2, %s35
      // Predicated region
      $region125: #{tpu_custom_call.1} parent=5 // pred_check
        %p1521 = pneg %p1520
      $region126: #{tpu_custom_call.1} parent=5 // pred_check_branch
        %1523 = sbr.rel (%p1521) target = $region128
      $region127: #{tpu_custom_call.1} parent=5 // pred_region
        %s1524 = ssub.s32 %s35, 2
        // Predicated region
        $region129: #{tpu_custom_call.1} parent=127 // pred_check
          %p1525 = pneg %p321
        $region130: #{tpu_custom_call.1} parent=127 // pred_check_branch
          %1527 = sbr.rel (%p1525) target = $region132
        $region131: #{tpu_custom_call.1} parent=127 // pred_region
          %s1528 = sand.u32 %s306, 1
          %s1529 = scalar_lea.sflag [#allocation6], %s1528
          %s1530 = sand.u32 %s306, 1
          %s1531 = smul.addr %s1530, 8
          %s1532 = scalar_lea.vmem [#allocation24], %s1531
          %1533 = dma.done %s1529, 128
        $region132: #{tpu_custom_call.1} parent=127 // pred_fallthru
          _
        // Predicated region
        $region133: #{tpu_custom_call.1} parent=127 // pred_check
          %p1534 = pneg %p347
        $region134: #{tpu_custom_call.1} parent=127 // pred_check_branch
          %1536 = sbr.rel (%p1534) target = $region136
        $region135: #{tpu_custom_call.1} parent=127 // pred_region
          %s1537 = sand.u32 %s332, 1
          %s1538 = scalar_lea.sflag [#allocation26], %s1537
          %s1539 = sand.u32 %s332, 1
          %s1540 = smul.addr %s1539, 16
          %s1541 = scalar_lea.vmem [#allocation25], %s1540
          %1542 = dma.done %s1538, 256
        $region136: #{tpu_custom_call.1} parent=127 // pred_fallthru
          _
      $region128: #{tpu_custom_call.1} parent=5 // pred_fallthru
        _
    $region6: #{tpu_custom_call.1} parent=1 // loop_footer
      %s39 = sadd.s32 1, %s35
    $region7: #{tpu_custom_call.1} parent=1 // loop_footer_branch
      %34 = sbr.rel target = $region3
    $region8: #{tpu_custom_call.1} parent=1 // loop_exit
      _
    %1543 = vsyncpa [#allocation5], 1
    %s1544 = scalar_lea.sflag [#allocation5], 1
    %1545 = vsyncpa %s1544, 1
    %1546 = vsyncpa [#allocation8], 1
    %1547 = vsyncpa [#allocation11], 1
    %1548 = vsyncpa [#allocation14], 1
    %1549 = vsyncpa [#allocation17], 1
    %1550 = vsyncpa [#allocation20], 1
    %1551 = vsyncpa [#allocation23], 1
    %1552 = vsyncpa [#allocation6], 1
    %s1553 = scalar_lea.sflag [#allocation6], 1
    %1554 = vsyncpa %s1553, 1
    %1555 = vsyncpa [#allocation26], 1
    %s1556 = scalar_lea.sflag [#allocation26], 1
    %1557 = vsyncpa %s1556, 1

// kernel: tpu_custom_call.1
$region0: #{tpu_custom_call.1}
  #allocation0 [shape = 'u32[]', space=smem, size = 0x4, offset = 0x4, fixed_abs, tag = 'smem constant byte address 0x4 - core index']
  #allocation1 [shape = 'u32[144,128]{1,0:T(1,128)}', space=vmem, size = 0x12000, scoped, tag = 'internal scratch']
  #allocation2 [shape = 'bf16[1,8,96]{2,1,0:T(8,128)(2,1)}', space=vmem, size = 0x800, scoped, tag = 'scratch operand']
  #allocation3 [shape = 'bf16[1,8,32]{2,1,0:T(8,128)(2,1)}', space=vmem, size = 0x800, scoped, tag = 'scratch operand']
  %s0 = inlined_call_operand.hbm [shape: f32[2,8,32], index: 0, kind: input, shape index: {}]
  %s1 = inlined_call_operand.hbm [shape: bf16[32,96], index: 1, kind: input, shape index: {}]
  %s2 = inlined_call_operand.hbm [shape: bf16[32,32], index: 2, kind: input, shape index: {}]
  %s3 = inlined_call_operand.hbm [shape: f32[1,32], index: 3, kind: input, shape index: {}]
  %s4 = inlined_call_operand.hbm [shape: bf16[32,128], index: 4, kind: input, shape index: {}]
  %s5 = inlined_call_operand.hbm [shape: f32[1,128], index: 5, kind: input, shape index: {}]
  %s6 = inlined_call_operand.hbm [shape: bf16[128,32], index: 6, kind: input, shape index: {}]
  %s7 = inlined_call_operand.hbm [shape: f32[1,32], index: 7, kind: input, shape index: {}]
  %s8 = inlined_call_operand.hbm [shape: f32[1,32], index: 8, kind: input, shape index: {}]
  %s9 = inlined_call_operand.hbm [shape: f32[1,32], index: 9, kind: input, shape index: {}]
  %s10 = inlined_call_operand.hbm [shape: f32[1,32], index: 10, kind: input, shape index: {}]
  %s11 = inlined_call_operand.hbm [shape: f32[1,32], index: 11, kind: input, shape index: {}]
  %s12 = inlined_call_operand.hbm [shape: f32[2,8,32], index: 12, kind: output, shape index: {0}]
  %s13 = inlined_call_operand.hbm [shape: bf16[4,2,8,8], index: 13, kind: output, shape index: {1}]
  %14 = xla_tuple %s12, %s13
  %s15 = sld [smem:[#allocation0]]
  $region137: #{tpu_custom_call.1} parent=0
    _
  %s17 = ssub.s32 1, %s15
  %s18 = scalar_select 0, %s17, %s15
  $region1: #{tpu_custom_call.1} parent=0
    #allocation4 [shape = 'u8[8192]{0}', space=vmem, size = 0x2000, scoped, tag = 'input window, operand 0']
    #allocation5 [shape = 's32[2]{0}', space=sflag, size = 0x8, scoped, tag = 'scoped memory for tpu_custom_call.1']
    #allocation6 [shape = 's32[2]{0}', space=sflag, size = 0x8, scoped, tag = 'scoped memory for tpu_custom_call.1']
    #allocation7 [shape = 'u8[8192]{0}', space=vmem, size = 0x2000, scoped, tag = 'input window, operand 1, single buffered']
    #allocation8 [shape = 's32[1]{0}', space=sflag, size = 0x4, scoped, tag = 'scoped memory for tpu_custom_call.1']
    #allocation9 [shape = 'u8[8192]{0}', space=vmem, size = 0x2000, scoped, tag = 'input window, operand 2, single buffered']
    #allocation10 [shape = 'u8[512]{0}', space=vmem, size = 0x400, scoped, tag = 'input window, operand 3, single buffered']
    #allocation11 [shape = 's32[1]{0}', space=sflag, size = 0x4, scoped, tag = 'scoped memory for tpu_custom_call.1']
    #allocation12 [shape = 'u8[8192]{0}', space=vmem, size = 0x2000, scoped, tag = 'input window, operand 4, single buffered']
    #allocation13 [shape = 'u8[512]{0}', space=vmem, size = 0x400, scoped, tag = 'input window, operand 5, single buffered']
    #allocation14 [shape = 's32[1]{0}', space=sflag, size = 0x4, scoped, tag = 'scoped memory for tpu_custom_call.1']
    #allocation15 [shape = 'u8[32768]{0}', space=vmem, size = 0x8000, scoped, tag = 'input window, operand 6, single buffered']
    #allocation16 [shape = 'u8[512]{0}', space=vmem, size = 0x400, scoped, tag = 'input window, operand 7, single buffered']
    #allocation17 [shape = 's32[1]{0}', space=sflag, size = 0x4, scoped, tag = 'scoped memory for tpu_custom_call.1']
    #allocation18 [shape = 'u8[512]{0}', space=vmem, size = 0x400, scoped, tag = 'input window, operand 8, single buffered']
    #allocation19 [shape = 'u8[512]{0}', space=vmem, size = 0x400, scoped, tag = 'input window, operand 9, single buffered']
    #allocation20 [shape = 's32[1]{0}', space=sflag, size = 0x4, scoped, tag = 'scoped memory for tpu_custom_call.1']
    #allocation21 [shape = 'u8[512]{0}', space=vmem, size = 0x400, scoped, tag = 'input window, operand 10, single buffered']
    #allocation22 [shape = 'u8[512]{0}', space=vmem, size = 0x400, scoped, tag = 'input window, operand 11, single buffered']
    #allocation23 [shape = 's32[1]{0}', space=sflag, size = 0x4, scoped, tag = 'scoped memory for tpu_custom_call.1']
    #allocation24 [shape = 'u8[8192]{0}', space=vmem, size = 0x2000, scoped, tag = 'output window, operand 0']
    #allocation25 [shape = 'u8[16384]{0}', space=vmem, size = 0x4000, scoped, tag = 'output window, operand 1']
    #allocation26 [shape = 's32[2]{0}', space=sflag, size = 0x8, scoped, tag = 'scoped memory for tpu_custom_call.1']
    %19 = vsyncpa [#allocation5], 0
    %s20 = scalar_lea.sflag [#allocation5], 1
    %21 = vsyncpa %s20, 0
    %22 = vsyncpa [#allocation8], 0
    %23 = vsyncpa [#allocation11], 0
    %24 = vsyncpa [#allocation14], 0
    %25 = vsyncpa [#allocation17], 0
    %26 = vsyncpa [#allocation20], 0
    %27 = vsyncpa [#allocation23], 0
    %28 = vsyncpa [#allocation6], 0
    %s29 = scalar_lea.sflag [#allocation6], 1
    %30 = vsyncpa %s29, 0
    %31 = vsyncpa [#allocation26], 0
    %s32 = scalar_lea.sflag [#allocation26], 1
    %33 = vsyncpa %s32, 0
    loop: start=0, step=1, limit=4
    $region2: #{tpu_custom_call.1} parent=1 // loop_pre_header
      _
    $region3: #{tpu_custom_call.1} parent=1 // loop_header
      %s35 = sphi 0, %s39
      %p36 = scmp.ge.s32.totalorder %s35, 4
      %s45 = sphi 0, %s47
      %s48 = sphi 0, %s45
      %s49 = sphi 0, %s48
      %s65 = sphi 0, %s49
      %s69 = sphi 0, %s69
      %s71 = sphi 0, %s69
      %s72 = sphi 0, %s71
      %s86 = sphi 0, %s72
      %s90 = sphi 0, %s90
      %s92 = sphi 0, %s90
      %s93 = sphi 0, %s92
      %s107 = sphi 0, %s93
      %s111 = sphi 0, %s111
      %s113 = sphi 0, %s111
      %s114 = sphi 0, %s113
      %s128 = sphi 0, %s114
      %s132 = sphi 0, %s132
      %s134 = sphi 0, %s132
      %s135 = sphi 0, %s134
      %s149 = sphi 0, %s135
      %s153 = sphi 0, %s153
      %s155 = sphi 0, %s153
      %s156 = sphi 0, %s155
      %s170 = sphi 0, %s156
      %s174 = sphi 0, %s174
      %s176 = sphi 0, %s174
      %s177 = sphi 0, %s176
      %s191 = sphi 0, %s177
      %s195 = sphi 0, %s195
      %s197 = sphi 0, %s195
      %s198 = sphi 0, %s197
      %s212 = sphi 0, %s198
      %s216 = sphi 0, %s216
      %s218 = sphi 0, %s216
      %s219 = sphi 0, %s218
      %s233 = sphi 0, %s219
      %s237 = sphi 0, %s237
      %s239 = sphi 0, %s237
      %s240 = sphi 0, %s239
      %s254 = sphi 0, %s240
      %s258 = sphi 0, %s258
      %s260 = sphi 0, %s258
      %s261 = sphi 0, %s260
      %s275 = sphi 0, %s261
      %s279 = sphi 0, %s279
      %s281 = sphi 0, %s279
      %s282 = sphi 0, %s281
      %s296 = sphi 0, %s282
      %s302 = sphi 0, %s304
      %s305 = sphi 0, %s302
      %s306 = sphi 0, %s305
      %s322 = sphi 0, %s306
      %s328 = sphi 0, %s330
      %s331 = sphi 0, %s328
      %s332 = sphi 0, %s331
      %s348 = sphi 0, %s332
    $region4: #{tpu_custom_call.1} parent=1 // loop_header_branch
      %38 = sbr.rel (%p36) target = $region8
    $region5: #{tpu_custom_call.1} parent=1 // loop_body
      %s40 = ssub.s32 %s35, 1
      %s41 = ssub.s32 %s35, 2
      %s42 = sadd.s32 %s35, 1
      %s43 = ssub.s32 %s35, %s42
      %p44 = scmp.eq.s32.totalorder %s43, 0
      %s46 = sadd.s32 %s45, 1
      %s47 = scalar_select %p44, %s45, %s46
      %p50 = pneg %p44
      %p51 = scmp.eq.s32.totalorder %s35, 1
      %p52 = por %p50, %p51
      %p53 = scmp.ne.s32.totalorder %s45, %s48
      %p54 = scmp.eq.s32.totalorder %s35, 0
      %p55 = por %p53, %p54
      %p56 = scmp.ne.s32.totalorder %s45, %s48
      %p57 = scmp.eq.s32.totalorder %s40, 1
      %p58 = por %p56, %p57
      %p59 = scmp.ne.s32.totalorder %s48, %s49
      %p60 = scmp.eq.s32.totalorder %s40, 0
      %p61 = por %p59, %p60
      %p62 = scmp.ne.s32.totalorder %s48, %s49
      %p63 = scmp.eq.s32.totalorder %s41, 1
      %p64 = por %p62, %p63
      %p66 = scmp.ne.s32.totalorder %s49, %s65
      %p67 = scmp.eq.s32.totalorder %s41, 0
      %p68 = por %p66, %p67
      %s70 = sadd.s32 %s69, 1
      %p73 = scmp.eq.s32.totalorder %s35, 1
      %p74 = scmp.ne.s32.totalorder %s69, %s71
      %p75 = scmp.eq.s32.totalorder %s35, 0
      %p76 = por %p74, %p75
      %p77 = scmp.ne.s32.totalorder %s69, %s71
      %p78 = scmp.eq.s32.totalorder %s40, 1
      %p79 = por %p77, %p78
      %p80 = scmp.ne.s32.totalorder %s71, %s72
      %p81 = scmp.eq.s32.totalorder %s40, 0
      %p82 = por %p80, %p81
      %p83 = scmp.ne.s32.totalorder %s71, %s72
      %p84 = scmp.eq.s32.totalorder %s41, 1
      %p85 = por %p83, %p84
      %p87 = scmp.ne.s32.totalorder %s72, %s86
      %p88 = scmp.eq.s32.totalorder %s41, 0
      %p89 = por %p87, %p88
      %s91 = sadd.s32 %s90, 1
      %p94 = scmp.eq.s32.totalorder %s35, 1
      %p95 = scmp.ne.s32.totalorder %s90, %s92
      %p96 = scmp.eq.s32.totalorder %s35, 0
      %p97 = por %p95, %p96
      %p98 = scmp.ne.s32.totalorder %s90, %s92
      %p99 = scmp.eq.s32.totalorder %s40, 1
      %p100 = por %p98, %p99
      %p101 = scmp.ne.s32.totalorder %s92, %s93
      %p102 = scmp.eq.s32.totalorder %s40, 0
      %p103 = por %p101, %p102
      %p104 = scmp.ne.s32.totalorder %s92, %s93
      %p105 = scmp.eq.s32.totalorder %s41, 1
      %p106 = por %p104, %p105
      %p108 = scmp.ne.s32.totalorder %s93, %s107
      %p109 = scmp.eq.s32.totalorder %s41, 0
      %p110 = por %p108, %p109
      %s112 = sadd.s32 %s111, 1
      %p115 = scmp.eq.s32.totalorder %s35, 1
      %p116 = scmp.ne.s32.totalorder %s111, %s113
      %p117 = scmp.eq.s32.totalorder %s35, 0
      %p118 = por %p116, %p117
      %p119 = scmp.ne.s32.totalorder %s111, %s113
      %p120 = scmp.eq.s32.totalorder %s40, 1
      %p121 = por %p119, %p120
      %p122 = scmp.ne.s32.totalorder %s113, %s114
      %p123 = scmp.eq.s32.totalorder %s40, 0
      %p124 = por %p122, %p123
      %p125 = scmp.ne.s32.totalorder %s113, %s114
      %p126 = scmp.eq.s32.totalorder %s41, 1
      %p127 = por %p125, %p126
      %p129 = scmp.ne.s32.totalorder %s114, %s128
      %p130 = scmp.eq.s32.totalorder %s41, 0
      %p131 = por %p129, %p130
      %s133 = sadd.s32 %s132, 1
      %p136 = scmp.eq.s32.totalorder %s35, 1
      %p137 = scmp.ne.s32.totalorder %s132, %s134
      %p138 = scmp.eq.s32.totalorder %s35, 0
      %p139 = por %p137, %p138
      %p140 = scmp.ne.s32.totalorder %s132, %s134
      %p141 = scmp.eq.s32.totalorder %s40, 1
      %p142 = por %p140, %p141
      %p143 = scmp.ne.s32.totalorder %s134, %s135
      %p144 = scmp.eq.s32.totalorder %s40, 0
      %p145 = por %p143, %p144
      %p146 = scmp.ne.s32.totalorder %s134, %s135
      %p147 = scmp.eq.s32.totalorder %s41, 1
      %p148 = por %p146, %p147
      %p150 = scmp.ne.s32.totalorder %s135, %s149
      %p151 = scmp.eq.s32.totalorder %s41, 0
      %p152 = por %p150, %p151
      %s154 = sadd.s32 %s153, 1
      %p157 = scmp.eq.s32.totalorder %s35, 1
      %p158 = scmp.ne.s32.totalorder %s153, %s155
      %p159 = scmp.eq.s32.totalorder %s35, 0
      %p160 = por %p158, %p159
      %p161 = scmp.ne.s32.totalorder %s153, %s155
      %p162 = scmp.eq.s32.totalorder %s40, 1
      %p163 = por %p161, %p162
      %p164 = scmp.ne.s32.totalorder %s155, %s156
      %p165 = scmp.eq.s32.totalorder %s40, 0
      %p166 = por %p164, %p165
      %p167 = scmp.ne.s32.totalorder %s155, %s156
      %p168 = scmp.eq.s32.totalorder %s41, 1
      %p169 = por %p167, %p168
      %p171 = scmp.ne.s32.totalorder %s156, %s170
      %p172 = scmp.eq.s32.totalorder %s41, 0
      %p173 = por %p171, %p172
      %s175 = sadd.s32 %s174, 1
      %p178 = scmp.eq.s32.totalorder %s35, 1
      %p179 = scmp.ne.s32.totalorder %s174, %s176
      %p180 = scmp.eq.s32.totalorder %s35, 0
      %p181 = por %p179, %p180
      %p182 = scmp.ne.s32.totalorder %s174, %s176
      %p183 = scmp.eq.s32.totalorder %s40, 1
      %p184 = por %p182, %p183
      %p185 = scmp.ne.s32.totalorder %s176, %s177
      %p186 = scmp.eq.s32.totalorder %s40, 0
      %p187 = por %p185, %p186
      %p188 = scmp.ne.s32.totalorder %s176, %s177
      %p189 = scmp.eq.s32.totalorder %s41, 1
      %p190 = por %p188, %p189
      %p192 = scmp.ne.s32.totalorder %s177, %s191
      %p193 = scmp.eq.s32.totalorder %s41, 0
      %p194 = por %p192, %p193
      %s196 = sadd.s32 %s195, 1
      %p199 = scmp.eq.s32.totalorder %s35, 1
      %p200 = scmp.ne.s32.totalorder %s195, %s197
      %p201 = scmp.eq.s32.totalorder %s35, 0
      %p202 = por %p200, %p201
      %p203 = scmp.ne.s32.totalorder %s195, %s197
      %p204 = scmp.eq.s32.totalorder %s40, 1
      %p205 = por %p203, %p204
      %p206 = scmp.ne.s32.totalorder %s197, %s198
      %p207 = scmp.eq.s32.totalorder %s40, 0
      %p208 = por %p206, %p207
      %p209 = scmp.ne.s32.totalorder %s197, %s198
      %p210 = scmp.eq.s32.totalorder %s41, 1
      %p211 = por %p209, %p210
      %p213 = scmp.ne.s32.totalorder %s198, %s212
      %p214 = scmp.eq.s32.totalorder %s41, 0
      %p215 = por %p213, %p214
      %s217 = sadd.s32 %s216, 1
      %p220 = scmp.eq.s32.totalorder %s35, 1
      %p221 = scmp.ne.s32.totalorder %s216, %s218
      %p222 = scmp.eq.s32.totalorder %s35, 0
      %p223 = por %p221, %p222
      %p224 = scmp.ne.s32.totalorder %s216, %s218
      %p225 = scmp.eq.s32.totalorder %s40, 1
      %p226 = por %p224, %p225
      %p227 = scmp.ne.s32.totalorder %s218, %s219
      %p228 = scmp.eq.s32.totalorder %s40, 0
      %p229 = por %p227, %p228
      %p230 = scmp.ne.s32.totalorder %s218, %s219
      %p231 = scmp.eq.s32.totalorder %s41, 1
      %p232 = por %p230, %p231
      %p234 = scmp.ne.s32.totalorder %s219, %s233
      %p235 = scmp.eq.s32.totalorder %s41, 0
      %p236 = por %p234, %p235
      %s238 = sadd.s32 %s237, 1
      %p241 = scmp.eq.s32.totalorder %s35, 1
      %p242 = scmp.ne.s32.totalorder %s237, %s239
      %p243 = scmp.eq.s32.totalorder %s35, 0
      %p244 = por %p242, %p243
      %p245 = scmp.ne.s32.totalorder %s237, %s239
      %p246 = scmp.eq.s32.totalorder %s40, 1
      %p247 = por %p245, %p246
      %p248 = scmp.ne.s32.totalorder %s239, %s240
      %p249 = scmp.eq.s32.totalorder %s40, 0
      %p250 = por %p248, %p249
      %p251 = scmp.ne.s32.totalorder %s239, %s240
      %p252 = scmp.eq.s32.totalorder %s41, 1
      %p253 = por %p251, %p252
      %p255 = scmp.ne.s32.totalorder %s240, %s254
      %p256 = scmp.eq.s32.totalorder %s41, 0
      %p257 = por %p255, %p256
      %s259 = sadd.s32 %s258, 1
      %p262 = scmp.eq.s32.totalorder %s35, 1
      %p263 = scmp.ne.s32.totalorder %s258, %s260
      %p264 = scmp.eq.s32.totalorder %s35, 0
      %p265 = por %p263, %p264
      %p266 = scmp.ne.s32.totalorder %s258, %s260
      %p267 = scmp.eq.s32.totalorder %s40, 1
      %p268 = por %p266, %p267
      %p269 = scmp.ne.s32.totalorder %s260, %s261
      %p270 = scmp.eq.s32.totalorder %s40, 0
      %p271 = por %p269, %p270
      %p272 = scmp.ne.s32.totalorder %s260, %s261
      %p273 = scmp.eq.s32.totalorder %s41, 1
      %p274 = por %p272, %p273
      %p276 = scmp.ne.s32.totalorder %s261, %s275
      %p277 = scmp.eq.s32.totalorder %s41, 0
      %p278 = por %p276, %p277
      %s280 = sadd.s32 %s279, 1
      %p283 = scmp.eq.s32.totalorder %s35, 1
      %p284 = scmp.ne.s32.totalorder %s279, %s281
      %p285 = scmp.eq.s32.totalorder %s35, 0
      %p286 = por %p284, %p285
      %p287 = scmp.ne.s32.totalorder %s279, %s281
      %p288 = scmp.eq.s32.totalorder %s40, 1
      %p289 = por %p287, %p288
      %p290 = scmp.ne.s32.totalorder %s281, %s282
      %p291 = scmp.eq.s32.totalorder %s40, 0
      %p292 = por %p290, %p291
      %p293 = scmp.ne.s32.totalorder %s281, %s282
      %p294 = scmp.eq.s32.totalorder %s41, 1
      %p295 = por %p293, %p294
      %p297 = scmp.ne.s32.totalorder %s282, %s296
      %p298 = scmp.eq.s32.totalorder %s41, 0
      %p299 = por %p297, %p298
      %s300 = ssub.s32 %s35, %s42
      %p301 = scmp.eq.s32.totalorder %s300, 0
      %s303 = sadd.s32 %s302, 1
      %s304 = scalar_select %p301, %s302, %s303
      %p307 = pneg %p301
      %p308 = scmp.eq.s32.totalorder %s35, 1
      %p309 = por %p307, %p308
      %p310 = scmp.ne.s32.totalorder %s302, %s305
      %p311 = scmp.eq.s32.totalorder %s35, 0
      %p312 = por %p310, %p311
      %p313 = scmp.ne.s32.totalorder %s302, %s305
      %p314 = scmp.eq.s32.totalorder %s40, 1
      %p315 = por %p313, %p314
      %p316 = scmp.ne.s32.totalorder %s305, %s306
      %p317 = scmp.eq.s32.totalorder %s40, 0
      %p318 = por %p316, %p317
      %p319 = scmp.ne.s32.totalorder %s305, %s306
      %p320 = scmp.eq.s32.totalorder %s41, 1
      %p321 = por %p319, %p320
      %p323 = scmp.ne.s32.totalorder %s306, %s322
      %p324 = scmp.eq.s32.totalorder %s41, 0
      %p325 = por %p323, %p324
      %s326 = ssub.s32 %s35, %s42
      %p327 = scmp.eq.s32.totalorder %s326, 0
      %s329 = sadd.s32 %s328, 1
      %s330 = scalar_select %p327, %s328, %s329
      %p333 = pneg %p327
      %p334 = scmp.eq.s32.totalorder %s35, 1
      %p335 = por %p333, %p334
      %p336 = scmp.ne.s32.totalorder %s328, %s331
      %p337 = scmp.eq.s32.totalorder %s35, 0
      %p338 = por %p336, %p337
      %p339 = scmp.ne.s32.totalorder %s328, %s331
      %p340 = scmp.eq.s32.totalorder %s40, 1
      %p341 = por %p339, %p340
      %p342 = scmp.ne.s32.totalorder %s331, %s332
      %p343 = scmp.eq.s32.totalorder %s40, 0
      %p344 = por %p342, %p343
      %p345 = scmp.ne.s32.totalorder %s331, %s332
      %p346 = scmp.eq.s32.totalorder %s41, 1
      %p347 = por %p345, %p346
      %p349 = scmp.ne.s32.totalorder %s332, %s348
      %p350 = scmp.eq.s32.totalorder %s41, 0
      %p351 = por %p349, %p350
      %p352 = scmp.le.s32.totalorder 1, %s35
      %p353 = scmp.lt.s32.totalorder %s35, 3
      %p354 = pnand %p352, %p353
      %p355 = pneg %p354
      // Predicated region
      $region9: #{tpu_custom_call.1} parent=5 // pred_check
        _
      $region10: #{tpu_custom_call.1} parent=5 // pred_check_branch
        %357 = sbr.rel (%p354) target = $region12
      $region11: #{tpu_custom_call.1} parent=5 // pred_region
        %s358 = ssub.s32 %s35, 1
        // Predicated region
        $region13: #{tpu_custom_call.1} parent=11 // pred_check
          %p359 = pneg %p82
        $region14: #{tpu_custom_call.1} parent=11 // pred_check_branch
          %361 = sbr.rel (%p359) target = $region16
        $region15: #{tpu_custom_call.1} parent=11 // pred_region
          %s363 = ssub.s32 256, 256
          %364 = vsyncadd [#allocation8], %s363
          %s365 = sshll.u32 [#allocation7], 4
          %s366 = int_to_ptr.vmem [resolvable:$true] %s365
          %371 = dma.hbm_to_vmem [thread:$0]  %s1, 256, %s366, [#allocation8], 64, 64, 4
        $region16: #{tpu_custom_call.1} parent=11 // pred_fallthru
          _
        // Predicated region
        $region17: #{tpu_custom_call.1} parent=11 // pred_check
          %p372 = pneg %p103
        $region18: #{tpu_custom_call.1} parent=11 // pred_check_branch
          %374 = sbr.rel (%p372) target = $region20
        $region19: #{tpu_custom_call.1} parent=11 // pred_region
          %s376 = ssub.s32 256, 256
          %377 = vsyncadd [#allocation8], %s376
          %s378 = sshll.u32 [#allocation9], 4
          %s379 = int_to_ptr.vmem [resolvable:$true] %s378
          %384 = dma.hbm_to_vmem [thread:$0]  %s2, 256, %s379, [#allocation8], 64, 64, 4
        $region20: #{tpu_custom_call.1} parent=11 // pred_fallthru
          _
        // Predicated region
        $region21: #{tpu_custom_call.1} parent=11 // pred_check
          %p385 = pneg %p124
        $region22: #{tpu_custom_call.1} parent=11 // pred_check_branch
          %387 = sbr.rel (%p385) target = $region24
        $region23: #{tpu_custom_call.1} parent=11 // pred_region
          %s389 = ssub.s32 16, 16
          %390 = vsyncadd [#allocation11], %s389
          %s392 = sshll.u32 [#allocation10], 4
          %s393 = int_to_ptr.vmem [resolvable:$true] %s392
          %395 = dma.hbm_to_vmem [thread:$0]  %s3, 16, %s393, [#allocation11]
        $region24: #{tpu_custom_call.1} parent=11 // pred_fallthru
          _
        // Predicated region
        $region25: #{tpu_custom_call.1} parent=11 // pred_check
          %p396 = pneg %p145
        $region26: #{tpu_custom_call.1} parent=11 // pred_check_branch
          %398 = sbr.rel (%p396) target = $region28
        $region27: #{tpu_custom_call.1} parent=11 // pred_region
          %s400 = ssub.s32 256, 256
          %401 = vsyncadd [#allocation11], %s400
          %s402 = sshll.u32 [#allocation12], 4
          %s403 = int_to_ptr.vmem [resolvable:$true] %s402
          %408 = dma.hbm_to_vmem [thread:$0]  %s4, 256, %s403, [#allocation11], 64, 64, 4
        $region28: #{tpu_custom_call.1} parent=11 // pred_fallthru
          _
        // Predicated region
        $region29: #{tpu_custom_call.1} parent=11 // pred_check
          %p409 = pneg %p166
        $region30: #{tpu_custom_call.1} parent=11 // pred_check_branch
          %411 = sbr.rel (%p409) target = $region32
        $region31: #{tpu_custom_call.1} parent=11 // pred_region
          %s413 = ssub.s32 16, 16
          %414 = vsyncadd [#allocation14], %s413
          %s416 = sshll.u32 [#allocation13], 4
          %s417 = int_to_ptr.vmem [resolvable:$true] %s416
          %419 = dma.hbm_to_vmem [thread:$0]  %s5, 16, %s417, [#allocation14]
        $region32: #{tpu_custom_call.1} parent=11 // pred_fallthru
          _
        // Predicated region
        $region33: #{tpu_custom_call.1} parent=11 // pred_check
          %p420 = pneg %p187
        $region34: #{tpu_custom_call.1} parent=11 // pred_check_branch
          %422 = sbr.rel (%p420) target = $region36
        $region35: #{tpu_custom_call.1} parent=11 // pred_region
          %s424 = ssub.s32 1024, 1024
          %425 = vsyncadd [#allocation14], %s424
          %s426 = sshll.u32 [#allocation15], 4
          %s427 = int_to_ptr.vmem [resolvable:$true] %s426
          %432 = dma.hbm_to_vmem [thread:$0]  %s6, 1024, %s427, [#allocation14], 64, 64, 4
        $region36: #{tpu_custom_call.1} parent=11 // pred_fallthru
          _
        // Predicated region
        $region37: #{tpu_custom_call.1} parent=11 // pred_check
          %p433 = pneg %p208
        $region38: #{tpu_custom_call.1} parent=11 // pred_check_branch
          %435 = sbr.rel (%p433) target = $region40
        $region39: #{tpu_custom_call.1} parent=11 // pred_region
          %s437 = ssub.s32 16, 16
          %438 = vsyncadd [#allocation17], %s437
          %s440 = sshll.u32 [#allocation16], 4
          %s441 = int_to_ptr.vmem [resolvable:$true] %s440
          %443 = dma.hbm_to_vmem [thread:$0]  %s7, 16, %s441, [#allocation17]
        $region40: #{tpu_custom_call.1} parent=11 // pred_fallthru
          _
        // Predicated region
        $region41: #{tpu_custom_call.1} parent=11 // pred_check
          %p444 = pneg %p229
        $region42: #{tpu_custom_call.1} parent=11 // pred_check_branch
          %446 = sbr.rel (%p444) target = $region44
        $region43: #{tpu_custom_call.1} parent=11 // pred_region
          %s448 = ssub.s32 16, 16
          %449 = vsyncadd [#allocation17], %s448
          %s451 = sshll.u32 [#allocation18], 4
          %s452 = int_to_ptr.vmem [resolvable:$true] %s451
          %454 = dma.hbm_to_vmem [thread:$0]  %s8, 16, %s452, [#allocation17]
        $region44: #{tpu_custom_call.1} parent=11 // pred_fallthru
          _
        // Predicated region
        $region45: #{tpu_custom_call.1} parent=11 // pred_check
          %p455 = pneg %p250
        $region46: #{tpu_custom_call.1} parent=11 // pred_check_branch
          %457 = sbr.rel (%p455) target = $region48
        $region47: #{tpu_custom_call.1} parent=11 // pred_region
          %s459 = ssub.s32 16, 16
          %460 = vsyncadd [#allocation20], %s459
          %s462 = sshll.u32 [#allocation19], 4
          %s463 = int_to_ptr.vmem [resolvable:$true] %s462
          %465 = dma.hbm_to_vmem [thread:$0]  %s9, 16, %s463, [#allocation20]
        $region48: #{tpu_custom_call.1} parent=11 // pred_fallthru
          _
        // Predicated region
        $region49: #{tpu_custom_call.1} parent=11 // pred_check
          %p466 = pneg %p271
        $region50: #{tpu_custom_call.1} parent=11 // pred_check_branch
          %468 = sbr.rel (%p466) target = $region52
        $region51: #{tpu_custom_call.1} parent=11 // pred_region
          %s470 = ssub.s32 16, 16
          %471 = vsyncadd [#allocation20], %s470
          %s473 = sshll.u32 [#allocation21], 4
          %s474 = int_to_ptr.vmem [resolvable:$true] %s473
          %476 = dma.hbm_to_vmem [thread:$0]  %s10, 16, %s474, [#allocation20]
        $region52: #{tpu_custom_call.1} parent=11 // pred_fallthru
          _
        // Predicated region
        $region53: #{tpu_custom_call.1} parent=11 // pred_check
          %p477 = pneg %p292
        $region54: #{tpu_custom_call.1} parent=11 // pred_check_branch
          %479 = sbr.rel (%p477) target = $region56
        $region55: #{tpu_custom_call.1} parent=11 // pred_region
          %s481 = ssub.s32 16, 16
          %482 = vsyncadd [#allocation23], %s481
          %s484 = sshll.u32 [#allocation22], 4
          %s485 = int_to_ptr.vmem [resolvable:$true] %s484
          %487 = dma.hbm_to_vmem [thread:$0]  %s11, 16, %s485, [#allocation23]
        $region56: #{tpu_custom_call.1} parent=11 // pred_fallthru
          _
      $region12: #{tpu_custom_call.1} parent=5 // pred_fallthru
        _
      %p488 = scmp.lt.s32.totalorder %s35, 2
      // Predicated region
      $region57: #{tpu_custom_call.1} parent=5 // pred_check
        %p489 = pneg %p488
      $region58: #{tpu_custom_call.1} parent=5 // pred_check_branch
        %491 = sbr.rel (%p489) target = $region60
      $region59: #{tpu_custom_call.1} parent=5 // pred_region
        // Predicated region
        $region61: #{tpu_custom_call.1} parent=59 // pred_check
          %p492 = pneg %p55
        $region62: #{tpu_custom_call.1} parent=59 // pred_check_branch
          %494 = sbr.rel (%p492) target = $region64
        $region63: #{tpu_custom_call.1} parent=59 // pred_region
          %s495 = sand.u32 %s45, 1
          %s496 = scalar_lea.sflag [#allocation5], %s495
          %s497 = sand.u32 %s45, 1
          %s498 = smul.addr %s497, 8
          %s499 = scalar_lea.vmem [#allocation4], %s498
          %s501 = ssub.s32 128, 128
          %502 = vsyncadd %s496, %s501
          %s503 = smul.addr %s35, 128
          %s504 = scalar_lea.hbm %s0, %s503
          %s506 = sshll.u32 %s499, 4
          %s507 = int_to_ptr.vmem [resolvable:$true] %s506
          %509 = dma.hbm_to_vmem [thread:$0]  %s504, 128, %s507, %s496
        $region64: #{tpu_custom_call.1} parent=59 // pred_fallthru
          _
      $region60: #{tpu_custom_call.1} parent=5 // pred_fallthru
        _
      %p510 = scmp.le.s32.totalorder 1, %s35
      %p511 = scmp.lt.s32.totalorder %s35, 3
      %p512 = pnand %p510, %p511
      %p513 = pneg %p512
      // Predicated region
      $region65: #{tpu_custom_call.1} parent=5 // pred_check
        _
      $region66: #{tpu_custom_call.1} parent=5 // pred_check_branch
        %515 = sbr.rel (%p512) target = $region68
      $region67: #{tpu_custom_call.1} parent=5 // pred_region
        %s516 = ssub.s32 %s35, 1
        %s517 = sand.u32 %s48, 1
        %s518 = scalar_lea.sflag [#allocation5], %s517
        %s519 = sand.u32 %s48, 1
        %s520 = smul.addr %s519, 8
        %s521 = scalar_lea.vmem [#allocation4], %s520
        // Predicated region
        $region69: #{tpu_custom_call.1} parent=67 // pred_check
          %p522 = pneg %p61
        $region70: #{tpu_custom_call.1} parent=67 // pred_check_branch
          %524 = sbr.rel (%p522) target = $region72
        $region71: #{tpu_custom_call.1} parent=67 // pred_region
          %525 = dma.done %s518, 128
        $region72: #{tpu_custom_call.1} parent=67 // pred_fallthru
          _
        // Predicated region
        $region73: #{tpu_custom_call.1} parent=67 // pred_check
          %p526 = pneg %p82
        $region74: #{tpu_custom_call.1} parent=67 // pred_check_branch
          %528 = sbr.rel (%p526) target = $region76
        $region75: #{tpu_custom_call.1} parent=67 // pred_region
          %529 = dma.done [#allocation8], 256
        $region76: #{tpu_custom_call.1} parent=67 // pred_fallthru
          _
        // Predicated region
        $region77: #{tpu_custom_call.1} parent=67 // pred_check
          %p530 = pneg %p103
        $region78: #{tpu_custom_call.1} parent=67 // pred_check_branch
          %532 = sbr.rel (%p530) target = $region80
        $region79: #{tpu_custom_call.1} parent=67 // pred_region
          %533 = dma.done [#allocation8], 256
        $region80: #{tpu_custom_call.1} parent=67 // pred_fallthru
          _
        // Predicated region
        $region81: #{tpu_custom_call.1} parent=67 // pred_check
          %p534 = pneg %p124
        $region82: #{tpu_custom_call.1} parent=67 // pred_check_branch
          %536 = sbr.rel (%p534) target = $region84
        $region83: #{tpu_custom_call.1} parent=67 // pred_region
          %537 = dma.done [#allocation11], 16
        $region84: #{tpu_custom_call.1} parent=67 // pred_fallthru
          _
        // Predicated region
        $region85: #{tpu_custom_call.1} parent=67 // pred_check
          %p538 = pneg %p145
        $region86: #{tpu_custom_call.1} parent=67 // pred_check_branch
          %540 = sbr.rel (%p538) target = $region88
        $region87: #{tpu_custom_call.1} parent=67 // pred_region
          %541 = dma.done [#allocation11], 256
        $region88: #{tpu_custom_call.1} parent=67 // pred_fallthru
          _
        // Predicated region
        $region89: #{tpu_custom_call.1} parent=67 // pred_check
          %p542 = pneg %p166
        $region90: #{tpu_custom_call.1} parent=67 // pred_check_branch
          %544 = sbr.rel (%p542) target = $region92
        $region91: #{tpu_custom_call.1} parent=67 // pred_region
          %545 = dma.done [#allocation14], 16
        $region92: #{tpu_custom_call.1} parent=67 // pred_fallthru
          _
        // Predicated region
        $region93: #{tpu_custom_call.1} parent=67 // pred_check
          %p546 = pneg %p187
        $region94: #{tpu_custom_call.1} parent=67 // pred_check_branch
          %548 = sbr.rel (%p546) target = $region96
        $region95: #{tpu_custom_call.1} parent=67 // pred_region
          %549 = dma.done [#allocation14], 1024
        $region96: #{tpu_custom_call.1} parent=67 // pred_fallthru
          _
        // Predicated region
        $region97: #{tpu_custom_call.1} parent=67 // pred_check
          %p550 = pneg %p208
        $region98: #{tpu_custom_call.1} parent=67 // pred_check_branch
          %552 = sbr.rel (%p550) target = $region100
        $region99: #{tpu_custom_call.1} parent=67 // pred_region
          %553 = dma.done [#allocation17], 16
        $region100: #{tpu_custom_call.1} parent=67 // pred_fallthru
          _
        // Predicated region
        $region101: #{tpu_custom_call.1} parent=67 // pred_check
          %p554 = pneg %p229
        $region102: #{tpu_custom_call.1} parent=67 // pred_check_branch
          %556 = sbr.rel (%p554) target = $region104
        $region103: #{tpu_custom_call.1} parent=67 // pred_region
          %557 = dma.done [#allocation17], 16
        $region104: #{tpu_custom_call.1} parent=67 // pred_fallthru
          _
        // Predicated region
        $region105: #{tpu_custom_call.1} parent=67 // pred_check
          %p558 = pneg %p250
        $region106: #{tpu_custom_call.1} parent=67 // pred_check_branch
          %560 = sbr.rel (%p558) target = $region108
        $region107: #{tpu_custom_call.1} parent=67 // pred_region
          %561 = dma.done [#allocation20], 16
        $region108: #{tpu_custom_call.1} parent=67 // pred_fallthru
          _
        // Predicated region
        $region109: #{tpu_custom_call.1} parent=67 // pred_check
          %p562 = pneg %p271
        $region110: #{tpu_custom_call.1} parent=67 // pred_check_branch
          %564 = sbr.rel (%p562) target = $region112
        $region111: #{tpu_custom_call.1} parent=67 // pred_region
          %565 = dma.done [#allocation20], 16
        $region112: #{tpu_custom_call.1} parent=67 // pred_fallthru
          _
        // Predicated region
        $region113: #{tpu_custom_call.1} parent=67 // pred_check
          %p566 = pneg %p292
        $region114: #{tpu_custom_call.1} parent=67 // pred_check_branch
          %568 = sbr.rel (%p566) target = $region116
        $region115: #{tpu_custom_call.1} parent=67 // pred_region
          %569 = dma.done [#allocation23], 16
        $region116: #{tpu_custom_call.1} parent=67 // pred_fallthru
          _
        %s570 = sand.u32 %s48, 1
        %s571 = scalar_lea.sflag [#allocation5], %s570
        %s572 = sand.u32 %s48, 1
        %s573 = smul.addr %s572, 8
        %s574 = scalar_lea.vmem [#allocation4], %s573
        %p575 = pneg %p61
        %p576 = pneg %p58
        %p577 = pneg %p82
        %p578 = pneg %p79
        %p579 = pneg %p103
        %p580 = pneg %p100
        %p581 = pneg %p124
        %p582 = pneg %p121
        %p583 = pneg %p145
        %p584 = pneg %p142
        %p585 = pneg %p166
        %p586 = pneg %p163
        %p587 = pneg %p187
        %p588 = pneg %p184
        %p589 = pneg %p208
        %p590 = pneg %p205
        %p591 = pneg %p229
        %p592 = pneg %p226
        %p593 = pneg %p250
        %p594 = pneg %p247
        %p595 = pneg %p271
        %p596 = pneg %p268
        %p597 = pneg %p292
        %p598 = pneg %p289
        %p599 = pneg %p318
        %p600 = pneg %p315
        %s601 = sand.u32 %s305, 1
        %s602 = scalar_lea.sflag [#allocation6], %s601
        %s603 = sand.u32 %s305, 1
        %s604 = smul.addr %s603, 8
        %s605 = scalar_lea.vmem [#allocation24], %s604
        %p606 = pneg %p344
        %p607 = pneg %p341
        %s608 = sand.u32 %s331, 1
        %s609 = scalar_lea.sflag [#allocation26], %s608
        %s610 = sand.u32 %s331, 1
        %s611 = smul.addr %s610, 16
        %s612 = scalar_lea.vmem [#allocation25], %s611
        %v614 = vld [vmem:[%s521] sm:$0xff]
        %v615 = vld [vmem:[#allocation18] sm:$0x1]
        %v616 = vld [vmem:[#allocation19] sm:$0x1]
        %vm617 = vcmask 261120
        %v618 = vsel %vm617, %v614, 0.0
        %619 = vadd.xlane.f32.xlu0 %v618
        %v620 = vpop.xlane.xlu0 %619
        %v621 = vrcp.pop 32.0
        %v622 = vmul.f32 %v620, %v621
        %v623 = vsub.f32 %v614, %v622
        %v624 = vmul.f32 %v623, %v623
        %v625 = vsel %vm617, %v624, 0.0
        %626 = vadd.xlane.f32.xlu0 %v625
        %v627 = vpop.xlane.xlu0 %626
        %v628 = vmul.f32 %v627, %v621
        %v629 = vadd.f32 %v628, 1e-05
        %v630 = vrsqrt.pop %v629
        %v631 = vmul.f32 %v623, %v630
        %v633 = vlaneseq
        %v634 = vshrl.u32 %v633, 7
        %v635 = vsub.s32 0, %v634
        %v636 = vrot.slane %v615, %v635
        %v638 = vmul.f32 %v631, %v636
        %v640 = vlaneseq
        %v641 = vshrl.u32 %v640, 7
        %v642 = vsub.s32 0, %v641
        %v643 = vrot.slane %v616, %v642
        %v645 = vadd.f32 %v638, %v643
        %v646 = vpack.c.bf16 %v645, %v645
        %v647 = vld [vmem:[#allocation7] sm:$0xf]
        %v648 = vld [vmem:[#allocation7 + $0x4] sm:$0xf]
        %v649 = vld [vmem:[#allocation7 + $0x8] sm:$0xf]
        %v650 = vld [vmem:[#allocation7 + $0xc] sm:$0xf]
        %v655 = vunpack.c.l.b16 %v647
        %v656 = vunpack.c.l.b16 %v648
        %v657 = vunpack.c.l.b16 %v649
        %v658 = vunpack.c.l.b16 %v650
        %v659 = vpack.c.b16 %v656, %v655
        %v660 = vpack.c.b16 %v658, %v657
        %v664 = vsel %vm617, %v646, 0
        %666 = vmatprep.subr.bf16.mxu0 0
        %667 = vmatpush1.bf16.msra.mxu0 %v659
        %668 = vmatprep.subr.bf16.mxu0 0
        %669 = vmatpush1.bf16.msra.mxu0 %v660
        %670 = vmatprep.subr.bf16.mxu0 0
        %671 = vmatpush1.bf16.msra.mxu0 0
        %672 = vmatprep.subr.bf16.mxu0 0
        %673 = vmatpush1.bf16.msra.mxu0 0
        %674 = vmatprep.subr.bf16.mxu0 0
        %675 = vmatpush1.bf16.msra.mxu0 0
        %676 = vmatprep.subr.bf16.mxu0 0
        %677 = vmatpush1.bf16.msra.mxu0 0
        %678 = vmatprep.subr.bf16.mxu0 0
        %679 = vmatpush1.bf16.msra.mxu0 0
        %680 = vmatprep.subr.bf16.mxu0 0
        %681 = vmatpush1.bf16.msra.mxu0 0
        %682 = vmatprep.subr.bf16.mxu0 0
        %683 = vmatpush1.bf16.msra.mxu0 0
        %684 = vmatprep.subr.bf16.mxu0 0
        %685 = vmatpush1.bf16.msra.mxu0 0
        %686 = vmatprep.subr.bf16.mxu0 0
        %687 = vmatpush1.bf16.msra.mxu0 0
        %688 = vmatprep.subr.bf16.mxu0 0
        %689 = vmatpush1.bf16.msra.mxu0 0
        %690 = vmatprep.subr.bf16.mxu0 0
        %691 = vmatpush1.bf16.msra.mxu0 0
        %692 = vmatprep.subr.bf16.mxu0 0
        %693 = vmatpush1.bf16.msra.mxu0 0
        %694 = vmatprep.subr.bf16.mxu0 0
        %695 = vmatpush1.bf16.msra.mxu0 0
        %696 = vmatprep.subr.bf16.mxu0 0
        %697 = vmatpush1.bf16.msra.mxu0 0
        %698 = vmatprep.mubr.bf16.mxu0 0
        %699 = vmatmul.mubr.bf16.gmra.mrb[0].mxu0 %v664
        %v700 = vpop.f32.mrb[0].mxu0
        %v701 = vadd.f32 0.0, %v700
        %v702 = vpop.f32.mrb[0].mxu0
        %v703 = vpop.f32.mrb[0].mxu0
        %v704 = vpop.f32.mrb[0].mxu0
        %705 = vdwg.mxu0
        %v706 = vpack.c.bf16 %v701, %v701
        %vm707 = vcmask 781312
        %708 = vst.msk [vmem:[#allocation2] sm:$0xf] %vm707, %v706
        %v709 = vld [vmem:[#allocation2] sm:$0xf]
        %v711 = vunpack.c.l.b16 %v709
        %v712 = vpack.c.b16 %v711, %v711
        %713 = vrot.lane.b32.xlu0 %v712, 96
        %v714 = vpop.permute.xlu0 %713
        %vm715 = vcmask 64512
        %v717 = vsel %vm715, %v709, 0
        %v720 = vsel %vm715, %v714, 0
        %722 = vmatprep.subr.bf16.mxu0 0
        %723 = vmatpush1.bf16.xpose.msra.mxu0 %v720
        %724 = vmatprep.subr.bf16.mxu0 0
        %725 = vmatpush1.bf16.xpose.msra.mxu0 0
        %726 = vmatprep.subr.bf16.mxu0 0
        %727 = vmatpush1.bf16.xpose.msra.mxu0 0
        %728 = vmatprep.subr.bf16.mxu0 0
        %729 = vmatpush1.bf16.xpose.msra.mxu0 0
        %730 = vmatprep.subr.bf16.mxu0 0
        %731 = vmatpush1.bf16.xpose.msra.mxu0 0
        %732 = vmatprep.subr.bf16.mxu0 0
        %733 = vmatpush1.bf16.xpose.msra.mxu0 0
        %734 = vmatprep.subr.bf16.mxu0 0
        %735 = vmatpush1.bf16.xpose.msra.mxu0 0
        %736 = vmatprep.subr.bf16.mxu0 0
        %737 = vmatpush1.bf16.xpose.msra.mxu0 0
        %738 = vmatprep.subr.bf16.mxu0 0
        %739 = vmatpush1.bf16.xpose.msra.mxu0 0
        %740 = vmatprep.subr.bf16.mxu0 0
        %741 = vmatpush1.bf16.xpose.msra.mxu0 0
        %742 = vmatprep.subr.bf16.mxu0 0
        %743 = vmatpush1.bf16.xpose.msra.mxu0 0
        %744 = vmatprep.subr.bf16.mxu0 0
        %745 = vmatpush1.bf16.xpose.msra.mxu0 0
        %746 = vmatprep.subr.bf16.mxu0 0
        %747 = vmatpush1.bf16.xpose.msra.mxu0 0
        %748 = vmatprep.subr.bf16.mxu0 0
        %749 = vmatpush1.bf16.xpose.msra.mxu0 0
        %750 = vmatprep.subr.bf16.mxu0 0
        %751 = vmatpush1.bf16.xpose.msra.mxu0 0
        %752 = vmatprep.subr.bf16.mxu0 0
        %753 = vmatpush1.bf16.xpose.msra.mxu0 0
        %754 = vmatprep.mubr.bf16.mxu0 0
        %755 = vmatmul.mubr.bf16.gmra.mrb[0].mxu0 %v717
        %v756 = vpop.f32.mrb[0].mxu0
        %v757 = vadd.f32 0.0, %v756
        %v758 = vpop.f32.mrb[0].mxu0
        %v759 = vpop.f32.mrb[0].mxu0
        %v760 = vpop.f32.mrb[0].mxu0
        %761 = vdwg.mxu0
        %v762 = vsel %vm715, %v757, -inf
        %763 = vmax.xlane.f32.xlu0 %v762
        %v764 = vpop.xlane.xlu0 %763
        %v765 = vsub.f32 %v757, %v764
        %v766 = vmul.f32 %v765, 1.442695
        %v767 = vpow.pop %v766
        %v768 = vsel %vm715, %v767, 0.0
        %769 = vadd.xlane.f32.xlu0 %v768
        %v770 = vpop.xlane.xlu0 %769
        %v771 = vrcp.pop %v770
        %v772 = vmul.f32 %v767, %v771
        %v773 = vpack.c.bf16 %v772, %v772
        %vm774 = vcmask 60416
        %775 = vst.msk [vmem:[%s612] sm:$0xf] %vm774, %v773
        %776 = vrot.lane.b32.xlu0 %v712, 64
        %v777 = vpop.permute.xlu0 %776
        %v779 = vsel %vm715, %v773, 0
        %vm781 = vcmask 1043456
        %v783 = vsel %vm781, %v777, 0
        %785 = vmatprep.subr.bf16.mxu0 0
        %786 = vmatpush1.bf16.msra.mxu0 %v783
        %787 = vmatprep.subr.bf16.mxu0 0
        %788 = vmatpush1.bf16.msra.mxu0 0
        %789 = vmatprep.subr.bf16.mxu0 0
        %790 = vmatpush1.bf16.msra.mxu0 0
        %791 = vmatprep.subr.bf16.mxu0 0
        %792 = vmatpush1.bf16.msra.mxu0 0
        %793 = vmatprep.subr.bf16.mxu0 0
        %794 = vmatpush1.bf16.msra.mxu0 0
        %795 = vmatprep.subr.bf16.mxu0 0
        %796 = vmatpush1.bf16.msra.mxu0 0
        %797 = vmatprep.subr.bf16.mxu0 0
        %798 = vmatpush1.bf16.msra.mxu0 0
        %799 = vmatprep.subr.bf16.mxu0 0
        %800 = vmatpush1.bf16.msra.mxu0 0
        %801 = vmatprep.subr.bf16.mxu0 0
        %802 = vmatpush1.bf16.msra.mxu0 0
        %803 = vmatprep.subr.bf16.mxu0 0
        %804 = vmatpush1.bf16.msra.mxu0 0
        %805 = vmatprep.subr.bf16.mxu0 0
        %806 = vmatpush1.bf16.msra.mxu0 0
        %807 = vmatprep.subr.bf16.mxu0 0
        %808 = vmatpush1.bf16.msra.mxu0 0
        %809 = vmatprep.subr.bf16.mxu0 0
        %810 = vmatpush1.bf16.msra.mxu0 0
        %811 = vmatprep.subr.bf16.mxu0 0
        %812 = vmatpush1.bf16.msra.mxu0 0
        %813 = vmatprep.subr.bf16.mxu0 0
        %814 = vmatpush1.bf16.msra.mxu0 0
        %815 = vmatprep.subr.bf16.mxu0 0
        %816 = vmatpush1.bf16.msra.mxu0 0
        %817 = vmatprep.mubr.bf16.mxu0 0
        %818 = vmatmul.mubr.bf16.gmra.mrb[0].mxu0 %v779
        %v819 = vpop.f32.mrb[0].mxu0
        %v820 = vadd.f32 0.0, %v819
        %v821 = vpop.f32.mrb[0].mxu0
        %v822 = vpop.f32.mrb[0].mxu0
        %v823 = vpop.f32.mrb[0].mxu0
        %824 = vdwg.mxu0
        %v825 = vpack.c.bf16 %v820, %v820
        %826 = vst.msk [vmem:[#allocation3] sm:$0xf] %vm774, %v825
        %v827 = vld [vmem:[#allocation2] sm:$0xf]
        %v829 = vunpack.c.l.b16 %v827
        %v830 = vpack.c.b16 %v829, %v829
        %831 = vrot.lane.b32.xlu0 %v830, 120
        %v832 = vpop.permute.xlu0 %831
        %833 = vrot.lane.b32.xlu0 %v830, 88
        %v834 = vpop.permute.xlu0 %833
        %v836 = vsel %vm715, %v832, 0
        %v839 = vsel %vm715, %v834, 0
        %841 = vmatprep.subr.bf16.mxu0 0
        %842 = vmatpush1.bf16.xpose.msra.mxu0 %v839
        %843 = vmatprep.subr.bf16.mxu0 0
        %844 = vmatpush1.bf16.xpose.msra.mxu0 0
        %845 = vmatprep.subr.bf16.mxu0 0
        %846 = vmatpush1.bf16.xpose.msra.mxu0 0
        %847 = vmatprep.subr.bf16.mxu0 0
        %848 = vmatpush1.bf16.xpose.msra.mxu0 0
        %849 = vmatprep.subr.bf16.mxu0 0
        %850 = vmatpush1.bf16.xpose.msra.mxu0 0
        %851 = vmatprep.subr.bf16.mxu0 0
        %852 = vmatpush1.bf16.xpose.msra.mxu0 0
        %853 = vmatprep.subr.bf16.mxu0 0
        %854 = vmatpush1.bf16.xpose.msra.mxu0 0
        %855 = vmatprep.subr.bf16.mxu0 0
        %856 = vmatpush1.bf16.xpose.msra.mxu0 0
        %857 = vmatprep.subr.bf16.mxu0 0
        %858 = vmatpush1.bf16.xpose.msra.mxu0 0
        %859 = vmatprep.subr.bf16.mxu0 0
        %860 = vmatpush1.bf16.xpose.msra.mxu0 0
        %861 = vmatprep.subr.bf16.mxu0 0
        %862 = vmatpush1.bf16.xpose.msra.mxu0 0
        %863 = vmatprep.subr.bf16.mxu0 0
        %864 = vmatpush1.bf16.xpose.msra.mxu0 0
        %865 = vmatprep.subr.bf16.mxu0 0
        %866 = vmatpush1.bf16.xpose.msra.mxu0 0
        %867 = vmatprep.subr.bf16.mxu0 0
        %868 = vmatpush1.bf16.xpose.msra.mxu0 0
        %869 = vmatprep.subr.bf16.mxu0 0
        %870 = vmatpush1.bf16.xpose.msra.mxu0 0
        %871 = vmatprep.subr.bf16.mxu0 0
        %872 = vmatpush1.bf16.xpose.msra.mxu0 0
        %873 = vmatprep.mubr.bf16.mxu0 0
        %874 = vmatmul.mubr.bf16.gmra.mrb[0].mxu0 %v836
        %v875 = vpop.f32.mrb[0].mxu0
        %v876 = vadd.f32 0.0, %v875
        %v877 = vpop.f32.mrb[0].mxu0
        %v878 = vpop.f32.mrb[0].mxu0
        %v879 = vpop.f32.mrb[0].mxu0
        %880 = vdwg.mxu0
        %v881 = vsel %vm715, %v876, -inf
        %882 = vmax.xlane.f32.xlu0 %v881
        %v883 = vpop.xlane.xlu0 %882
        %v884 = vsub.f32 %v876, %v883
        %v885 = vmul.f32 %v884, 1.442695
        %v886 = vpow.pop %v885
        %v887 = vsel %vm715, %v886, 0.0
        %888 = vadd.xlane.f32.xlu0 %v887
        %v889 = vpop.xlane.xlu0 %888
        %v890 = vrcp.pop %v889
        %v891 = vmul.f32 %v886, %v890
        %v892 = vpack.c.bf16 %v891, %v891
        %s893 = scalar_lea.vmem %s612, 4 [#allocation25]
        %894 = vst.msk [vmem:[%s893] sm:$0xf] %vm774, %v892
        %895 = vrot.lane.b32.xlu0 %v830, 56
        %v896 = vpop.permute.xlu0 %895
        %v898 = vsel %vm715, %v892, 0
        %v901 = vsel %vm781, %v896, 0
        %903 = vmatprep.subr.bf16.mxu0 0
        %904 = vmatpush1.bf16.msra.mxu0 %v901
        %905 = vmatprep.subr.bf16.mxu0 0
        %906 = vmatpush1.bf16.msra.mxu0 0
        %907 = vmatprep.subr.bf16.mxu0 0
        %908 = vmatpush1.bf16.msra.mxu0 0
        %909 = vmatprep.subr.bf16.mxu0 0
        %910 = vmatpush1.bf16.msra.mxu0 0
        %911 = vmatprep.subr.bf16.mxu0 0
        %912 = vmatpush1.bf16.msra.mxu0 0
        %913 = vmatprep.subr.bf16.mxu0 0
        %914 = vmatpush1.bf16.msra.mxu0 0
        %915 = vmatprep.subr.bf16.mxu0 0
        %916 = vmatpush1.bf16.msra.mxu0 0
        %917 = vmatprep.subr.bf16.mxu0 0
        %918 = vmatpush1.bf16.msra.mxu0 0
        %919 = vmatprep.subr.bf16.mxu0 0
        %920 = vmatpush1.bf16.msra.mxu0 0
        %921 = vmatprep.subr.bf16.mxu0 0
        %922 = vmatpush1.bf16.msra.mxu0 0
        %923 = vmatprep.subr.bf16.mxu0 0
        %924 = vmatpush1.bf16.msra.mxu0 0
        %925 = vmatprep.subr.bf16.mxu0 0
        %926 = vmatpush1.bf16.msra.mxu0 0
        %927 = vmatprep.subr.bf16.mxu0 0
        %928 = vmatpush1.bf16.msra.mxu0 0
        %929 = vmatprep.subr.bf16.mxu0 0
        %930 = vmatpush1.bf16.msra.mxu0 0
        %931 = vmatprep.subr.bf16.mxu0 0
        %932 = vmatpush1.bf16.msra.mxu0 0
        %933 = vmatprep.subr.bf16.mxu0 0
        %934 = vmatpush1.bf16.msra.mxu0 0
        %935 = vmatprep.mubr.bf16.mxu0 0
        %936 = vmatmul.mubr.bf16.gmra.mrb[0].mxu0 %v898
        %v937 = vpop.f32.mrb[0].mxu0
        %v938 = vadd.f32 0.0, %v937
        %v939 = vpop.f32.mrb[0].mxu0
        %v940 = vpop.f32.mrb[0].mxu0
        %v941 = vpop.f32.mrb[0].mxu0
        %942 = vdwg.mxu0
        %v943 = vpack.c.bf16 %v938, %v938
        %v945 = vunpack.c.l.b16 %v943
        %v946 = vpack.c.b16 %v945, %v945
        %947 = vrot.lane.b32.xlu0 %v946, 8
        %v948 = vpop.permute.xlu0 %947
        %vm950 = vcmask 126016
        %951 = vst.msk [vmem:[#allocation3] sm:$0xf] %vm950, %v948
        %v952 = vld [vmem:[#allocation2] sm:$0xf]
        %v954 = vunpack.c.l.b16 %v952
        %v955 = vpack.c.b16 %v954, %v954
        %956 = vrot.lane.b32.xlu0 %v955, 112
        %v957 = vpop.permute.xlu0 %956
        %958 = vrot.lane.b32.xlu0 %v955, 80
        %v959 = vpop.permute.xlu0 %958
        %v961 = vsel %vm715, %v957, 0
        %v964 = vsel %vm715, %v959, 0
        %966 = vmatprep.subr.bf16.mxu0 0
        %967 = vmatpush1.bf16.xpose.msra.mxu0 %v964
        %968 = vmatprep.subr.bf16.mxu0 0
        %969 = vmatpush1.bf16.xpose.msra.mxu0 0
        %970 = vmatprep.subr.bf16.mxu0 0
        %971 = vmatpush1.bf16.xpose.msra.mxu0 0
        %972 = vmatprep.subr.bf16.mxu0 0
        %973 = vmatpush1.bf16.xpose.msra.mxu0 0
        %974 = vmatprep.subr.bf16.mxu0 0
        %975 = vmatpush1.bf16.xpose.msra.mxu0 0
        %976 = vmatprep.subr.bf16.mxu0 0
        %977 = vmatpush1.bf16.xpose.msra.mxu0 0
        %978 = vmatprep.subr.bf16.mxu0 0
        %979 = vmatpush1.bf16.xpose.msra.mxu0 0
        %980 = vmatprep.subr.bf16.mxu0 0
        %981 = vmatpush1.bf16.xpose.msra.mxu0 0
        %982 = vmatprep.subr.bf16.mxu0 0
        %983 = vmatpush1.bf16.xpose.msra.mxu0 0
        %984 = vmatprep.subr.bf16.mxu0 0
        %985 = vmatpush1.bf16.xpose.msra.mxu0 0
        %986 = vmatprep.subr.bf16.mxu0 0
        %987 = vmatpush1.bf16.xpose.msra.mxu0 0
        %988 = vmatprep.subr.bf16.mxu0 0
        %989 = vmatpush1.bf16.xpose.msra.mxu0 0
        %990 = vmatprep.subr.bf16.mxu0 0
        %991 = vmatpush1.bf16.xpose.msra.mxu0 0
        %992 = vmatprep.subr.bf16.mxu0 0
        %993 = vmatpush1.bf16.xpose.msra.mxu0 0
        %994 = vmatprep.subr.bf16.mxu0 0
        %995 = vmatpush1.bf16.xpose.msra.mxu0 0
        %996 = vmatprep.subr.bf16.mxu0 0
        %997 = vmatpush1.bf16.xpose.msra.mxu0 0
        %998 = vmatprep.mubr.bf16.mxu0 0
        %999 = vmatmul.mubr.bf16.gmra.mrb[0].mxu0 %v961
        %v1000 = vpop.f32.mrb[0].mxu0
        %v1001 = vadd.f32 0.0, %v1000
        %v1002 = vpop.f32.mrb[0].mxu0
        %v1003 = vpop.f32.mrb[0].mxu0
        %v1004 = vpop.f32.mrb[0].mxu0
        %1005 = vdwg.mxu0
        %v1006 = vsel %vm715, %v1001, -inf
        %1007 = vmax.xlane.f32.xlu0 %v1006
        %v1008 = vpop.xlane.xlu0 %1007
        %v1009 = vsub.f32 %v1001, %v1008
        %v1010 = vmul.f32 %v1009, 1.442695
        %v1011 = vpow.pop %v1010
        %v1012 = vsel %vm715, %v1011, 0.0
        %1013 = vadd.xlane.f32.xlu0 %v1012
        %v1014 = vpop.xlane.xlu0 %1013
        %v1015 = vrcp.pop %v1014
        %v1016 = vmul.f32 %v1011, %v1015
        %v1017 = vpack.c.bf16 %v1016, %v1016
        %s1018 = scalar_lea.vmem %s612, 8 [#allocation25]
        %1019 = vst.msk [vmem:[%s1018] sm:$0xf] %vm774, %v1017
        %1020 = vrot.lane.b32.xlu0 %v955, 48
        %v1021 = vpop.permute.xlu0 %1020
        %v1023 = vsel %vm715, %v1017, 0
        %v1026 = vsel %vm781, %v1021, 0
        %1028 = vmatprep.subr.bf16.mxu0 0
        %1029 = vmatpush1.bf16.msra.mxu0 %v1026
        %1030 = vmatprep.subr.bf16.mxu0 0
        %1031 = vmatpush1.bf16.msra.mxu0 0
        %1032 = vmatprep.subr.bf16.mxu0 0
        %1033 = vmatpush1.bf16.msra.mxu0 0
        %1034 = vmatprep.subr.bf16.mxu0 0
        %1035 = vmatpush1.bf16.msra.mxu0 0
        %1036 = vmatprep.subr.bf16.mxu0 0
        %1037 = vmatpush1.bf16.msra.mxu0 0
        %1038 = vmatprep.subr.bf16.mxu0 0
        %1039 = vmatpush1.bf16.msra.mxu0 0
        %1040 = vmatprep.subr.bf16.mxu0 0
        %1041 = vmatpush1.bf16.msra.mxu0 0
        %1042 = vmatprep.subr.bf16.mxu0 0
        %1043 = vmatpush1.bf16.msra.mxu0 0
        %1044 = vmatprep.subr.bf16.mxu0 0
        %1045 = vmatpush1.bf16.msra.mxu0 0
        %1046 = vmatprep.subr.bf16.mxu0 0
        %1047 = vmatpush1.bf16.msra.mxu0 0
        %1048 = vmatprep.subr.bf16.mxu0 0
        %1049 = vmatpush1.bf16.msra.mxu0 0
        %1050 = vmatprep.subr.bf16.mxu0 0
        %1051 = vmatpush1.bf16.msra.mxu0 0
        %1052 = vmatprep.subr.bf16.mxu0 0
        %1053 = vmatpush1.bf16.msra.mxu0 0
        %1054 = vmatprep.subr.bf16.mxu0 0
        %1055 = vmatpush1.bf16.msra.mxu0 0
        %1056 = vmatprep.subr.bf16.mxu0 0
        %1057 = vmatpush1.bf16.msra.mxu0 0
        %1058 = vmatprep.subr.bf16.mxu0 0
        %1059 = vmatpush1.bf16.msra.mxu0 0
        %1060 = vmatprep.mubr.bf16.mxu0 0
        %1061 = vmatmul.mubr.bf16.gmra.mrb[0].mxu0 %v1023
        %v1062 = vpop.f32.mrb[0].mxu0
        %v1063 = vadd.f32 0.0, %v1062
        %v1064 = vpop.f32.mrb[0].mxu0
        %v1065 = vpop.f32.mrb[0].mxu0
        %v1066 = vpop.f32.mrb[0].mxu0
        %1067 = vdwg.mxu0
        %v1068 = vpack.c.bf16 %v1063, %v1063
        %v1070 = vunpack.c.l.b16 %v1068
        %v1071 = vpack.c.b16 %v1070, %v1070
        %1072 = vrot.lane.b32.xlu0 %v1071, 16
        %v1073 = vpop.permute.xlu0 %1072
        %vm1075 = vcmask 191616
        %1076 = vst.msk [vmem:[#allocation3] sm:$0xf] %vm1075, %v1073
        %v1077 = vld [vmem:[#allocation2] sm:$0xf]
        %v1079 = vunpack.c.l.b16 %v1077
        %v1080 = vpack.c.b16 %v1079, %v1079
        %1081 = vrot.lane.b32.xlu0 %v1080, 104
        %v1082 = vpop.permute.xlu0 %1081
        %1083 = vrot.lane.b32.xlu0 %v1080, 72
        %v1084 = vpop.permute.xlu0 %1083
        %v1086 = vsel %vm715, %v1082, 0
        %v1089 = vsel %vm715, %v1084, 0
        %1091 = vmatprep.subr.bf16.mxu0 0
        %1092 = vmatpush1.bf16.xpose.msra.mxu0 %v1089
        %1093 = vmatprep.subr.bf16.mxu0 0
        %1094 = vmatpush1.bf16.xpose.msra.mxu0 0
        %1095 = vmatprep.subr.bf16.mxu0 0
        %1096 = vmatpush1.bf16.xpose.msra.mxu0 0
        %1097 = vmatprep.subr.bf16.mxu0 0
        %1098 = vmatpush1.bf16.xpose.msra.mxu0 0
        %1099 = vmatprep.subr.bf16.mxu0 0
        %1100 = vmatpush1.bf16.xpose.msra.mxu0 0
        %1101 = vmatprep.subr.bf16.mxu0 0
        %1102 = vmatpush1.bf16.xpose.msra.mxu0 0
        %1103 = vmatprep.subr.bf16.mxu0 0
        %1104 = vmatpush1.bf16.xpose.msra.mxu0 0
        %1105 = vmatprep.subr.bf16.mxu0 0
        %1106 = vmatpush1.bf16.xpose.msra.mxu0 0
        %1107 = vmatprep.subr.bf16.mxu0 0
        %1108 = vmatpush1.bf16.xpose.msra.mxu0 0
        %1109 = vmatprep.subr.bf16.mxu0 0
        %1110 = vmatpush1.bf16.xpose.msra.mxu0 0
        %1111 = vmatprep.subr.bf16.mxu0 0
        %1112 = vmatpush1.bf16.xpose.msra.mxu0 0
        %1113 = vmatprep.subr.bf16.mxu0 0
        %1114 = vmatpush1.bf16.xpose.msra.mxu0 0
        %1115 = vmatprep.subr.bf16.mxu0 0
        %1116 = vmatpush1.bf16.xpose.msra.mxu0 0
        %1117 = vmatprep.subr.bf16.mxu0 0
        %1118 = vmatpush1.bf16.xpose.msra.mxu0 0
        %1119 = vmatprep.subr.bf16.mxu0 0
        %1120 = vmatpush1.bf16.xpose.msra.mxu0 0
        %1121 = vmatprep.subr.bf16.mxu0 0
        %1122 = vmatpush1.bf16.xpose.msra.mxu0 0
        %1123 = vmatprep.mubr.bf16.mxu0 0
        %1124 = vmatmul.mubr.bf16.gmra.mrb[0].mxu0 %v1086
        %v1125 = vpop.f32.mrb[0].mxu0
        %v1126 = vadd.f32 0.0, %v1125
        %v1127 = vpop.f32.mrb[0].mxu0
        %v1128 = vpop.f32.mrb[0].mxu0
        %v1129 = vpop.f32.mrb[0].mxu0
        %1130 = vdwg.mxu0
        %v1131 = vsel %vm715, %v1126, -inf
        %1132 = vmax.xlane.f32.xlu0 %v1131
        %v1133 = vpop.xlane.xlu0 %1132
        %v1134 = vsub.f32 %v1126, %v1133
        %v1135 = vmul.f32 %v1134, 1.442695
        %v1136 = vpow.pop %v1135
        %v1137 = vsel %vm715, %v1136, 0.0
        %1138 = vadd.xlane.f32.xlu0 %v1137
        %v1139 = vpop.xlane.xlu0 %1138
        %v1140 = vrcp.pop %v1139
        %v1141 = vmul.f32 %v1136, %v1140
        %v1142 = vpack.c.bf16 %v1141, %v1141
        %s1143 = scalar_lea.vmem %s612, 12 [#allocation25]
        %1144 = vst.msk [vmem:[%s1143] sm:$0xf] %vm774, %v1142
        %1145 = vrot.lane.b32.xlu0 %v1080, 40
        %v1146 = vpop.permute.xlu0 %1145
        %v1148 = vsel %vm715, %v1142, 0
        %v1151 = vsel %vm781, %v1146, 0
        %1153 = vmatprep.subr.bf16.mxu0 0
        %1154 = vmatpush1.bf16.msra.mxu0 %v1151
        %1155 = vmatprep.subr.bf16.mxu0 0
        %1156 = vmatpush1.bf16.msra.mxu0 0
        %1157 = vmatprep.subr.bf16.mxu0 0
        %1158 = vmatpush1.bf16.msra.mxu0 0
        %1159 = vmatprep.subr.bf16.mxu0 0
        %1160 = vmatpush1.bf16.msra.mxu0 0
        %1161 = vmatprep.subr.bf16.mxu0 0
        %1162 = vmatpush1.bf16.msra.mxu0 0
        %1163 = vmatprep.subr.bf16.mxu0 0
        %1164 = vmatpush1.bf16.msra.mxu0 0
        %1165 = vmatprep.subr.bf16.mxu0 0
        %1166 = vmatpush1.bf16.msra.mxu0 0
        %1167 = vmatprep.subr.bf16.mxu0 0
        %1168 = vmatpush1.bf16.msra.mxu0 0
        %1169 = vmatprep.subr.bf16.mxu0 0
        %1170 = vmatpush1.bf16.msra.mxu0 0
        %1171 = vmatprep.subr.bf16.mxu0 0
        %1172 = vmatpush1.bf16.msra.mxu0 0
        %1173 = vmatprep.subr.bf16.mxu0 0
        %1174 = vmatpush1.bf16.msra.mxu0 0
        %1175 = vmatprep.subr.bf16.mxu0 0
        %1176 = vmatpush1.bf16.msra.mxu0 0
        %1177 = vmatprep.subr.bf16.mxu0 0
        %1178 = vmatpush1.bf16.msra.mxu0 0
        %1179 = vmatprep.subr.bf16.mxu0 0
        %1180 = vmatpush1.bf16.msra.mxu0 0
        %1181 = vmatprep.subr.bf16.mxu0 0
        %1182 = vmatpush1.bf16.msra.mxu0 0
        %1183 = vmatprep.subr.bf16.mxu0 0
        %1184 = vmatpush1.bf16.msra.mxu0 0
        %1185 = vmatprep.mubr.bf16.mxu0 0
        %1186 = vmatmul.mubr.bf16.gmra.mrb[0].mxu0 %v1148
        %v1187 = vpop.f32.mrb[0].mxu0
        %v1188 = vadd.f32 0.0, %v1187
        %v1189 = vpop.f32.mrb[0].mxu0
        %v1190 = vpop.f32.mrb[0].mxu0
        %v1191 = vpop.f32.mrb[0].mxu0
        %1192 = vdwg.mxu0
        %v1193 = vpack.c.bf16 %v1188, %v1188
        %v1195 = vunpack.c.l.b16 %v1193
        %v1196 = vpack.c.b16 %v1195, %v1195
        %1197 = vrot.lane.b32.xlu0 %v1196, 24
        %v1198 = vpop.permute.xlu0 %1197
        %vm1200 = vcmask 257216
        %1201 = vst.msk [vmem:[#allocation3] sm:$0xf] %vm1200, %v1198
        %v1202 = vld [vmem:[#allocation3] sm:$0xf]
        %v1203 = vld [vmem:[#allocation9] sm:$0xf]
        %v1204 = vld [vmem:[#allocation9 + $0x4] sm:$0xf]
        %v1205 = vld [vmem:[#allocation9 + $0x8] sm:$0xf]
        %v1206 = vld [vmem:[#allocation9 + $0xc] sm:$0xf]
        %v1207 = vld [vmem:[#allocation10] sm:$0x1]
        %v1209 = vlaneseq
        %v1210 = vshrl.u32 %v1209, 7
        %v1211 = vsub.s32 0, %v1210
        %v1212 = vrot.slane %v1207, %v1211
        %v1218 = vunpack.c.l.b16 %v1203
        %v1219 = vunpack.c.l.b16 %v1204
        %v1220 = vunpack.c.l.b16 %v1205
        %v1221 = vunpack.c.l.b16 %v1206
        %v1222 = vpack.c.b16 %v1219, %v1218
        %v1223 = vpack.c.b16 %v1221, %v1220
        %v1227 = vsel %vm617, %v1202, 0
        %1229 = vmatprep.subr.bf16.mxu0 0
        %1230 = vmatpush1.bf16.msra.mxu0 %v1222
        %1231 = vmatprep.subr.bf16.mxu0 0
        %1232 = vmatpush1.bf16.msra.mxu0 %v1223
        %1233 = vmatprep.subr.bf16.mxu0 0
        %1234 = vmatpush1.bf16.msra.mxu0 0
        %1235 = vmatprep.subr.bf16.mxu0 0
        %1236 = vmatpush1.bf16.msra.mxu0 0
        %1237 = vmatprep.subr.bf16.mxu0 0
        %1238 = vmatpush1.bf16.msra.mxu0 0
        %1239 = vmatprep.subr.bf16.mxu0 0
        %1240 = vmatpush1.bf16.msra.mxu0 0
        %1241 = vmatprep.subr.bf16.mxu0 0
        %1242 = vmatpush1.bf16.msra.mxu0 0
        %1243 = vmatprep.subr.bf16.mxu0 0
        %1244 = vmatpush1.bf16.msra.mxu0 0
        %1245 = vmatprep.subr.bf16.mxu0 0
        %1246 = vmatpush1.bf16.msra.mxu0 0
        %1247 = vmatprep.subr.bf16.mxu0 0
        %1248 = vmatpush1.bf16.msra.mxu0 0
        %1249 = vmatprep.subr.bf16.mxu0 0
        %1250 = vmatpush1.bf16.msra.mxu0 0
        %1251 = vmatprep.subr.bf16.mxu0 0
        %1252 = vmatpush1.bf16.msra.mxu0 0
        %1253 = vmatprep.subr.bf16.mxu0 0
        %1254 = vmatpush1.bf16.msra.mxu0 0
        %1255 = vmatprep.subr.bf16.mxu0 0
        %1256 = vmatpush1.bf16.msra.mxu0 0
        %1257 = vmatprep.subr.bf16.mxu0 0
        %1258 = vmatpush1.bf16.msra.mxu0 0
        %1259 = vmatprep.subr.bf16.mxu0 0
        %1260 = vmatpush1.bf16.msra.mxu0 0
        %1261 = vmatprep.mubr.bf16.mxu0 0
        %1262 = vmatmul.mubr.bf16.gmra.mrb[0].mxu0 %v1227
        %v1263 = vpop.f32.mrb[0].mxu0
        %v1264 = vadd.f32 %v1212, %v1263
        %v1265 = vpop.f32.mrb[0].mxu0
        %v1266 = vpop.f32.mrb[0].mxu0
        %v1267 = vpop.f32.mrb[0].mxu0
        %1268 = vdwg.mxu0
        %v1269 = vld [vmem:[%s521] sm:$0xff]
        %v1270 = vadd.f32 %v1269, %v1264
        %v1271 = vld [vmem:[#allocation21] sm:$0x1]
        %v1272 = vld [vmem:[#allocation22] sm:$0x1]
        %v1273 = vsel %vm617, %v1270, 0.0
        %1274 = vadd.xlane.f32.xlu0 %v1273
        %v1275 = vpop.xlane.xlu0 %1274
        %v1276 = vmul.f32 %v1275, %v621
        %v1277 = vsub.f32 %v1270, %v1276
        %v1278 = vmul.f32 %v1277, %v1277
        %v1279 = vsel %vm617, %v1278, 0.0
        %1280 = vadd.xlane.f32.xlu0 %v1279
        %v1281 = vpop.xlane.xlu0 %1280
        %v1282 = vmul.f32 %v1281, %v621
        %v1283 = vadd.f32 %v1282, 1e-05
        %v1284 = vrsqrt.pop %v1283
        %v1285 = vmul.f32 %v1277, %v1284
        %v1287 = vlaneseq
        %v1288 = vshrl.u32 %v1287, 7
        %v1289 = vsub.s32 0, %v1288
        %v1290 = vrot.slane %v1271, %v1289
        %v1292 = vmul.f32 %v1285, %v1290
        %v1294 = vlaneseq
        %v1295 = vshrl.u32 %v1294, 7
        %v1296 = vsub.s32 0, %v1295
        %v1297 = vrot.slane %v1272, %v1296
        %v1299 = vadd.f32 %v1292, %v1297
        %v1300 = vpack.c.bf16 %v1299, %v1299
        %v1301 = vld [vmem:[#allocation12] sm:$0xf]
        %v1302 = vld [vmem:[#allocation12 + $0x4] sm:$0xf]
        %v1303 = vld [vmem:[#allocation12 + $0x8] sm:$0xf]
        %v1304 = vld [vmem:[#allocation12 + $0xc] sm:$0xf]
        %v1305 = vld [vmem:[#allocation13] sm:$0x1]
        %v1307 = vlaneseq
        %v1308 = vshrl.u32 %v1307, 7
        %v1309 = vsub.s32 0, %v1308
        %v1310 = vrot.slane %v1305, %v1309
        %v1316 = vunpack.c.l.b16 %v1301
        %v1317 = vunpack.c.l.b16 %v1302
        %v1318 = vunpack.c.l.b16 %v1303
        %v1319 = vunpack.c.l.b16 %v1304
        %v1320 = vpack.c.b16 %v1317, %v1316
        %v1321 = vpack.c.b16 %v1319, %v1318
        %v1325 = vsel %vm617, %v1300, 0
        %1327 = vmatprep.subr.bf16.mxu0 0
        %1328 = vmatpush1.bf16.msra.mxu0 %v1320
        %1329 = vmatprep.subr.bf16.mxu0 0
        %1330 = vmatpush1.bf16.msra.mxu0 %v1321
        %1331 = vmatprep.subr.bf16.mxu0 0
        %1332 = vmatpush1.bf16.msra.mxu0 0
        %1333 = vmatprep.subr.bf16.mxu0 0
        %1334 = vmatpush1.bf16.msra.mxu0 0
        %1335 = vmatprep.subr.bf16.mxu0 0
        %1336 = vmatpush1.bf16.msra.mxu0 0
        %1337 = vmatprep.subr.bf16.mxu0 0
        %1338 = vmatpush1.bf16.msra.mxu0 0
        %1339 = vmatprep.subr.bf16.mxu0 0
        %1340 = vmatpush1.bf16.msra.mxu0 0
        %1341 = vmatprep.subr.bf16.mxu0 0
        %1342 = vmatpush1.bf16.msra.mxu0 0
        %1343 = vmatprep.subr.bf16.mxu0 0
        %1344 = vmatpush1.bf16.msra.mxu0 0
        %1345 = vmatprep.subr.bf16.mxu0 0
        %1346 = vmatpush1.bf16.msra.mxu0 0
        %1347 = vmatprep.subr.bf16.mxu0 0
        %1348 = vmatpush1.bf16.msra.mxu0 0
        %1349 = vmatprep.subr.bf16.mxu0 0
        %1350 = vmatpush1.bf16.msra.mxu0 0
        %1351 = vmatprep.subr.bf16.mxu0 0
        %1352 = vmatpush1.bf16.msra.mxu0 0
        %1353 = vmatprep.subr.bf16.mxu0 0
        %1354 = vmatpush1.bf16.msra.mxu0 0
        %1355 = vmatprep.subr.bf16.mxu0 0
        %1356 = vmatpush1.bf16.msra.mxu0 0
        %1357 = vmatprep.subr.bf16.mxu0 0
        %1358 = vmatpush1.bf16.msra.mxu0 0
        %1359 = vmatprep.mubr.bf16.mxu0 0
        %1360 = vmatmul.mubr.bf16.gmra.mrb[0].mxu0 %v1325
        %v1361 = vpop.f32.mrb[0].mxu0
        %v1362 = vadd.f32 %v1310, %v1361
        %v1363 = vpop.f32.mrb[0].mxu0
        %v1364 = vpop.f32.mrb[0].mxu0
        %v1365 = vpop.f32.mrb[0].mxu0
        %1366 = vdwg.mxu0
        %v1367 = vmax.f32 %v1362, 0.0
        %v1368 = vpack.c.bf16 %v1367, %v1367
        %v1369 = vld [vmem:[#allocation15] sm:$0xf]
        %v1370 = vld [vmem:[#allocation15 + $0x4] sm:$0xf]
        %v1371 = vld [vmem:[#allocation15 + $0x8] sm:$0xf]
        %v1372 = vld [vmem:[#allocation15 + $0xc] sm:$0xf]
        %v1373 = vld [vmem:[#allocation15 + $0x10] sm:$0xf]
        %v1374 = vld [vmem:[#allocation15 + $0x14] sm:$0xf]
        %v1375 = vld [vmem:[#allocation15 + $0x18] sm:$0xf]
        %v1376 = vld [vmem:[#allocation15 + $0x1c] sm:$0xf]
        %v1377 = vld [vmem:[#allocation15 + $0x20] sm:$0xf]
        %v1378 = vld [vmem:[#allocation15 + $0x24] sm:$0xf]
        %v1379 = vld [vmem:[#allocation15 + $0x28] sm:$0xf]
        %v1380 = vld [vmem:[#allocation15 + $0x2c] sm:$0xf]
        %v1381 = vld [vmem:[#allocation15 + $0x30] sm:$0xf]
        %v1382 = vld [vmem:[#allocation15 + $0x34] sm:$0xf]
        %v1383 = vld [vmem:[#allocation15 + $0x38] sm:$0xf]
        %v1384 = vld [vmem:[#allocation15 + $0x3c] sm:$0xf]
        %v1385 = vld [vmem:[#allocation16] sm:$0x1]
        %v1387 = vlaneseq
        %v1388 = vshrl.u32 %v1387, 7
        %v1389 = vsub.s32 0, %v1388
        %v1390 = vrot.slane %v1385, %v1389
        %v1408 = vunpack.c.l.b16 %v1369
        %v1409 = vunpack.c.l.b16 %v1370
        %v1410 = vunpack.c.l.b16 %v1371
        %v1411 = vunpack.c.l.b16 %v1372
        %v1412 = vunpack.c.l.b16 %v1373
        %v1413 = vunpack.c.l.b16 %v1374
        %v1414 = vunpack.c.l.b16 %v1375
        %v1415 = vunpack.c.l.b16 %v1376
        %v1416 = vunpack.c.l.b16 %v1377
        %v1417 = vunpack.c.l.b16 %v1378
        %v1418 = vunpack.c.l.b16 %v1379
        %v1419 = vunpack.c.l.b16 %v1380
        %v1420 = vunpack.c.l.b16 %v1381
        %v1421 = vunpack.c.l.b16 %v1382
        %v1422 = vunpack.c.l.b16 %v1383
        %v1423 = vunpack.c.l.b16 %v1384
        %v1424 = vpack.c.b16 %v1409, %v1408
        %v1425 = vpack.c.b16 %v1411, %v1410
        %v1426 = vpack.c.b16 %v1413, %v1412
        %v1427 = vpack.c.b16 %v1415, %v1414
        %v1428 = vpack.c.b16 %v1417, %v1416
        %v1429 = vpack.c.b16 %v1419, %v1418
        %v1430 = vpack.c.b16 %v1421, %v1420
        %v1431 = vpack.c.b16 %v1423, %v1422
        %1440 = vmatprep.subr.bf16.mxu0 0
        %1441 = vmatpush1.bf16.msra.mxu0 %v1424
        %1442 = vmatprep.subr.bf16.mxu0 0
        %1443 = vmatpush1.bf16.msra.mxu0 %v1425
        %1444 = vmatprep.subr.bf16.mxu0 0
        %1445 = vmatpush1.bf16.msra.mxu0 %v1426
        %1446 = vmatprep.subr.bf16.mxu0 0
        %1447 = vmatpush1.bf16.msra.mxu0 %v1427
        %1448 = vmatprep.subr.bf16.mxu0 0
        %1449 = vmatpush1.bf16.msra.mxu0 %v1428
        %1450 = vmatprep.subr.bf16.mxu0 0
        %1451 = vmatpush1.bf16.msra.mxu0 %v1429
        %1452 = vmatprep.subr.bf16.mxu0 0
        %1453 = vmatpush1.bf16.msra.mxu0 %v1430
        %1454 = vmatprep.subr.bf16.mxu0 0
        %1455 = vmatpush1.bf16.msra.mxu0 %v1431
        %1456 = vmatprep.subr.bf16.mxu0 0
        %1457 = vmatpush1.bf16.msra.mxu0 0
        %1458 = vmatprep.subr.bf16.mxu0 0
        %1459 = vmatpush1.bf16.msra.mxu0 0
        %1460 = vmatprep.subr.bf16.mxu0 0
        %1461 = vmatpush1.bf16.msra.mxu0 0
        %1462 = vmatprep.subr.bf16.mxu0 0
        %1463 = vmatpush1.bf16.msra.mxu0 0
        %1464 = vmatprep.subr.bf16.mxu0 0
        %1465 = vmatpush1.bf16.msra.mxu0 0
        %1466 = vmatprep.subr.bf16.mxu0 0
        %1467 = vmatpush1.bf16.msra.mxu0 0
        %1468 = vmatprep.subr.bf16.mxu0 0
        %1469 = vmatpush1.bf16.msra.mxu0 0
        %1470 = vmatprep.subr.bf16.mxu0 0
        %1471 = vmatpush1.bf16.msra.mxu0 0
        %1472 = vmatprep.mubr.bf16.mxu0 0
        %1473 = vmatmul.mubr.bf16.gmra.mrb[0].mxu0 %v1368
        %v1474 = vpop.f32.mrb[0].mxu0
        %v1475 = vadd.f32 %v1390, %v1474
        %v1476 = vpop.f32.mrb[0].mxu0
        %v1477 = vpop.f32.mrb[0].mxu0
        %v1478 = vpop.f32.mrb[0].mxu0
        %1479 = vdwg.mxu0
        %v1480 = vadd.f32 %v1270, %v1475
        %1481 = vst.msk [vmem:[%s605] sm:$0xff] %vm617, %v1480
        %s1482 = sand.u32 %s305, 1
        %s1483 = scalar_lea.sflag [#allocation6], %s1482
        %s1484 = sand.u32 %s305, 1
        %s1485 = smul.addr %s1484, 8
        %s1486 = scalar_lea.vmem [#allocation24], %s1485
        %s1487 = sand.u32 %s331, 1
        %s1488 = scalar_lea.sflag [#allocation26], %s1487
        %s1489 = sand.u32 %s331, 1
        %s1490 = smul.addr %s1489, 16
        %s1491 = scalar_lea.vmem [#allocation25], %s1490
        // Predicated region
        $region117: #{tpu_custom_call.1} parent=67 // pred_check
          %p1492 = pneg %p315
        $region118: #{tpu_custom_call.1} parent=67 // pred_check_branch
          %1494 = sbr.rel (%p1492) target = $region120
        $region119: #{tpu_custom_call.1} parent=67 // pred_region
          %s1496 = ssub.s32 128, 128
          %1497 = vsyncadd %s1483, %s1496
          %s1498 = smul.addr %s40, 128
          %s1499 = scalar_lea.hbm %s12, %s1498
          %s1501 = sshll.u32 %s1486, 4
          %s1502 = int_to_ptr.vmem [resolvable:$true] %s1501
          %1504 = dma.vmem_to_hbm [thread:$0]  %s1502, 128, %s1499, %s1483
        $region120: #{tpu_custom_call.1} parent=67 // pred_fallthru
          _
        // Predicated region
        $region121: #{tpu_custom_call.1} parent=67 // pred_check
          %p1505 = pneg %p341
        $region122: #{tpu_custom_call.1} parent=67 // pred_check_branch
          %1507 = sbr.rel (%p1505) target = $region124
        $region123: #{tpu_custom_call.1} parent=67 // pred_region
          %s1509 = ssub.s32 256, 256
          %1510 = vsyncadd %s1488, %s1509
          %s1511 = smul.addr %s40, 64
          %s1512 = scalar_lea.hbm %s13, %s1511
          %s1513 = sshll.u32 %s1491, 4
          %s1514 = int_to_ptr.vmem [resolvable:$true] %s1513
          %1519 = dma.vmem_to_hbm [thread:$0]  %s1514, 256, %s1512, %s1488, 64, 128, 4
        $region124: #{tpu_custom_call.1} parent=67 // pred_fallthru
          _
      $region68: #{tpu_custom_call.1} parent=5 // pred_fallthru
        _
      %p1520 = scmp.le.s32.totalorder 2, %s35
      // Predicated region
      $region125: #{tpu_custom_call.1} parent=5 // pred_check
        %p1521 = pneg %p1520
      $region126: #{tpu_custom_call.1} parent=5 // pred_check_branch
        %1523 = sbr.rel (%p1521) target = $region128
      $region127: #{tpu_custom_call.1} parent=5 // pred_region
        %s1524 = ssub.s32 %s35, 2
        // Predicated region
        $region129: #{tpu_custom_call.1} parent=127 // pred_check
          %p1525 = pneg %p321
        $region130: #{tpu_custom_call.1} parent=127 // pred_check_branch
          %1527 = sbr.rel (%p1525) target = $region132
        $region131: #{tpu_custom_call.1} parent=127 // pred_region
          %s1528 = sand.u32 %s306, 1
          %s1529 = scalar_lea.sflag [#allocation6], %s1528
          %s1530 = sand.u32 %s306, 1
          %s1531 = smul.addr %s1530, 8
          %s1532 = scalar_lea.vmem [#allocation24], %s1531
          %1533 = dma.done %s1529, 128
        $region132: #{tpu_custom_call.1} parent=127 // pred_fallthru
          _
        // Predicated region
        $region133: #{tpu_custom_call.1} parent=127 // pred_check
          %p1534 = pneg %p347
        $region134: #{tpu_custom_call.1} parent=127 // pred_check_branch
          %1536 = sbr.rel (%p1534) target = $region136
        $region135: #{tpu_custom_call.1} parent=127 // pred_region
          %s1537 = sand.u32 %s332, 1
          %s1538 = scalar_lea.sflag [#allocation26], %s1537
          %s1539 = sand.u32 %s332, 1
          %s1540 = smul.addr %s1539, 16
          %s1541 = scalar_lea.vmem [#allocation25], %s1540
          %1542 = dma.done %s1538, 256
        $region136: #{tpu_custom_call.1} parent=127 // pred_fallthru
          _
      $region128: #{tpu_custom_call.1} parent=5 // pred_fallthru
        _
    $region6: #{tpu_custom_call.1} parent=1 // loop_footer
      %s39 = sadd.s32 1, %s35
    $region7: #{tpu_custom_call.1} parent=1 // loop_footer_branch
      %34 = sbr.rel target = $region3
    $region8: #{tpu_custom_call.1} parent=1 // loop_exit
      _
    %1543 = vsyncpa [#allocation5], 1
    %s1544 = scalar_lea.sflag [#allocation5], 1
    %1545 = vsyncpa %s1544, 1
    %1546 = vsyncpa [#allocation8], 1
    %1547 = vsyncpa [#allocation11], 1
    %1548 = vsyncpa [#allocation14], 1
    %1549 = vsyncpa [#allocation17], 1
    %1550 = vsyncpa [#allocation20], 1
    %1551 = vsyncpa [#allocation23], 1
    %1552 = vsyncpa [#allocation6], 1
    %s1553 = scalar_lea.sflag [#allocation6], 1
    %1554 = vsyncpa %s1553, 1
    %1555 = vsyncpa [#allocation26], 1
    %s1556 = scalar_lea.sflag [#allocation26], 1
    %1557 = vsyncpa %s1556, 1

</llo_original>
